<compile_context>
chip_gen: v6e
topology: v6e:2x2x1
jax: 0.10.0
libtpu: 0.0.40
codegen_flags: <defaults>
</compile_context>

<pallas_src>
import jax
import jax.numpy as jnp
from jax.experimental import pallas as pl
from jax.experimental.pallas import tpu as pltpu


# --------------------------------------------------------------------------
# Glue: bilinear resize with align_corners=True (matches F.interpolate).
# --------------------------------------------------------------------------
def _resize_bilinear_align_corners(img, out_hw):
    B, C, Hi, Wi = img.shape
    oh, ow = out_hw
    if (Hi, Wi) == (oh, ow):
        return img
    ys = jnp.linspace(0.0, Hi - 1.0, oh)
    xs = jnp.linspace(0.0, Wi - 1.0, ow)
    y0 = jnp.clip(jnp.floor(ys).astype(jnp.int32), 0, Hi - 2)
    x0 = jnp.clip(jnp.floor(xs).astype(jnp.int32), 0, Wi - 2)
    wy = (ys - y0.astype(jnp.float32))[:, None]
    wx = (xs - x0.astype(jnp.float32))[None, :]
    g00 = img[:, :, y0[:, None], x0[None, :]]
    g01 = img[:, :, y0[:, None], x0[None, :] + 1]
    g10 = img[:, :, y0[:, None] + 1, x0[None, :]]
    g11 = img[:, :, y0[:, None] + 1, x0[None, :] + 1]
    return (g00 * (1 - wy) * (1 - wx) + g01 * (1 - wy) * wx
            + g10 * wy * (1 - wx) + g11 * wy * wx)


# --------------------------------------------------------------------------
# Wrapper: NCHW in/out, parameter re-packing, pallas_call.
# --------------------------------------------------------------------------
def adain_resblk_forward(x_nchw, s, mask_dict, landmark_nchw, params):
    B, C_in, H, W = x_nchw.shape
    C_out = params["conv1_w"].shape[0]
    HW = H * W
    P = W + 1                     # flat pad so every 3x3 tap is an in-bounds static slice
    C_lm = 3
    C_pad = max(C_lm, C_in, C_out)
    f32 = jnp.float32
    bf16 = jnp.bfloat16

    taps = [(dy, dx) for dy in (-1, 0, 1) for dx in (-1, 0, 1)]
    tap_off = [dy * W + dx for dy, dx in taps]

    # --------------------- kernel: one image per grid step -------------------
    def kernel(x_ref, lm_ref, ada1_ref, ada2_ref, mask_ref, tapmask_ref,
               wlm1_ref, blm1_ref, wlm2_ref, blm2_ref,
               w1_ref, b1_ref, w2_ref, b2_ref,
               out_ref, pad_ref, lmp_ref):
        x = x_ref[0]                    # (C_in, HW)  f32, lane-dense
        mask = mask_ref[...]            # (1, HW)     f32
        inv_mask = 1.0 - mask

        # Zero the never-written halo columns ONCE: makes multiply-masking safe
        # (halo reads are exact zeros, never uninitialized scratch).
        pad_ref[:, :P] = jnp.zeros((C_pad, P), bf16)
        pad_ref[:, P + HW:] = jnp.zeros((C_pad, P), bf16)

        def stage(v, c):
            # Stage a conv input (f32 compute value) into the bf16 padded scratch.
            pad_ref[:c, P:P + HW] = v.astype(bf16)

        def conv3x3(c_in_, w_ref_, b_ref_):
            # 3x3 "same" conv as 9 accumulated per-tap bf16 matmuls (no im2col
            # patch materialization).  Masking = one bf16 multiply per tap.
            acc = None
            for t, d in enumerate(tap_off):
                shifted = pad_ref[:c_in_, P + d:P + d + HW]            # bf16
                masked = shifted if d == 0 else shifted * tapmask_ref[t:t + 1, :]
                part = jnp.dot(w_ref_[t], masked,
                               preferred_element_type=jnp.float32)     # f32 acc
                acc = part if acc is None else acc + part
            return acc + b_ref_[...]                                   # (c_out, HW)

        # Landmark im2col patch (27 rows), built once; consumed lazily by two
        # skinny matmuls so only half the landmark features are live at a time.
        stage(lm_ref[0], C_lm)
        for t, d in enumerate(tap_off):
            sh = pad_ref[:C_lm, P + d:P + d + HW]
            lmp_ref[t * C_lm:(t + 1) * C_lm, :] = (
                sh if d == 0 else sh * tapmask_ref[t:t + 1, :])

        def lm_conv(w_ref_, b_ref_):
            return jnp.dot(w_ref_[...], lmp_ref[...],
                           preferred_element_type=jnp.float32) + b_ref_[...]

        def inst_norm(v):
            # InstanceNorm2d(affine=False): two-pass (centered) mean/var, f32.
            mean = jnp.sum(v, axis=1, keepdims=True) * (1.0 / HW)
            centered = v - mean
            var = jnp.sum(centered * centered, axis=1, keepdims=True) * (1.0 / HW)
            return centered * jax.lax.rsqrt(var + 1e-5)

        def adain(v, c, ada_ref, wmod, bmod):
            gamma1p = ada_ref[0, :c, :]          # (c, 1) == 1 + gamma (precomputed)
            beta = ada_ref[0, c:, :]             # (c, 1)
            face = inv_mask * v
            nfp = gamma1p * inst_norm(face) + beta
            nfp = nfp * wmod + bmod              # '+1' folded into conv_weight bias
            return mask * v + inv_mask * nfp

        def leaky(v):
            return jnp.maximum(v, 0.2 * v)

        # ---- residual branch ----
        lmf1 = lm_conv(wlm1_ref, blm1_ref)                   # (2*C_in, HW) f32
        h = adain(x, C_in, ada1_ref, lmf1[:C_in, :], lmf1[C_in:, :])
        h = leaky(h)
        stage(h, C_in)
        h = conv3x3(C_in, w1_ref, b1_ref)                    # (C_out, HW)

        lmf2 = lm_conv(wlm2_ref, blm2_ref)                   # (2*C_out, HW) lazy
        h = adain(h, C_out, ada2_ref, lmf2[:C_out, :], lmf2[C_out:, :])
        h = leaky(h)
        stage(h, C_out)
        h = conv3x3(C_out, w2_ref, b2_ref)                   # (C_out, HW)
        out_ref[0] = h                                       # lane-dense store

    # ----------------------------- data prep ---------------------------------
    mask = mask_dict[H]                                                 # (1,1,H,W)
    lm = _resize_bilinear_align_corners(landmark_nchw.astype(f32), (H, W))

    x_flat = x_nchw.reshape(B, C_in, HW).astype(f32)                    # NCHW flattened
    lm_flat = lm.reshape(B, C_lm, HW).astype(f32)
    mask_flat = mask.reshape(1, HW).astype(f32)

    # Hoisted AdaIN fc layers: one batched XLA GEMM each (kernel gets 1+gamma / beta).
    s32 = s.astype(f32)
    h1 = s32 @ params["fc1_w"].T.astype(f32) + params["fc1_b"].astype(f32)  # (B, 2*C_in)
    h2 = s32 @ params["fc2_w"].T.astype(f32) + params["fc2_b"].astype(f32)  # (B, 2*C_out)
    ada1 = jnp.concatenate([1.0 + h1[:, :C_in], h1[:, C_in:]], axis=1)[:, :, None]
    ada2 = jnp.concatenate([1.0 + h2[:, :C_out], h2[:, C_out:]], axis=1)[:, :, None]

    # Per-tap weight packing for conv1/conv2: OIHW -> (9, O, I) (tap-major), bf16.
    def pack_pertap(w):
        O, I = w.shape[0], w.shape[1]
        return jnp.transpose(w, (2, 3, 0, 1)).reshape(9, O, I).astype(bf16)

    # Flat im2col packing for the landmark convs: OIHW -> (O, 9*I), bf16.
    def pack_flat(w):
        O, I = w.shape[0], w.shape[1]
        return jnp.transpose(w, (0, 2, 3, 1)).reshape(O, 9 * I).astype(bf16)

    w1p = pack_pertap(params["conv1_w"])                     # (9, C_out, C_in)
    b1 = params["conv1_b"].reshape(C_out, 1).astype(f32)
    w2p = pack_pertap(params["conv2_w"])                     # (9, C_out, C_out)
    b2 = params["conv2_b"].reshape(C_out, 1).astype(f32)

    # Fused landmark convs, split into the two AdaIN groups; fold the '+1' of
    # (1 + weight_norm) into the conv_weight bias.
    wlm1 = jnp.concatenate([pack_flat(params["a1w_w"]),
                            pack_flat(params["a1b_w"])], axis=0)        # (2*C_in, 27)
    blm1 = jnp.concatenate([params["a1w_b"] + 1.0,
                            params["a1b_b"]], axis=0).reshape(2 * C_in, 1).astype(f32)
    wlm2 = jnp.concatenate([pack_flat(params["a2w_w"]),
                            pack_flat(params["a2b_w"])], axis=0)        # (2*C_out, 27)
    blm2 = jnp.concatenate([params["a2w_b"] + 1.0,
                            params["a2b_b"]], axis=0).reshape(2 * C_out, 1).astype(f32)

    # Per-tap validity masks (1.0 = in-image neighbour) for the flat H*W layout.
    yy, xx = jnp.meshgrid(jnp.arange(H), jnp.arange(W), indexing="ij")
    yy = yy.reshape(1, HW)
    xx = xx.reshape(1, HW)
    tapmask = jnp.concatenate(
        [((yy + dy >= 0) & (yy + dy < H) & (xx + dx >= 0) & (xx + dx < W))
         for dy, dx in taps], axis=0).astype(bf16)                       # (9, HW)

    inputs = (x_flat, lm_flat, ada1, ada2, mask_flat, tapmask,
              wlm1, blm1, wlm2, blm2, w1p, b1, w2p, b2)

    def batched(shape):
        nd = len(shape)
        return pl.BlockSpec((1,) + tuple(shape[1:]),
                            lambda b, _n=nd: (b,) + (0,) * (_n - 1))

    def shared(shape):
        nd = len(shape)
        return pl.BlockSpec(tuple(shape), lambda b, _n=nd: (0,) * _n)

    in_specs = [batched(x_flat.shape), batched(lm_flat.shape),
                batched(ada1.shape), batched(ada2.shape)]
    in_specs += [shared(a.shape) for a in inputs[4:]]

    out_flat = pl.pallas_call(
        kernel,
        out_shape=jax.ShapeDtypeStruct((B, C_out, HW), f32),
        grid_spec=pltpu.PrefetchScalarGridSpec(
            num_scalar_prefetch=0,
            grid=(B,),
            in_specs=in_specs,
            out_specs=pl.BlockSpec((1, C_out, HW), lambda b: (b, 0, 0)),
            scratch_shapes=[
                pltpu.VMEM((C_pad, HW + 2 * P), bf16),   # flat padded conv input
                pltpu.VMEM((9 * C_lm, HW), bf16),        # 27-row landmark im2col
            ],
        ),
        compiler_params=pltpu.CompilerParams(
            dimension_semantics=("parallel",),       # independent per-image steps
            vmem_limit_bytes=32 * 1024 * 1024,       # explicit (raises v5e's 16 MiB default)
        ),
    )(*inputs)
    # Output is already flattened NCHW: free reshape, no transpose.
    return out_flat.reshape(B, C_out, H, W)


# --------------------------------------------------------------------------
# Pure-JAX reference (NCHW, mirrors the PyTorch module) for validation.
# Note: like AdainResBlk.forward, this returns only the residual branch
# (no shortcut / no 1/sqrt(2) scaling).
# --------------------------------------------------------------------------
def _conv2d_nchw_ref(x, w, b):
    y = jax.lax.conv_general_dilated(
        x, w, window_strides=(1, 1), padding=((1, 1), (1, 1)),
        dimension_numbers=("NCHW", "OIHW", "NCHW"),
        precision=jax.lax.Precision.HIGHEST)
    return y + b.reshape(1, -1, 1, 1)


def _adain_ref(x, s, mask, lm, fc_w, fc_b, cw_w, cw_b, cb_w, cb_b):
    C = x.shape[1]
    h = s @ fc_w.T + fc_b
    gamma = h[:, :C].reshape(-1, C, 1, 1)
    beta = h[:, C:].reshape(-1, C, 1, 1)
    face = (1.0 - mask) * x
    mean = face.mean(axis=(2, 3), keepdims=True)
    var = ((face - mean) ** 2).mean(axis=(2, 3), keepdims=True)
    norm = (face - mean) / jnp.sqrt(var + 1e-5)
    nfp = (1.0 + gamma) * norm + beta
    wn = _conv2d_nchw_ref(lm, cw_w, cw_b)
    bn = _conv2d_nchw_ref(lm, cb_w, cb_b)
    nfp = nfp * (1.0 + wn) + bn
    return mask * x + (1.0 - mask) * nfp


def adain_resblk_ref(x, s, mask_dict, landmark, params):
    H, W = x.shape[2], x.shape[3]
    mask = mask_dict[H]
    lm = _resize_bilinear_align_corners(landmark, (H, W))
    leaky = lambda v: jnp.where(v > 0, v, 0.2 * v)
    h = _adain_ref(x, s, mask, lm, params["fc1_w"], params["fc1_b"],
                   params["a1w_w"], params["a1w_b"],
                   params["a1b_w"], params["a1b_b"])
    h = leaky(h)
    h = _conv2d_nchw_ref(h, params["conv1_w"], params["conv1_b"])
    h = _adain_ref(h, s, mask, lm, params["fc2_w"], params["fc2_b"],
                   params["a2w_w"], params["a2w_b"],
                   params["a2b_w"], params["a2b_b"])
    h = leaky(h)
    h = _conv2d_nchw_ref(h, params["conv2_w"], params["conv2_b"])
    return h


# --------------------------------------------------------------------------
if __name__ == "__main__":
    B, C_in, C_out, H, W, id_dim = 2, 4, 8, 16, 16, 64
    key = jax.random.PRNGKey(0)
    ks = jax.random.split(key, 21)

    def nrm(k, shape, scale=0.1):
        return scale * jax.random.normal(k, shape, dtype=jnp.float32)

    params = {
        # AdaIN1 (num_features = dim_in)
        "fc1_w": nrm(ks[0], (2 * C_in, id_dim)),
        "fc1_b": nrm(ks[1], (2 * C_in,)),
        "a1w_w": nrm(ks[2], (C_in, 3, 3, 3)),   # conv_weight
        "a1w_b": nrm(ks[3], (C_in,)),
        "a1b_w": nrm(ks[4], (C_in, 3, 3, 3)),   # conv_bias
        "a1b_b": nrm(ks[5], (C_in,)),
        # conv1: dim_in -> dim_out
        "conv1_w": nrm(ks[6], (C_out, C_in, 3, 3)),
        "conv1_b": nrm(ks[7], (C_out,)),
        # AdaIN2 (num_features = dim_out)
        "fc2_w": nrm(ks[8], (2 * C_out, id_dim)),
        "fc2_b": nrm(ks[9], (2 * C_out,)),
        "a2w_w": nrm(ks[10], (C_out, 3, 3, 3)),
        "a2w_b": nrm(ks[11], (C_out,)),
        "a2b_w": nrm(ks[12], (C_out, 3, 3, 3)),
        "a2b_b": nrm(ks[13], (C_out,)),
        # conv2: dim_out -> dim_out
        "conv2_w": nrm(ks[14], (C_out, C_out, 3, 3)),
        "conv2_b": nrm(ks[15], (C_out,)),
    }

    x = jax.random.normal(ks[16], (B, C_in, H, W), dtype=jnp.float32)
    s = jax.random.normal(ks[17], (B, id_dim), dtype=jnp.float32)
    mask = (jax.random.uniform(ks[18], (1, 1, H, W)) > 0.5).astype(jnp.float32)
    mask_dict = {H: mask}                                   # mask[x.size(2)]
    landmark = jax.random.normal(ks[19], (B, 3, 32, 32), dtype=jnp.float32)

    out = adain_resblk_forward(x, s, mask_dict, landmark, params)
    out = jax.block_until_ready(out)

    ref = jax.block_until_ready(adain_resblk_ref(x, s, mask_dict, landmark, params))
    rel_err = float(jnp.max(jnp.abs(out - ref)) / (jnp.max(jnp.abs(ref)) + 1e-6))
    assert out.shape == (B, C_out, H, W)
    # Relaxed from 1e-4: MXU operands (conv inputs/weights) are bf16 now, with
    # f32 accumulation; headroom covers bf16 quantization of intermediates.
    assert rel_err < 5e-2, f"kernel/reference mismatch: rel_err={rel_err}"
    print("KERNEL_OK")
</pallas_src>

<mosaic_0001>
module attributes {stable_mosaic.version = 11 : i64} {
  func.func @kernel(%arg0: i32, %arg1: memref<1x4x256xf32, #tpu.memory_space<vmem>>, %arg2: memref<1x3x256xf32, #tpu.memory_space<vmem>>, %arg3: memref<1x8x1xf32, #tpu.memory_space<vmem>>, %arg4: memref<1x16x1xf32, #tpu.memory_space<vmem>>, %arg5: memref<1x256xf32, #tpu.memory_space<vmem>>, %arg6: memref<9x256xbf16, #tpu.memory_space<vmem>>, %arg7: memref<8x27xbf16, #tpu.memory_space<vmem>>, %arg8: memref<8x1xf32, #tpu.memory_space<vmem>>, %arg9: memref<16x27xbf16, #tpu.memory_space<vmem>>, %arg10: memref<16x1xf32, #tpu.memory_space<vmem>>, %arg11: memref<9x8x4xbf16, #tpu.memory_space<vmem>>, %arg12: memref<8x1xf32, #tpu.memory_space<vmem>>, %arg13: memref<9x8x8xbf16, #tpu.memory_space<vmem>>, %arg14: memref<8x1xf32, #tpu.memory_space<vmem>>, %arg15: memref<1x8x256xf32, #tpu.memory_space<vmem>>, %arg16: memref<8x290xbf16, #tpu.memory_space<vmem>>, %arg17: memref<27x256xbf16, #tpu.memory_space<vmem>>) attributes {dimension_semantics = [#tpu.dimension_semantics<parallel>], iteration_bounds = array<i64: 2>, scalar_prefetch = 0 : i64, scratch_operands = 2 : i64, tpu.core_type = #tpu.core_type<tc>, window_params = [{transform_indices = @transform_0, window_bounds = array<i64: 1, 4, 256>}, {transform_indices = @transform_1, window_bounds = array<i64: 1, 3, 256>}, {transform_indices = @transform_2, window_bounds = array<i64: 1, 8, 1>}, {transform_indices = @transform_3, window_bounds = array<i64: 1, 16, 1>}, {pipeline_mode = #tpu.pipeline_mode<synchronous>, transform_indices = @transform_4, window_bounds = array<i64: 1, 256>}, {pipeline_mode = #tpu.pipeline_mode<synchronous>, transform_indices = @transform_5, window_bounds = array<i64: 9, 256>}, {pipeline_mode = #tpu.pipeline_mode<synchronous>, transform_indices = @transform_6, window_bounds = array<i64: 8, 27>}, {pipeline_mode = #tpu.pipeline_mode<synchronous>, transform_indices = @transform_7, window_bounds = array<i64: 8, 1>}, {pipeline_mode = #tpu.pipeline_mode<synchronous>, transform_indices = @transform_8, window_bounds = array<i64: 16, 27>}, {pipeline_mode = #tpu.pipeline_mode<synchronous>, transform_indices = @transform_9, window_bounds = array<i64: 16, 1>}, {pipeline_mode = #tpu.pipeline_mode<synchronous>, transform_indices = @transform_10, window_bounds = array<i64: 9, 8, 4>}, {pipeline_mode = #tpu.pipeline_mode<synchronous>, transform_indices = @transform_11, window_bounds = array<i64: 8, 1>}, {pipeline_mode = #tpu.pipeline_mode<synchronous>, transform_indices = @transform_12, window_bounds = array<i64: 9, 8, 8>}, {pipeline_mode = #tpu.pipeline_mode<synchronous>, transform_indices = @transform_13, window_bounds = array<i64: 8, 1>}, {transform_indices = @transform_14, window_bounds = array<i64: 1, 8, 256>}]} {
    %c0 = arith.constant 0 : index
    %c0_0 = arith.constant 0 : index
    %c0_1 = arith.constant 0 : index
    %0 = vector.load %arg1[%c0, %c0_0, %c0_1] : memref<1x4x256xf32, #tpu.memory_space<vmem>>, vector<1x4x256xf32>
    %1 = vector.shape_cast %0 : vector<1x4x256xf32> to vector<4x256xf32>
    %c0_2 = arith.constant 0 : index
    %c0_3 = arith.constant 0 : index
    %2 = vector.load %arg5[%c0_2, %c0_3] : memref<1x256xf32, #tpu.memory_space<vmem>>, vector<1x256xf32>
    %cst = arith.constant 1.000000e+00 : f32
    %3 = vector.broadcast %cst : f32 to vector<1x256xf32>
    %4 = arith.subf %3, %2 : vector<1x256xf32>
    %cst_4 = arith.constant 0.000000e+00 : bf16
    %5 = vector.broadcast %cst_4 : bf16 to vector<8x17xbf16>
    %c0_5 = arith.constant 0 : index
    %c0_6 = arith.constant 0 : index
    %6 = vector.load %arg16[%c0_5, %c0_6] : memref<8x290xbf16, #tpu.memory_space<vmem>>, vector<8x17xbf16>
    tpu.vector_store %arg16[%c0_5, %c0_6], %5 {strides = array<i32>} : memref<8x290xbf16, #tpu.memory_space<vmem>>, vector<8x17xbf16>,
    %cst_7 = arith.constant 0.000000e+00 : bf16
    %7 = vector.broadcast %cst_7 : bf16 to vector<8x17xbf16>
    %c0_8 = arith.constant 0 : index
    %c273 = arith.constant 273 : index
    %8 = vector.load %arg16[%c0_8, %c273] : memref<8x290xbf16, #tpu.memory_space<vmem>>, vector<8x17xbf16>
    tpu.vector_store %arg16[%c0_8, %c273], %7 {strides = array<i32>} : memref<8x290xbf16, #tpu.memory_space<vmem>>, vector<8x17xbf16>,
    %c0_9 = arith.constant 0 : index
    %c0_10 = arith.constant 0 : index
    %c0_11 = arith.constant 0 : index
    %9 = vector.load %arg2[%c0_9, %c0_10, %c0_11] : memref<1x3x256xf32, #tpu.memory_space<vmem>>, vector<1x3x256xf32>
    %10 = vector.shape_cast %9 : vector<1x3x256xf32> to vector<3x256xf32>
    %11 = arith.truncf %10 : vector<3x256xf32> to vector<3x256xbf16>
    %c0_12 = arith.constant 0 : index
    %c17 = arith.constant 17 : index
    %12 = vector.load %arg16[%c0_12, %c17] : memref<8x290xbf16, #tpu.memory_space<vmem>>, vector<3x256xbf16>
    tpu.vector_store %arg16[%c0_12, %c17], %11 {strides = array<i32>} : memref<8x290xbf16, #tpu.memory_space<vmem>>, vector<3x256xbf16>,
    %c0_13 = arith.constant 0 : index
    %c0_14 = arith.constant 0 : index
    %13 = vector.load %arg16[%c0_13, %c0_14] : memref<8x290xbf16, #tpu.memory_space<vmem>>, vector<3x256xbf16>
    %c0_15 = arith.constant 0 : index
    %c0_16 = arith.constant 0 : index
    %14 = vector.load %arg6[%c0_15, %c0_16] : memref<9x256xbf16, #tpu.memory_space<vmem>>, vector<1x256xbf16>
    %15 = vector.broadcast %14 : vector<1x256xbf16> to vector<3x256xbf16>
    %16 = arith.mulf %13, %15 : vector<3x256xbf16>
    %c0_17 = arith.constant 0 : index
    %c0_18 = arith.constant 0 : index
    %17 = vector.load %arg17[%c0_17, %c0_18] : memref<27x256xbf16, #tpu.memory_space<vmem>>, vector<3x256xbf16>
    tpu.vector_store %arg17[%c0_17, %c0_18], %16 {strides = array<i32>} : memref<27x256xbf16, #tpu.memory_space<vmem>>, vector<3x256xbf16>,
    %c0_19 = arith.constant 0 : index
    %c1 = arith.constant 1 : index
    %18 = vector.load %arg16[%c0_19, %c1] : memref<8x290xbf16, #tpu.memory_space<vmem>>, vector<3x256xbf16>
    %c1_20 = arith.constant 1 : index
    %c0_21 = arith.constant 0 : index
    %19 = vector.load %arg6[%c1_20, %c0_21] : memref<9x256xbf16, #tpu.memory_space<vmem>>, vector<1x256xbf16>
    %20 = vector.broadcast %19 : vector<1x256xbf16> to vector<3x256xbf16>
    %21 = arith.mulf %18, %20 : vector<3x256xbf16>
    %c3 = arith.constant 3 : index
    %c0_22 = arith.constant 0 : index
    %22 = vector.load %arg17[%c3, %c0_22] : memref<27x256xbf16, #tpu.memory_space<vmem>>, vector<3x256xbf16>
    tpu.vector_store %arg17[%c3, %c0_22], %21 {strides = array<i32>} : memref<27x256xbf16, #tpu.memory_space<vmem>>, vector<3x256xbf16>,
    %c0_23 = arith.constant 0 : index
    %c2 = arith.constant 2 : index
    %23 = vector.load %arg16[%c0_23, %c2] : memref<8x290xbf16, #tpu.memory_space<vmem>>, vector<3x256xbf16>
    %c2_24 = arith.constant 2 : index
    %c0_25 = arith.constant 0 : index
    %24 = vector.load %arg6[%c2_24, %c0_25] : memref<9x256xbf16, #tpu.memory_space<vmem>>, vector<1x256xbf16>
    %25 = vector.broadcast %24 : vector<1x256xbf16> to vector<3x256xbf16>
    %26 = arith.mulf %23, %25 : vector<3x256xbf16>
    %c6 = arith.constant 6 : index
    %c0_26 = arith.constant 0 : index
    %27 = vector.load %arg17[%c6, %c0_26] : memref<27x256xbf16, #tpu.memory_space<vmem>>, vector<3x256xbf16>
    tpu.vector_store %arg17[%c6, %c0_26], %26 {strides = array<i32>} : memref<27x256xbf16, #tpu.memory_space<vmem>>, vector<3x256xbf16>,
    %c0_27 = arith.constant 0 : index
    %c16 = arith.constant 16 : index
    %28 = vector.load %arg16[%c0_27, %c16] : memref<8x290xbf16, #tpu.memory_space<vmem>>, vector<3x256xbf16>
    %c3_28 = arith.constant 3 : index
    %c0_29 = arith.constant 0 : index
    %29 = vector.load %arg6[%c3_28, %c0_29] : memref<9x256xbf16, #tpu.memory_space<vmem>>, vector<1x256xbf16>
    %30 = vector.broadcast %29 : vector<1x256xbf16> to vector<3x256xbf16>
    %31 = arith.mulf %28, %30 : vector<3x256xbf16>
    %c9 = arith.constant 9 : index
    %c0_30 = arith.constant 0 : index
    %32 = vector.load %arg17[%c9, %c0_30] : memref<27x256xbf16, #tpu.memory_space<vmem>>, vector<3x256xbf16>
    tpu.vector_store %arg17[%c9, %c0_30], %31 {strides = array<i32>} : memref<27x256xbf16, #tpu.memory_space<vmem>>, vector<3x256xbf16>,
    %c0_31 = arith.constant 0 : index
    %c17_32 = arith.constant 17 : index
    %33 = vector.load %arg16[%c0_31, %c17_32] : memref<8x290xbf16, #tpu.memory_space<vmem>>, vector<3x256xbf16>
    %c12 = arith.constant 12 : index
    %c0_33 = arith.constant 0 : index
    %34 = vector.load %arg17[%c12, %c0_33] : memref<27x256xbf16, #tpu.memory_space<vmem>>, vector<3x256xbf16>
    tpu.vector_store %arg17[%c12, %c0_33], %33 {strides = array<i32>} : memref<27x256xbf16, #tpu.memory_space<vmem>>, vector<3x256xbf16>,
    %c0_34 = arith.constant 0 : index
    %c18 = arith.constant 18 : index
    %35 = vector.load %arg16[%c0_34, %c18] : memref<8x290xbf16, #tpu.memory_space<vmem>>, vector<3x256xbf16>
    %c5 = arith.constant 5 : index
    %c0_35 = arith.constant 0 : index
    %36 = vector.load %arg6[%c5, %c0_35] : memref<9x256xbf16, #tpu.memory_space<vmem>>, vector<1x256xbf16>
    %37 = vector.broadcast %36 : vector<1x256xbf16> to vector<3x256xbf16>
    %38 = arith.mulf %35, %37 : vector<3x256xbf16>
    %c15 = arith.constant 15 : index
    %c0_36 = arith.constant 0 : index
    %39 = vector.load %arg17[%c15, %c0_36] : memref<27x256xbf16, #tpu.memory_space<vmem>>, vector<3x256xbf16>
    tpu.vector_store %arg17[%c15, %c0_36], %38 {strides = array<i32>} : memref<27x256xbf16, #tpu.memory_space<vmem>>, vector<3x256xbf16>,
    %c0_37 = arith.constant 0 : index
    %c32 = arith.constant 32 : index
    %40 = vector.load %arg16[%c0_37, %c32] : memref<8x290xbf16, #tpu.memory_space<vmem>>, vector<3x256xbf16>
    %c6_38 = arith.constant 6 : index
    %c0_39 = arith.constant 0 : index
    %41 = vector.load %arg6[%c6_38, %c0_39] : memref<9x256xbf16, #tpu.memory_space<vmem>>, vector<1x256xbf16>
    %42 = vector.broadcast %41 : vector<1x256xbf16> to vector<3x256xbf16>
    %43 = arith.mulf %40, %42 : vector<3x256xbf16>
    %c18_40 = arith.constant 18 : index
    %c0_41 = arith.constant 0 : index
    %44 = vector.load %arg17[%c18_40, %c0_41] : memref<27x256xbf16, #tpu.memory_space<vmem>>, vector<3x256xbf16>
    tpu.vector_store %arg17[%c18_40, %c0_41], %43 {strides = array<i32>} : memref<27x256xbf16, #tpu.memory_space<vmem>>, vector<3x256xbf16>,
    %c0_42 = arith.constant 0 : index
    %c33 = arith.constant 33 : index
    %45 = vector.load %arg16[%c0_42, %c33] : memref<8x290xbf16, #tpu.memory_space<vmem>>, vector<3x256xbf16>
    %c7 = arith.constant 7 : index
    %c0_43 = arith.constant 0 : index
    %46 = vector.load %arg6[%c7, %c0_43] : memref<9x256xbf16, #tpu.memory_space<vmem>>, vector<1x256xbf16>
    %47 = vector.broadcast %46 : vector<1x256xbf16> to vector<3x256xbf16>
    %48 = arith.mulf %45, %47 : vector<3x256xbf16>
    %c21 = arith.constant 21 : index
    %c0_44 = arith.constant 0 : index
    %49 = vector.load %arg17[%c21, %c0_44] : memref<27x256xbf16, #tpu.memory_space<vmem>>, vector<3x256xbf16>
    tpu.vector_store %arg17[%c21, %c0_44], %48 {strides = array<i32>} : memref<27x256xbf16, #tpu.memory_space<vmem>>, vector<3x256xbf16>,
    %c0_45 = arith.constant 0 : index
    %c34 = arith.constant 34 : index
    %50 = vector.load %arg16[%c0_45, %c34] : memref<8x290xbf16, #tpu.memory_space<vmem>>, vector<3x256xbf16>
    %c8 = arith.constant 8 : index
    %c0_46 = arith.constant 0 : index
    %51 = vector.load %arg6[%c8, %c0_46] : memref<9x256xbf16, #tpu.memory_space<vmem>>, vector<1x256xbf16>
    %52 = vector.broadcast %51 : vector<1x256xbf16> to vector<3x256xbf16>
    %53 = arith.mulf %50, %52 : vector<3x256xbf16>
    %c24 = arith.constant 24 : index
    %c0_47 = arith.constant 0 : index
    %54 = vector.load %arg17[%c24, %c0_47] : memref<27x256xbf16, #tpu.memory_space<vmem>>, vector<3x256xbf16>
    tpu.vector_store %arg17[%c24, %c0_47], %53 {strides = array<i32>} : memref<27x256xbf16, #tpu.memory_space<vmem>>, vector<3x256xbf16>,
    %c0_48 = arith.constant 0 : index
    %c0_49 = arith.constant 0 : index
    %55 = vector.load %arg7[%c0_48, %c0_49] : memref<8x27xbf16, #tpu.memory_space<vmem>>, vector<8x27xbf16>
    %c0_50 = arith.constant 0 : index
    %c0_51 = arith.constant 0 : index
    %56 = vector.load %arg17[%c0_50, %c0_51] : memref<27x256xbf16, #tpu.memory_space<vmem>>, vector<27x256xbf16>
    %cst_52 = arith.constant dense<0.000000e+00> : vector<8x256xf32>
    %57 = tpu.matmul %55, %56, %cst_52 {dimension_numbers = #tpu.dot_dimension_numbers<[1], [0], [0], [1], [0, 0, 1, 1], [], []>} : vector<8x27xbf16>, vector<27x256xbf16>, vector<8x256xf32> -> vector<8x256xf32>
    %c0_53 = arith.constant 0 : index
    %c0_54 = arith.constant 0 : index
    %58 = vector.load %arg8[%c0_53, %c0_54] : memref<8x1xf32, #tpu.memory_space<vmem>>, vector<8x1xf32>
    %59 = vector.broadcast %58 : vector<8x1xf32> to vector<8x256xf32>
    %60 = arith.addf %57, %59 : vector<8x256xf32>
    %61 = vector.extract_strided_slice %60 {offsets = [0, 0], sizes = [4, 256], strides = [1, 1]} : vector<8x256xf32> to vector<4x256xf32>
    %62 = vector.extract_strided_slice %60 {offsets = [4, 0], sizes = [4, 256], strides = [1, 1]} : vector<8x256xf32> to vector<4x256xf32>
    %c0_55 = arith.constant 0 : index
    %c0_56 = arith.constant 0 : index
    %c0_57 = arith.constant 0 : index
    %63 = vector.load %arg3[%c0_55, %c0_56, %c0_57] : memref<1x8x1xf32, #tpu.memory_space<vmem>>, vector<1x4x1xf32>
    %64 = vector.shape_cast %63 : vector<1x4x1xf32> to vector<4x1xf32>
    %c0_58 = arith.constant 0 : index
    %c4 = arith.constant 4 : index
    %c0_59 = arith.constant 0 : index
    %65 = vector.load %arg3[%c0_58, %c4, %c0_59] : memref<1x8x1xf32, #tpu.memory_space<vmem>>, vector<1x4x1xf32>
    %66 = vector.shape_cast %65 : vector<1x4x1xf32> to vector<4x1xf32>
    %67 = vector.broadcast %4 : vector<1x256xf32> to vector<4x256xf32>
    %68 = arith.mulf %67, %1 : vector<4x256xf32>
    %cst_60 = arith.constant dense<0.000000e+00> : vector<4xf32>
    %69 = vector.multi_reduction <add>, %68, %cst_60 [1] : vector<4x256xf32> to vector<4xf32>
    %70 = vector.shape_cast %69 : vector<4xf32> to vector<4x1xf32>
    %cst_61 = arith.constant 3.906250e-03 : f32
    %71 = vector.broadcast %cst_61 : f32 to vector<4x1xf32>
    %72 = arith.mulf %70, %71 : vector<4x1xf32>
    %73 = vector.broadcast %72 : vector<4x1xf32> to vector<4x256xf32>
    %74 = arith.subf %68, %73 : vector<4x256xf32>
    %75 = arith.mulf %74, %74 : vector<4x256xf32>
    %cst_62 = arith.constant dense<0.000000e+00> : vector<4xf32>
    %76 = vector.multi_reduction <add>, %75, %cst_62 [1] : vector<4x256xf32> to vector<4xf32>
    %77 = vector.shape_cast %76 : vector<4xf32> to vector<4x1xf32>
    %cst_63 = arith.constant 3.906250e-03 : f32
    %78 = vector.broadcast %cst_63 : f32 to vector<4x1xf32>
    %79 = arith.mulf %77, %78 : vector<4x1xf32>
    %cst_64 = arith.constant 9.99999974E-6 : f32
    %80 = vector.broadcast %cst_64 : f32 to vector<4x1xf32>
    %81 = arith.addf %79, %80 : vector<4x1xf32>
    %82 = math.rsqrt %81 : vector<4x1xf32>
    %83 = vector.broadcast %82 : vector<4x1xf32> to vector<4x256xf32>
    %84 = arith.mulf %74, %83 : vector<4x256xf32>
    %85 = vector.broadcast %64 : vector<4x1xf32> to vector<4x256xf32>
    %86 = arith.mulf %85, %84 : vector<4x256xf32>
    %87 = vector.broadcast %66 : vector<4x1xf32> to vector<4x256xf32>
    %88 = arith.addf %86, %87 : vector<4x256xf32>
    %89 = arith.mulf %88, %61 : vector<4x256xf32>
    %90 = arith.addf %89, %62 : vector<4x256xf32>
    %91 = vector.broadcast %2 : vector<1x256xf32> to vector<4x256xf32>
    %92 = arith.mulf %91, %1 : vector<4x256xf32>
    %93 = vector.broadcast %4 : vector<1x256xf32> to vector<4x256xf32>
    %94 = arith.mulf %93, %90 : vector<4x256xf32>
    %95 = arith.addf %92, %94 : vector<4x256xf32>
    %cst_65 = arith.constant 2.000000e-01 : f32
    %96 = vector.broadcast %cst_65 : f32 to vector<4x256xf32>
    %97 = arith.mulf %96, %95 : vector<4x256xf32>
    %98 = arith.maximumf %95, %97 : vector<4x256xf32>
    %99 = arith.truncf %98 : vector<4x256xf32> to vector<4x256xbf16>
    %c0_66 = arith.constant 0 : index
    %c17_67 = arith.constant 17 : index
    %100 = vector.load %arg16[%c0_66, %c17_67] : memref<8x290xbf16, #tpu.memory_space<vmem>>, vector<4x256xbf16>
    tpu.vector_store %arg16[%c0_66, %c17_67], %99 {strides = array<i32>} : memref<8x290xbf16, #tpu.memory_space<vmem>>, vector<4x256xbf16>,
    %c0_68 = arith.constant 0 : index
    %c0_69 = arith.constant 0 : index
    %101 = vector.load %arg16[%c0_68, %c0_69] : memref<8x290xbf16, #tpu.memory_space<vmem>>, vector<4x256xbf16>
    %c0_70 = arith.constant 0 : index
    %c0_71 = arith.constant 0 : index
    %102 = vector.load %arg6[%c0_70, %c0_71] : memref<9x256xbf16, #tpu.memory_space<vmem>>, vector<1x256xbf16>
    %103 = vector.broadcast %102 : vector<1x256xbf16> to vector<4x256xbf16>
    %104 = arith.mulf %101, %103 : vector<4x256xbf16>
    %c0_72 = arith.constant 0 : index
    %c0_73 = arith.constant 0 : index
    %c0_74 = arith.constant 0 : index
    %105 = vector.load %arg11[%c0_72, %c0_73, %c0_74] : memref<9x8x4xbf16, #tpu.memory_space<vmem>>, vector<1x8x4xbf16>
    %106 = vector.shape_cast %105 : vector<1x8x4xbf16> to vector<8x4xbf16>
    %cst_75 = arith.constant dense<0.000000e+00> : vector<8x256xf32>
    %107 = tpu.matmul %106, %104, %cst_75 {dimension_numbers = #tpu.dot_dimension_numbers<[1], [0], [0], [1], [0, 0, 1, 1], [], []>} : vector<8x4xbf16>, vector<4x256xbf16>, vector<8x256xf32> -> vector<8x256xf32>
    %c0_76 = arith.constant 0 : index
    %c1_77 = arith.constant 1 : index
    %108 = vector.load %arg16[%c0_76, %c1_77] : memref<8x290xbf16, #tpu.memory_space<vmem>>, vector<4x256xbf16>
    %c1_78 = arith.constant 1 : index
    %c0_79 = arith.constant 0 : index
    %109 = vector.load %arg6[%c1_78, %c0_79] : memref<9x256xbf16, #tpu.memory_space<vmem>>, vector<1x256xbf16>
    %110 = vector.broadcast %109 : vector<1x256xbf16> to vector<4x256xbf16>
    %111 = arith.mulf %108, %110 : vector<4x256xbf16>
    %c1_80 = arith.constant 1 : index
    %c0_81 = arith.constant 0 : index
    %c0_82 = arith.constant 0 : index
    %112 = vector.load %arg11[%c1_80, %c0_81, %c0_82] : memref<9x8x4xbf16, #tpu.memory_space<vmem>>, vector<1x8x4xbf16>
    %113 = vector.shape_cast %112 : vector<1x8x4xbf16> to vector<8x4xbf16>
    %cst_83 = arith.constant dense<0.000000e+00> : vector<8x256xf32>
    %114 = tpu.matmul %113, %111, %cst_83 {dimension_numbers = #tpu.dot_dimension_numbers<[1], [0], [0], [1], [0, 0, 1, 1], [], []>} : vector<8x4xbf16>, vector<4x256xbf16>, vector<8x256xf32> -> vector<8x256xf32>
    %115 = arith.addf %107, %114 : vector<8x256xf32>
    %c0_84 = arith.constant 0 : index
    %c2_85 = arith.constant 2 : index
    %116 = vector.load %arg16[%c0_84, %c2_85] : memref<8x290xbf16, #tpu.memory_space<vmem>>, vector<4x256xbf16>
    %c2_86 = arith.constant 2 : index
    %c0_87 = arith.constant 0 : index
    %117 = vector.load %arg6[%c2_86, %c0_87] : memref<9x256xbf16, #tpu.memory_space<vmem>>, vector<1x256xbf16>
    %118 = vector.broadcast %117 : vector<1x256xbf16> to vector<4x256xbf16>
    %119 = arith.mulf %116, %118 : vector<4x256xbf16>
    %c2_88 = arith.constant 2 : index
    %c0_89 = arith.constant 0 : index
    %c0_90 = arith.constant 0 : index
    %120 = vector.load %arg11[%c2_88, %c0_89, %c0_90] : memref<9x8x4xbf16, #tpu.memory_space<vmem>>, vector<1x8x4xbf16>
    %121 = vector.shape_cast %120 : vector<1x8x4xbf16> to vector<8x4xbf16>
    %cst_91 = arith.constant dense<0.000000e+00> : vector<8x256xf32>
    %122 = tpu.matmul %121, %119, %cst_91 {dimension_numbers = #tpu.dot_dimension_numbers<[1], [0], [0], [1], [0, 0, 1, 1], [], []>} : vector<8x4xbf16>, vector<4x256xbf16>, vector<8x256xf32> -> vector<8x256xf32>
    %123 = arith.addf %115, %122 : vector<8x256xf32>
    %c0_92 = arith.constant 0 : index
    %c16_93 = arith.constant 16 : index
    %124 = vector.load %arg16[%c0_92, %c16_93] : memref<8x290xbf16, #tpu.memory_space<vmem>>, vector<4x256xbf16>
    %c3_94 = arith.constant 3 : index
    %c0_95 = arith.constant 0 : index
    %125 = vector.load %arg6[%c3_94, %c0_95] : memref<9x256xbf16, #tpu.memory_space<vmem>>, vector<1x256xbf16>
    %126 = vector.broadcast %125 : vector<1x256xbf16> to vector<4x256xbf16>
    %127 = arith.mulf %124, %126 : vector<4x256xbf16>
    %c3_96 = arith.constant 3 : index
    %c0_97 = arith.constant 0 : index
    %c0_98 = arith.constant 0 : index
    %128 = vector.load %arg11[%c3_96, %c0_97, %c0_98] : memref<9x8x4xbf16, #tpu.memory_space<vmem>>, vector<1x8x4xbf16>
    %129 = vector.shape_cast %128 : vector<1x8x4xbf16> to vector<8x4xbf16>
    %cst_99 = arith.constant dense<0.000000e+00> : vector<8x256xf32>
    %130 = tpu.matmul %129, %127, %cst_99 {dimension_numbers = #tpu.dot_dimension_numbers<[1], [0], [0], [1], [0, 0, 1, 1], [], []>} : vector<8x4xbf16>, vector<4x256xbf16>, vector<8x256xf32> -> vector<8x256xf32>
    %131 = arith.addf %123, %130 : vector<8x256xf32>
    %c0_100 = arith.constant 0 : index
    %c17_101 = arith.constant 17 : index
    %132 = vector.load %arg16[%c0_100, %c17_101] : memref<8x290xbf16, #tpu.memory_space<vmem>>, vector<4x256xbf16>
    %c4_102 = arith.constant 4 : index
    %c0_103 = arith.constant 0 : index
    %c0_104 = arith.constant 0 : index
    %133 = vector.load %arg11[%c4_102, %c0_103, %c0_104] : memref<9x8x4xbf16, #tpu.memory_space<vmem>>, vector<1x8x4xbf16>
    %134 = vector.shape_cast %133 : vector<1x8x4xbf16> to vector<8x4xbf16>
    %cst_105 = arith.constant dense<0.000000e+00> : vector<8x256xf32>
    %135 = tpu.matmul %134, %132, %cst_105 {dimension_numbers = #tpu.dot_dimension_numbers<[1], [0], [0], [1], [0, 0, 1, 1], [], []>} : vector<8x4xbf16>, vector<4x256xbf16>, vector<8x256xf32> -> vector<8x256xf32>
    %136 = arith.addf %131, %135 : vector<8x256xf32>
    %c0_106 = arith.constant 0 : index
    %c18_107 = arith.constant 18 : index
    %137 = vector.load %arg16[%c0_106, %c18_107] : memref<8x290xbf16, #tpu.memory_space<vmem>>, vector<4x256xbf16>
    %c5_108 = arith.constant 5 : index
    %c0_109 = arith.constant 0 : index
    %138 = vector.load %arg6[%c5_108, %c0_109] : memref<9x256xbf16, #tpu.memory_space<vmem>>, vector<1x256xbf16>
    %139 = vector.broadcast %138 : vector<1x256xbf16> to vector<4x256xbf16>
    %140 = arith.mulf %137, %139 : vector<4x256xbf16>
    %c5_110 = arith.constant 5 : index
    %c0_111 = arith.constant 0 : index
    %c0_112 = arith.constant 0 : index
    %141 = vector.load %arg11[%c5_110, %c0_111, %c0_112] : memref<9x8x4xbf16, #tpu.memory_space<vmem>>, vector<1x8x4xbf16>
    %142 = vector.shape_cast %141 : vector<1x8x4xbf16> to vector<8x4xbf16>
    %cst_113 = arith.constant dense<0.000000e+00> : vector<8x256xf32>
    %143 = tpu.matmul %142, %140, %cst_113 {dimension_numbers = #tpu.dot_dimension_numbers<[1], [0], [0], [1], [0, 0, 1, 1], [], []>} : vector<8x4xbf16>, vector<4x256xbf16>, vector<8x256xf32> -> vector<8x256xf32>
    %144 = arith.addf %136, %143 : vector<8x256xf32>
    %c0_114 = arith.constant 0 : index
    %c32_115 = arith.constant 32 : index
    %145 = vector.load %arg16[%c0_114, %c32_115] : memref<8x290xbf16, #tpu.memory_space<vmem>>, vector<4x256xbf16>
    %c6_116 = arith.constant 6 : index
    %c0_117 = arith.constant 0 : index
    %146 = vector.load %arg6[%c6_116, %c0_117] : memref<9x256xbf16, #tpu.memory_space<vmem>>, vector<1x256xbf16>
    %147 = vector.broadcast %146 : vector<1x256xbf16> to vector<4x256xbf16>
    %148 = arith.mulf %145, %147 : vector<4x256xbf16>
    %c6_118 = arith.constant 6 : index
    %c0_119 = arith.constant 0 : index
    %c0_120 = arith.constant 0 : index
    %149 = vector.load %arg11[%c6_118, %c0_119, %c0_120] : memref<9x8x4xbf16, #tpu.memory_space<vmem>>, vector<1x8x4xbf16>
    %150 = vector.shape_cast %149 : vector<1x8x4xbf16> to vector<8x4xbf16>
    %cst_121 = arith.constant dense<0.000000e+00> : vector<8x256xf32>
    %151 = tpu.matmul %150, %148, %cst_121 {dimension_numbers = #tpu.dot_dimension_numbers<[1], [0], [0], [1], [0, 0, 1, 1], [], []>} : vector<8x4xbf16>, vector<4x256xbf16>, vector<8x256xf32> -> vector<8x256xf32>
    %152 = arith.addf %144, %151 : vector<8x256xf32>
    %c0_122 = arith.constant 0 : index
    %c33_123 = arith.constant 33 : index
    %153 = vector.load %arg16[%c0_122, %c33_123] : memref<8x290xbf16, #tpu.memory_space<vmem>>, vector<4x256xbf16>
    %c7_124 = arith.constant 7 : index
    %c0_125 = arith.constant 0 : index
    %154 = vector.load %arg6[%c7_124, %c0_125] : memref<9x256xbf16, #tpu.memory_space<vmem>>, vector<1x256xbf16>
    %155 = vector.broadcast %154 : vector<1x256xbf16> to vector<4x256xbf16>
    %156 = arith.mulf %153, %155 : vector<4x256xbf16>
    %c7_126 = arith.constant 7 : index
    %c0_127 = arith.constant 0 : index
    %c0_128 = arith.constant 0 : index
    %157 = vector.load %arg11[%c7_126, %c0_127, %c0_128] : memref<9x8x4xbf16, #tpu.memory_space<vmem>>, vector<1x8x4xbf16>
    %158 = vector.shape_cast %157 : vector<1x8x4xbf16> to vector<8x4xbf16>
    %cst_129 = arith.constant dense<0.000000e+00> : vector<8x256xf32>
    %159 = tpu.matmul %158, %156, %cst_129 {dimension_numbers = #tpu.dot_dimension_numbers<[1], [0], [0], [1], [0, 0, 1, 1], [], []>} : vector<8x4xbf16>, vector<4x256xbf16>, vector<8x256xf32> -> vector<8x256xf32>
    %160 = arith.addf %152, %159 : vector<8x256xf32>
    %c0_130 = arith.constant 0 : index
    %c34_131 = arith.constant 34 : index
    %161 = vector.load %arg16[%c0_130, %c34_131] : memref<8x290xbf16, #tpu.memory_space<vmem>>, vector<4x256xbf16>
    %c8_132 = arith.constant 8 : index
    %c0_133 = arith.constant 0 : index
    %162 = vector.load %arg6[%c8_132, %c0_133] : memref<9x256xbf16, #tpu.memory_space<vmem>>, vector<1x256xbf16>
    %163 = vector.broadcast %162 : vector<1x256xbf16> to vector<4x256xbf16>
    %164 = arith.mulf %161, %163 : vector<4x256xbf16>
    %c8_134 = arith.constant 8 : index
    %c0_135 = arith.constant 0 : index
    %c0_136 = arith.constant 0 : index
    %165 = vector.load %arg11[%c8_134, %c0_135, %c0_136] : memref<9x8x4xbf16, #tpu.memory_space<vmem>>, vector<1x8x4xbf16>
    %166 = vector.shape_cast %165 : vector<1x8x4xbf16> to vector<8x4xbf16>
    %cst_137 = arith.constant dense<0.000000e+00> : vector<8x256xf32>
    %167 = tpu.matmul %166, %164, %cst_137 {dimension_numbers = #tpu.dot_dimension_numbers<[1], [0], [0], [1], [0, 0, 1, 1], [], []>} : vector<8x4xbf16>, vector<4x256xbf16>, vector<8x256xf32> -> vector<8x256xf32>
    %168 = arith.addf %160, %167 : vector<8x256xf32>
    %c0_138 = arith.constant 0 : index
    %c0_139 = arith.constant 0 : index
    %169 = vector.load %arg12[%c0_138, %c0_139] : memref<8x1xf32, #tpu.memory_space<vmem>>, vector<8x1xf32>
    %170 = vector.broadcast %169 : vector<8x1xf32> to vector<8x256xf32>
    %171 = arith.addf %168, %170 : vector<8x256xf32>
    %c0_140 = arith.constant 0 : index
    %c0_141 = arith.constant 0 : index
    %172 = vector.load %arg9[%c0_140, %c0_141] : memref<16x27xbf16, #tpu.memory_space<vmem>>, vector<16x27xbf16>
    %c0_142 = arith.constant 0 : index
    %c0_143 = arith.constant 0 : index
    %173 = vector.load %arg17[%c0_142, %c0_143] : memref<27x256xbf16, #tpu.memory_space<vmem>>, vector<27x256xbf16>
    %cst_144 = arith.constant dense<0.000000e+00> : vector<16x256xf32>
    %174 = tpu.matmul %172, %173, %cst_144 {dimension_numbers = #tpu.dot_dimension_numbers<[1], [0], [0], [1], [0, 0, 1, 1], [], []>} : vector<16x27xbf16>, vector<27x256xbf16>, vector<16x256xf32> -> vector<16x256xf32>
    %c0_145 = arith.constant 0 : index
    %c0_146 = arith.constant 0 : index
    %175 = vector.load %arg10[%c0_145, %c0_146] : memref<16x1xf32, #tpu.memory_space<vmem>>, vector<16x1xf32>
    %176 = vector.broadcast %175 : vector<16x1xf32> to vector<16x256xf32>
    %177 = arith.addf %174, %176 : vector<16x256xf32>
    %178 = vector.extract_strided_slice %177 {offsets = [0, 0], sizes = [8, 256], strides = [1, 1]} : vector<16x256xf32> to vector<8x256xf32>
    %179 = vector.extract_strided_slice %177 {offsets = [8, 0], sizes = [8, 256], strides = [1, 1]} : vector<16x256xf32> to vector<8x256xf32>
    %c0_147 = arith.constant 0 : index
    %c0_148 = arith.constant 0 : index
    %c0_149 = arith.constant 0 : index
    %180 = vector.load %arg4[%c0_147, %c0_148, %c0_149] : memref<1x16x1xf32, #tpu.memory_space<vmem>>, vector<1x8x1xf32>
    %181 = vector.shape_cast %180 : vector<1x8x1xf32> to vector<8x1xf32>
    %c0_150 = arith.constant 0 : index
    %c8_151 = arith.constant 8 : index
    %c0_152 = arith.constant 0 : index
    %182 = vector.load %arg4[%c0_150, %c8_151, %c0_152] : memref<1x16x1xf32, #tpu.memory_space<vmem>>, vector<1x8x1xf32>
    %183 = vector.shape_cast %182 : vector<1x8x1xf32> to vector<8x1xf32>
    %184 = vector.broadcast %4 : vector<1x256xf32> to vector<8x256xf32>
    %185 = arith.mulf %184, %171 : vector<8x256xf32>
    %cst_153 = arith.constant dense<0.000000e+00> : vector<8xf32>
    %186 = vector.multi_reduction <add>, %185, %cst_153 [1] : vector<8x256xf32> to vector<8xf32>
    %187 = vector.shape_cast %186 : vector<8xf32> to vector<8x1xf32>
    %cst_154 = arith.constant 3.906250e-03 : f32
    %188 = vector.broadcast %cst_154 : f32 to vector<8x1xf32>
    %189 = arith.mulf %187, %188 : vector<8x1xf32>
    %190 = vector.broadcast %189 : vector<8x1xf32> to vector<8x256xf32>
    %191 = arith.subf %185, %190 : vector<8x256xf32>
    %192 = arith.mulf %191, %191 : vector<8x256xf32>
    %cst_155 = arith.constant dense<0.000000e+00> : vector<8xf32>
    %193 = vector.multi_reduction <add>, %192, %cst_155 [1] : vector<8x256xf32> to vector<8xf32>
    %194 = vector.shape_cast %193 : vector<8xf32> to vector<8x1xf32>
    %cst_156 = arith.constant 3.906250e-03 : f32
    %195 = vector.broadcast %cst_156 : f32 to vector<8x1xf32>
    %196 = arith.mulf %194, %195 : vector<8x1xf32>
    %cst_157 = arith.constant 9.99999974E-6 : f32
    %197 = vector.broadcast %cst_157 : f32 to vector<8x1xf32>
    %198 = arith.addf %196, %197 : vector<8x1xf32>
    %199 = math.rsqrt %198 : vector<8x1xf32>
    %200 = vector.broadcast %199 : vector<8x1xf32> to vector<8x256xf32>
    %201 = arith.mulf %191, %200 : vector<8x256xf32>
    %202 = vector.broadcast %181 : vector<8x1xf32> to vector<8x256xf32>
    %203 = arith.mulf %202, %201 : vector<8x256xf32>
    %204 = vector.broadcast %183 : vector<8x1xf32> to vector<8x256xf32>
    %205 = arith.addf %203, %204 : vector<8x256xf32>
    %206 = arith.mulf %205, %178 : vector<8x256xf32>
    %207 = arith.addf %206, %179 : vector<8x256xf32>
    %208 = vector.broadcast %2 : vector<1x256xf32> to vector<8x256xf32>
    %209 = arith.mulf %208, %171 : vector<8x256xf32>
    %210 = vector.broadcast %4 : vector<1x256xf32> to vector<8x256xf32>
    %211 = arith.mulf %210, %207 : vector<8x256xf32>
    %212 = arith.addf %209, %211 : vector<8x256xf32>
    %cst_158 = arith.constant 2.000000e-01 : f32
    %213 = vector.broadcast %cst_158 : f32 to vector<8x256xf32>
    %214 = arith.mulf %213, %212 : vector<8x256xf32>
    %215 = arith.maximumf %212, %214 : vector<8x256xf32>
    %216 = arith.truncf %215 : vector<8x256xf32> to vector<8x256xbf16>
    %c0_159 = arith.constant 0 : index
    %c17_160 = arith.constant 17 : index
    %217 = vector.load %arg16[%c0_159, %c17_160] : memref<8x290xbf16, #tpu.memory_space<vmem>>, vector<8x256xbf16>
    tpu.vector_store %arg16[%c0_159, %c17_160], %216 {strides = array<i32>} : memref<8x290xbf16, #tpu.memory_space<vmem>>, vector<8x256xbf16>,
    %c0_161 = arith.constant 0 : index
    %c0_162 = arith.constant 0 : index
    %218 = vector.load %arg16[%c0_161, %c0_162] : memref<8x290xbf16, #tpu.memory_space<vmem>>, vector<8x256xbf16>
    %c0_163 = arith.constant 0 : index
    %c0_164 = arith.constant 0 : index
    %219 = vector.load %arg6[%c0_163, %c0_164] : memref<9x256xbf16, #tpu.memory_space<vmem>>, vector<1x256xbf16>
    %220 = vector.broadcast %219 : vector<1x256xbf16> to vector<8x256xbf16>
    %221 = arith.mulf %218, %220 : vector<8x256xbf16>
    %c0_165 = arith.constant 0 : index
    %c0_166 = arith.constant 0 : index
    %c0_167 = arith.constant 0 : index
    %222 = vector.load %arg13[%c0_165, %c0_166, %c0_167] : memref<9x8x8xbf16, #tpu.memory_space<vmem>>, vector<1x8x8xbf16>
    %223 = vector.shape_cast %222 : vector<1x8x8xbf16> to vector<8x8xbf16>
    %cst_168 = arith.constant dense<0.000000e+00> : vector<8x256xf32>
    %224 = tpu.matmul %223, %221, %cst_168 {dimension_numbers = #tpu.dot_dimension_numbers<[1], [0], [0], [1], [0, 0, 1, 1], [], []>} : vector<8x8xbf16>, vector<8x256xbf16>, vector<8x256xf32> -> vector<8x256xf32>
    %c0_169 = arith.constant 0 : index
    %c1_170 = arith.constant 1 : index
    %225 = vector.load %arg16[%c0_169, %c1_170] : memref<8x290xbf16, #tpu.memory_space<vmem>>, vector<8x256xbf16>
    %c1_171 = arith.constant 1 : index
    %c0_172 = arith.constant 0 : index
    %226 = vector.load %arg6[%c1_171, %c0_172] : memref<9x256xbf16, #tpu.memory_space<vmem>>, vector<1x256xbf16>
    %227 = vector.broadcast %226 : vector<1x256xbf16> to vector<8x256xbf16>
    %228 = arith.mulf %225, %227 : vector<8x256xbf16>
    %c1_173 = arith.constant 1 : index
    %c0_174 = arith.constant 0 : index
    %c0_175 = arith.constant 0 : index
    %229 = vector.load %arg13[%c1_173, %c0_174, %c0_175] : memref<9x8x8xbf16, #tpu.memory_space<vmem>>, vector<1x8x8xbf16>
    %230 = vector.shape_cast %229 : vector<1x8x8xbf16> to vector<8x8xbf16>
    %cst_176 = arith.constant dense<0.000000e+00> : vector<8x256xf32>
    %231 = tpu.matmul %230, %228, %cst_176 {dimension_numbers = #tpu.dot_dimension_numbers<[1], [0], [0], [1], [0, 0, 1, 1], [], []>} : vector<8x8xbf16>, vector<8x256xbf16>, vector<8x256xf32> -> vector<8x256xf32>
    %232 = arith.addf %224, %231 : vector<8x256xf32>
    %c0_177 = arith.constant 0 : index
    %c2_178 = arith.constant 2 : index
    %233 = vector.load %arg16[%c0_177, %c2_178] : memref<8x290xbf16, #tpu.memory_space<vmem>>, vector<8x256xbf16>
    %c2_179 = arith.constant 2 : index
    %c0_180 = arith.constant 0 : index
    %234 = vector.load %arg6[%c2_179, %c0_180] : memref<9x256xbf16, #tpu.memory_space<vmem>>, vector<1x256xbf16>
    %235 = vector.broadcast %234 : vector<1x256xbf16> to vector<8x256xbf16>
    %236 = arith.mulf %233, %235 : vector<8x256xbf16>
    %c2_181 = arith.constant 2 : index
    %c0_182 = arith.constant 0 : index
    %c0_183 = arith.constant 0 : index
    %237 = vector.load %arg13[%c2_181, %c0_182, %c0_183] : memref<9x8x8xbf16, #tpu.memory_space<vmem>>, vector<1x8x8xbf16>
    %238 = vector.shape_cast %237 : vector<1x8x8xbf16> to vector<8x8xbf16>
    %cst_184 = arith.constant dense<0.000000e+00> : vector<8x256xf32>
    %239 = tpu.matmul %238, %236, %cst_184 {dimension_numbers = #tpu.dot_dimension_numbers<[1], [0], [0], [1], [0, 0, 1, 1], [], []>} : vector<8x8xbf16>, vector<8x256xbf16>, vector<8x256xf32> -> vector<8x256xf32>
    %240 = arith.addf %232, %239 : vector<8x256xf32>
    %c0_185 = arith.constant 0 : index
    %c16_186 = arith.constant 16 : index
    %241 = vector.load %arg16[%c0_185, %c16_186] : memref<8x290xbf16, #tpu.memory_space<vmem>>, vector<8x256xbf16>
    %c3_187 = arith.constant 3 : index
    %c0_188 = arith.constant 0 : index
    %242 = vector.load %arg6[%c3_187, %c0_188] : memref<9x256xbf16, #tpu.memory_space<vmem>>, vector<1x256xbf16>
    %243 = vector.broadcast %242 : vector<1x256xbf16> to vector<8x256xbf16>
    %244 = arith.mulf %241, %243 : vector<8x256xbf16>
    %c3_189 = arith.constant 3 : index
    %c0_190 = arith.constant 0 : index
    %c0_191 = arith.constant 0 : index
    %245 = vector.load %arg13[%c3_189, %c0_190, %c0_191] : memref<9x8x8xbf16, #tpu.memory_space<vmem>>, vector<1x8x8xbf16>
    %246 = vector.shape_cast %245 : vector<1x8x8xbf16> to vector<8x8xbf16>
    %cst_192 = arith.constant dense<0.000000e+00> : vector<8x256xf32>
    %247 = tpu.matmul %246, %244, %cst_192 {dimension_numbers = #tpu.dot_dimension_numbers<[1], [0], [0], [1], [0, 0, 1, 1], [], []>} : vector<8x8xbf16>, vector<8x256xbf16>, vector<8x256xf32> -> vector<8x256xf32>
    %248 = arith.addf %240, %247 : vector<8x256xf32>
    %c0_193 = arith.constant 0 : index
    %c17_194 = arith.constant 17 : index
    %249 = vector.load %arg16[%c0_193, %c17_194] : memref<8x290xbf16, #tpu.memory_space<vmem>>, vector<8x256xbf16>
    %c4_195 = arith.constant 4 : index
    %c0_196 = arith.constant 0 : index
    %c0_197 = arith.constant 0 : index
    %250 = vector.load %arg13[%c4_195, %c0_196, %c0_197] : memref<9x8x8xbf16, #tpu.memory_space<vmem>>, vector<1x8x8xbf16>
    %251 = vector.shape_cast %250 : vector<1x8x8xbf16> to vector<8x8xbf16>
    %cst_198 = arith.constant dense<0.000000e+00> : vector<8x256xf32>
    %252 = tpu.matmul %251, %249, %cst_198 {dimension_numbers = #tpu.dot_dimension_numbers<[1], [0], [0], [1], [0, 0, 1, 1], [], []>} : vector<8x8xbf16>, vector<8x256xbf16>, vector<8x256xf32> -> vector<8x256xf32>
    %253 = arith.addf %248, %252 : vector<8x256xf32>
    %c0_199 = arith.constant 0 : index
    %c18_200 = arith.constant 18 : index
    %254 = vector.load %arg16[%c0_199, %c18_200] : memref<8x290xbf16, #tpu.memory_space<vmem>>, vector<8x256xbf16>
    %c5_201 = arith.constant 5 : index
    %c0_202 = arith.constant 0 : index
    %255 = vector.load %arg6[%c5_201, %c0_202] : memref<9x256xbf16, #tpu.memory_space<vmem>>, vector<1x256xbf16>
    %256 = vector.broadcast %255 : vector<1x256xbf16> to vector<8x256xbf16>
    %257 = arith.mulf %254, %256 : vector<8x256xbf16>
    %c5_203 = arith.constant 5 : index
    %c0_204 = arith.constant 0 : index
    %c0_205 = arith.constant 0 : index
    %258 = vector.load %arg13[%c5_203, %c0_204, %c0_205] : memref<9x8x8xbf16, #tpu.memory_space<vmem>>, vector<1x8x8xbf16>
    %259 = vector.shape_cast %258 : vector<1x8x8xbf16> to vector<8x8xbf16>
    %cst_206 = arith.constant dense<0.000000e+00> : vector<8x256xf32>
    %260 = tpu.matmul %259, %257, %cst_206 {dimension_numbers = #tpu.dot_dimension_numbers<[1], [0], [0], [1], [0, 0, 1, 1], [], []>} : vector<8x8xbf16>, vector<8x256xbf16>, vector<8x256xf32> -> vector<8x256xf32>
    %261 = arith.addf %253, %260 : vector<8x256xf32>
    %c0_207 = arith.constant 0 : index
    %c32_208 = arith.constant 32 : index
    %262 = vector.load %arg16[%c0_207, %c32_208] : memref<8x290xbf16, #tpu.memory_space<vmem>>, vector<8x256xbf16>
    %c6_209 = arith.constant 6 : index
    %c0_210 = arith.constant 0 : index
    %263 = vector.load %arg6[%c6_209, %c0_210] : memref<9x256xbf16, #tpu.memory_space<vmem>>, vector<1x256xbf16>
    %264 = vector.broadcast %263 : vector<1x256xbf16> to vector<8x256xbf16>
    %265 = arith.mulf %262, %264 : vector<8x256xbf16>
    %c6_211 = arith.constant 6 : index
    %c0_212 = arith.constant 0 : index
    %c0_213 = arith.constant 0 : index
    %266 = vector.load %arg13[%c6_211, %c0_212, %c0_213] : memref<9x8x8xbf16, #tpu.memory_space<vmem>>, vector<1x8x8xbf16>
    %267 = vector.shape_cast %266 : vector<1x8x8xbf16> to vector<8x8xbf16>
    %cst_214 = arith.constant dense<0.000000e+00> : vector<8x256xf32>
    %268 = tpu.matmul %267, %265, %cst_214 {dimension_numbers = #tpu.dot_dimension_numbers<[1], [0], [0], [1], [0, 0, 1, 1], [], []>} : vector<8x8xbf16>, vector<8x256xbf16>, vector<8x256xf32> -> vector<8x256xf32>
    %269 = arith.addf %261, %268 : vector<8x256xf32>
    %c0_215 = arith.constant 0 : index
    %c33_216 = arith.constant 33 : index
    %270 = vector.load %arg16[%c0_215, %c33_216] : memref<8x290xbf16, #tpu.memory_space<vmem>>, vector<8x256xbf16>
    %c7_217 = arith.constant 7 : index
    %c0_218 = arith.constant 0 : index
    %271 = vector.load %arg6[%c7_217, %c0_218] : memref<9x256xbf16, #tpu.memory_space<vmem>>, vector<1x256xbf16>
    %272 = vector.broadcast %271 : vector<1x256xbf16> to vector<8x256xbf16>
    %273 = arith.mulf %270, %272 : vector<8x256xbf16>
    %c7_219 = arith.constant 7 : index
    %c0_220 = arith.constant 0 : index
    %c0_221 = arith.constant 0 : index
    %274 = vector.load %arg13[%c7_219, %c0_220, %c0_221] : memref<9x8x8xbf16, #tpu.memory_space<vmem>>, vector<1x8x8xbf16>
    %275 = vector.shape_cast %274 : vector<1x8x8xbf16> to vector<8x8xbf16>
    %cst_222 = arith.constant dense<0.000000e+00> : vector<8x256xf32>
    %276 = tpu.matmul %275, %273, %cst_222 {dimension_numbers = #tpu.dot_dimension_numbers<[1], [0], [0], [1], [0, 0, 1, 1], [], []>} : vector<8x8xbf16>, vector<8x256xbf16>, vector<8x256xf32> -> vector<8x256xf32>
    %277 = arith.addf %269, %276 : vector<8x256xf32>
    %c0_223 = arith.constant 0 : index
    %c34_224 = arith.constant 34 : index
    %278 = vector.load %arg16[%c0_223, %c34_224] : memref<8x290xbf16, #tpu.memory_space<vmem>>, vector<8x256xbf16>
    %c8_225 = arith.constant 8 : index
    %c0_226 = arith.constant 0 : index
    %279 = vector.load %arg6[%c8_225, %c0_226] : memref<9x256xbf16, #tpu.memory_space<vmem>>, vector<1x256xbf16>
    %280 = vector.broadcast %279 : vector<1x256xbf16> to vector<8x256xbf16>
    %281 = arith.mulf %278, %280 : vector<8x256xbf16>
    %c8_227 = arith.constant 8 : index
    %c0_228 = arith.constant 0 : index
    %c0_229 = arith.constant 0 : index
    %282 = vector.load %arg13[%c8_227, %c0_228, %c0_229] : memref<9x8x8xbf16, #tpu.memory_space<vmem>>, vector<1x8x8xbf16>
    %283 = vector.shape_cast %282 : vector<1x8x8xbf16> to vector<8x8xbf16>
    %cst_230 = arith.constant dense<0.000000e+00> : vector<8x256xf32>
    %284 = tpu.matmul %283, %281, %cst_230 {dimension_numbers = #tpu.dot_dimension_numbers<[1], [0], [0], [1], [0, 0, 1, 1], [], []>} : vector<8x8xbf16>, vector<8x256xbf16>, vector<8x256xf32> -> vector<8x256xf32>
    %285 = arith.addf %277, %284 : vector<8x256xf32>
    %c0_231 = arith.constant 0 : index
    %c0_232 = arith.constant 0 : index
    %286 = vector.load %arg14[%c0_231, %c0_232] : memref<8x1xf32, #tpu.memory_space<vmem>>, vector<8x1xf32>
    %287 = vector.broadcast %286 : vector<8x1xf32> to vector<8x256xf32>
    %288 = arith.addf %285, %287 : vector<8x256xf32>
    %c0_233 = arith.constant 0 : index
    %c0_234 = arith.constant 0 : index
    %c0_235 = arith.constant 0 : index
    %289 = vector.load %arg15[%c0_233, %c0_234, %c0_235] : memref<1x8x256xf32, #tpu.memory_space<vmem>>, vector<1x8x256xf32>
    %290 = vector.shape_cast %289 : vector<1x8x256xf32> to vector<8x256xf32>
    %291 = vector.shape_cast %288 : vector<8x256xf32> to vector<1x8x256xf32>
    tpu.vector_store %arg15[%c0_233, %c0_234, %c0_235], %291 {strides = array<i32>} : memref<1x8x256xf32, #tpu.memory_space<vmem>>, vector<1x8x256xf32>,
    return
  }
  func.func @transform_0(%arg0: i32) -> (i32, i32, i32) {
    %c0_i32 = arith.constant 0 : i32
    %c0_i32_0 = arith.constant 0 : i32
    %c0_i32_1 = arith.constant 0 : i32
    return %arg0, %c0_i32, %c0_i32_0 : i32, i32, i32
  }
  func.func @transform_1(%arg0: i32) -> (i32, i32, i32) {
    %c0_i32 = arith.constant 0 : i32
    %c0_i32_0 = arith.constant 0 : i32
    %c0_i32_1 = arith.constant 0 : i32
    return %arg0, %c0_i32, %c0_i32_0 : i32, i32, i32
  }
  func.func @transform_2(%arg0: i32) -> (i32, i32, i32) {
    %c0_i32 = arith.constant 0 : i32
    %c0_i32_0 = arith.constant 0 : i32
    %c0_i32_1 = arith.constant 0 : i32
    return %arg0, %c0_i32, %c0_i32_0 : i32, i32, i32
  }
  func.func @transform_3(%arg0: i32) -> (i32, i32, i32) {
    %c0_i32 = arith.constant 0 : i32
    %c0_i32_0 = arith.constant 0 : i32
    %c0_i32_1 = arith.constant 0 : i32
    return %arg0, %c0_i32, %c0_i32_0 : i32, i32, i32
  }
  func.func @transform_4(%arg0: i32) -> (i32, i32) {
    %c0_i32 = arith.constant 0 : i32
    %c0_i32_0 = arith.constant 0 : i32
    %c0_i32_1 = arith.constant 0 : i32
    return %c0_i32, %c0_i32_0 : i32, i32
  }
  func.func @transform_5(%arg0: i32) -> (i32, i32) {
    %c0_i32 = arith.constant 0 : i32
    %c0_i32_0 = arith.constant 0 : i32
    %c0_i32_1 = arith.constant 0 : i32
    return %c0_i32, %c0_i32_0 : i32, i32
  }
  func.func @transform_6(%arg0: i32) -> (i32, i32) {
    %c0_i32 = arith.constant 0 : i32
    %c0_i32_0 = arith.constant 0 : i32
    %c0_i32_1 = arith.constant 0 : i32
    return %c0_i32, %c0_i32_0 : i32, i32
  }
  func.func @transform_7(%arg0: i32) -> (i32, i32) {
    %c0_i32 = arith.constant 0 : i32
    %c0_i32_0 = arith.constant 0 : i32
    %c0_i32_1 = arith.constant 0 : i32
    return %c0_i32, %c0_i32_0 : i32, i32
  }
  func.func @transform_8(%arg0: i32) -> (i32, i32) {
    %c0_i32 = arith.constant 0 : i32
    %c0_i32_0 = arith.constant 0 : i32
    %c0_i32_1 = arith.constant 0 : i32
    return %c0_i32, %c0_i32_0 : i32, i32
  }
  func.func @transform_9(%arg0: i32) -> (i32, i32) {
    %c0_i32 = arith.constant 0 : i32
    %c0_i32_0 = arith.constant 0 : i32
    %c0_i32_1 = arith.constant 0 : i32
    return %c0_i32, %c0_i32_0 : i32, i32
  }
  func.func @transform_10(%arg0: i32) -> (i32, i32, i32) {
    %c0_i32 = arith.constant 0 : i32
    %c0_i32_0 = arith.constant 0 : i32
    %c0_i32_1 = arith.constant 0 : i32
    %c0_i32_2 = arith.constant 0 : i32
    return %c0_i32, %c0_i32_0, %c0_i32_1 : i32, i32, i32
  }
  func.func @transform_11(%arg0: i32) -> (i32, i32) {
    %c0_i32 = arith.constant 0 : i32
    %c0_i32_0 = arith.constant 0 : i32
    %c0_i32_1 = arith.constant 0 : i32
    return %c0_i32, %c0_i32_0 : i32, i32
  }
  func.func @transform_12(%arg0: i32) -> (i32, i32, i32) {
    %c0_i32 = arith.constant 0 : i32
    %c0_i32_0 = arith.constant 0 : i32
    %c0_i32_1 = arith.constant 0 : i32
    %c0_i32_2 = arith.constant 0 : i32
    return %c0_i32, %c0_i32_0, %c0_i32_1 : i32, i32, i32
  }
  func.func @transform_13(%arg0: i32) -> (i32, i32) {
    %c0_i32 = arith.constant 0 : i32
    %c0_i32_0 = arith.constant 0 : i32
    %c0_i32_1 = arith.constant 0 : i32
    return %c0_i32, %c0_i32_0 : i32, i32
  }
  func.func @transform_14(%arg0: i32) -> (i32, i32, i32) {
    %c0_i32 = arith.constant 0 : i32
    %c0_i32_0 = arith.constant 0 : i32
    %c0_i32_1 = arith.constant 0 : i32
    return %arg0, %c0_i32, %c0_i32_0 : i32, i32, i32
  }
}

</mosaic_0001>

<llo_original>
// kernel: tpu_custom_call.1
$region0: #{tpu_custom_call.1}
  #allocation0 [shape = 'u32[]', space=smem, size = 0x4, offset = 0x4, fixed_abs, tag = 'smem constant byte address 0x4 - core index']
  #allocation1 [shape = 'u32[144,128]{1,0:T(1,128)}', space=vmem, size = 0x12000, scoped, tag = 'internal scratch']
  #allocation2 [shape = 'bf16[8,290]{1,0:T(8,128)(2,1)}', space=vmem, size = 0x1800, scoped, tag = 'scratch operand']
  #allocation3 [shape = 'bf16[27,256]{1,0:T(8,128)(2,1)}', space=vmem, size = 0x4000, scoped, tag = 'scratch operand']
  %s0 = inlined_call_operand.vmem [shape: f32[2,4,256], index: 0, kind: input, shape index: {}]
  %s1 = inlined_call_operand.vmem [shape: f32[2,3,256], index: 1, kind: input, shape index: {}]
  %s2 = inlined_call_operand.vmem [shape: f32[2,8,1], index: 2, kind: input, shape index: {}]
  %s3 = inlined_call_operand.vmem [shape: f32[2,16,1], index: 3, kind: input, shape index: {}]
  %s4 = inlined_call_operand.vmem [shape: f32[1,256], index: 4, kind: input, shape index: {}]
  %s5 = inlined_call_operand.vmem [shape: bf16[9,256], index: 5, kind: input, shape index: {}]
  %s6 = inlined_call_operand.vmem [shape: bf16[8,27], index: 6, kind: input, shape index: {}]
  %s7 = inlined_call_operand.vmem [shape: f32[8,1], index: 7, kind: input, shape index: {}]
  %s8 = inlined_call_operand.vmem [shape: bf16[16,27], index: 8, kind: input, shape index: {}]
  %s9 = inlined_call_operand.vmem [shape: f32[16,1], index: 9, kind: input, shape index: {}]
  %s10 = inlined_call_operand.vmem [shape: bf16[9,8,4], index: 10, kind: input, shape index: {}]
  %s11 = inlined_call_operand.vmem [shape: f32[8,1], index: 11, kind: input, shape index: {}]
  %s12 = inlined_call_operand.vmem [shape: bf16[9,8,8], index: 12, kind: input, shape index: {}]
  %s13 = inlined_call_operand.vmem [shape: f32[8,1], index: 13, kind: input, shape index: {}]
  %s14 = inlined_call_operand.hbm [shape: f32[2,8,256], index: 14, kind: output, shape index: {}]
  %s15 = sld [smem:[#allocation0]]
  $region89: #{tpu_custom_call.1} parent=0
    _
  %s17 = ssub.s32 1, %s15
  %s18 = scalar_select 0, %s17, %s15
  $region1: #{tpu_custom_call.1} parent=0
    #allocation4 [shape = 'u8[16384]{0}', space=vmem, size = 0x4000, scoped, tag = 'output window, operand 0']
    #allocation5 [shape = 's32[2]{0}', space=sflag, size = 0x8, scoped, tag = 'scoped memory for tpu_custom_call.1']
    %19 = vsyncpa [#allocation5], 0
    %s20 = scalar_lea.sflag [#allocation5], 1
    %21 = vsyncpa %s20, 0
    loop: start=0, step=1, limit=4
    $region2: #{tpu_custom_call.1} parent=1 // loop_pre_header
      _
    $region3: #{tpu_custom_call.1} parent=1 // loop_header
      %s23 = sphi 0, %s27
      %p24 = scmp.ge.s32.totalorder %s23, 4
      %s33 = sphi 0, %s35
      %s36 = sphi 0, %s33
      %s37 = sphi 0, %s36
      %s53 = sphi 0, %s37
      %s59 = sphi 0, %s61
      %s62 = sphi 0, %s59
      %s63 = sphi 0, %s62
      %s79 = sphi 0, %s63
      %s85 = sphi 0, %s87
      %s88 = sphi 0, %s85
      %s89 = sphi 0, %s88
      %s105 = sphi 0, %s89
      %s111 = sphi 0, %s113
      %s114 = sphi 0, %s111
      %s115 = sphi 0, %s114
      %s131 = sphi 0, %s115
      %s135 = sphi 0, %s135
      %s137 = sphi 0, %s135
      %s138 = sphi 0, %s137
      %s152 = sphi 0, %s138
      %s156 = sphi 0, %s156
      %s158 = sphi 0, %s156
      %s159 = sphi 0, %s158
      %s173 = sphi 0, %s159
      %s177 = sphi 0, %s177
      %s179 = sphi 0, %s177
      %s180 = sphi 0, %s179
      %s194 = sphi 0, %s180
      %s198 = sphi 0, %s198
      %s200 = sphi 0, %s198
      %s201 = sphi 0, %s200
      %s215 = sphi 0, %s201
      %s219 = sphi 0, %s219
      %s221 = sphi 0, %s219
      %s222 = sphi 0, %s221
      %s236 = sphi 0, %s222
      %s240 = sphi 0, %s240
      %s242 = sphi 0, %s240
      %s243 = sphi 0, %s242
      %s257 = sphi 0, %s243
      %s261 = sphi 0, %s261
      %s263 = sphi 0, %s261
      %s264 = sphi 0, %s263
      %s278 = sphi 0, %s264
      %s282 = sphi 0, %s282
      %s284 = sphi 0, %s282
      %s285 = sphi 0, %s284
      %s299 = sphi 0, %s285
      %s303 = sphi 0, %s303
      %s305 = sphi 0, %s303
      %s306 = sphi 0, %s305
      %s320 = sphi 0, %s306
      %s324 = sphi 0, %s324
      %s326 = sphi 0, %s324
      %s327 = sphi 0, %s326
      %s341 = sphi 0, %s327
      %s347 = sphi 0, %s349
      %s350 = sphi 0, %s347
      %s351 = sphi 0, %s350
      %s367 = sphi 0, %s351
    $region4: #{tpu_custom_call.1} parent=1 // loop_header_branch
      %26 = sbr.rel (%p24) target = $region8
    $region5: #{tpu_custom_call.1} parent=1 // loop_body
      %s28 = ssub.s32 %s23, 1
      %s29 = ssub.s32 %s23, 2
      %s30 = sadd.s32 %s23, 1
      %s31 = ssub.s32 %s23, %s30
      %p32 = scmp.eq.s32.totalorder %s31, 0
      %s34 = sadd.s32 %s33, 1
      %s35 = scalar_select %p32, %s33, %s34
      %p38 = pneg %p32
      %p39 = scmp.eq.s32.totalorder %s23, 1
      %p40 = por %p38, %p39
      %p41 = scmp.ne.s32.totalorder %s33, %s36
      %p42 = scmp.eq.s32.totalorder %s23, 0
      %p43 = por %p41, %p42
      %p44 = scmp.ne.s32.totalorder %s33, %s36
      %p45 = scmp.eq.s32.totalorder %s28, 1
      %p46 = por %p44, %p45
      %p47 = scmp.ne.s32.totalorder %s36, %s37
      %p48 = scmp.eq.s32.totalorder %s28, 0
      %p49 = por %p47, %p48
      %p50 = scmp.ne.s32.totalorder %s36, %s37
      %p51 = scmp.eq.s32.totalorder %s29, 1
      %p52 = por %p50, %p51
      %p54 = scmp.ne.s32.totalorder %s37, %s53
      %p55 = scmp.eq.s32.totalorder %s29, 0
      %p56 = por %p54, %p55
      %s57 = ssub.s32 %s23, %s30
      %p58 = scmp.eq.s32.totalorder %s57, 0
      %s60 = sadd.s32 %s59, 1
      %s61 = scalar_select %p58, %s59, %s60
      %p64 = pneg %p58
      %p65 = scmp.eq.s32.totalorder %s23, 1
      %p66 = por %p64, %p65
      %p67 = scmp.ne.s32.totalorder %s59, %s62
      %p68 = scmp.eq.s32.totalorder %s23, 0
      %p69 = por %p67, %p68
      %p70 = scmp.ne.s32.totalorder %s59, %s62
      %p71 = scmp.eq.s32.totalorder %s28, 1
      %p72 = por %p70, %p71
      %p73 = scmp.ne.s32.totalorder %s62, %s63
      %p74 = scmp.eq.s32.totalorder %s28, 0
      %p75 = por %p73, %p74
      %p76 = scmp.ne.s32.totalorder %s62, %s63
      %p77 = scmp.eq.s32.totalorder %s29, 1
      %p78 = por %p76, %p77
      %p80 = scmp.ne.s32.totalorder %s63, %s79
      %p81 = scmp.eq.s32.totalorder %s29, 0
      %p82 = por %p80, %p81
      %s83 = ssub.s32 %s23, %s30
      %p84 = scmp.eq.s32.totalorder %s83, 0
      %s86 = sadd.s32 %s85, 1
      %s87 = scalar_select %p84, %s85, %s86
      %p90 = pneg %p84
      %p91 = scmp.eq.s32.totalorder %s23, 1
      %p92 = por %p90, %p91
      %p93 = scmp.ne.s32.totalorder %s85, %s88
      %p94 = scmp.eq.s32.totalorder %s23, 0
      %p95 = por %p93, %p94
      %p96 = scmp.ne.s32.totalorder %s85, %s88
      %p97 = scmp.eq.s32.totalorder %s28, 1
      %p98 = por %p96, %p97
      %p99 = scmp.ne.s32.totalorder %s88, %s89
      %p100 = scmp.eq.s32.totalorder %s28, 0
      %p101 = por %p99, %p100
      %p102 = scmp.ne.s32.totalorder %s88, %s89
      %p103 = scmp.eq.s32.totalorder %s29, 1
      %p104 = por %p102, %p103
      %p106 = scmp.ne.s32.totalorder %s89, %s105
      %p107 = scmp.eq.s32.totalorder %s29, 0
      %p108 = por %p106, %p107
      %s109 = ssub.s32 %s23, %s30
      %p110 = scmp.eq.s32.totalorder %s109, 0
      %s112 = sadd.s32 %s111, 1
      %s113 = scalar_select %p110, %s111, %s112
      %p116 = pneg %p110
      %p117 = scmp.eq.s32.totalorder %s23, 1
      %p118 = por %p116, %p117
      %p119 = scmp.ne.s32.totalorder %s111, %s114
      %p120 = scmp.eq.s32.totalorder %s23, 0
      %p121 = por %p119, %p120
      %p122 = scmp.ne.s32.totalorder %s111, %s114
      %p123 = scmp.eq.s32.totalorder %s28, 1
      %p124 = por %p122, %p123
      %p125 = scmp.ne.s32.totalorder %s114, %s115
      %p126 = scmp.eq.s32.totalorder %s28, 0
      %p127 = por %p125, %p126
      %p128 = scmp.ne.s32.totalorder %s114, %s115
      %p129 = scmp.eq.s32.totalorder %s29, 1
      %p130 = por %p128, %p129
      %p132 = scmp.ne.s32.totalorder %s115, %s131
      %p133 = scmp.eq.s32.totalorder %s29, 0
      %p134 = por %p132, %p133
      %s136 = sadd.s32 %s135, 1
      %p139 = scmp.eq.s32.totalorder %s23, 1
      %p140 = scmp.ne.s32.totalorder %s135, %s137
      %p141 = scmp.eq.s32.totalorder %s23, 0
      %p142 = por %p140, %p141
      %p143 = scmp.ne.s32.totalorder %s135, %s137
      %p144 = scmp.eq.s32.totalorder %s28, 1
      %p145 = por %p143, %p144
      %p146 = scmp.ne.s32.totalorder %s137, %s138
      %p147 = scmp.eq.s32.totalorder %s28, 0
      %p148 = por %p146, %p147
      %p149 = scmp.ne.s32.totalorder %s137, %s138
      %p150 = scmp.eq.s32.totalorder %s29, 1
      %p151 = por %p149, %p150
      %p153 = scmp.ne.s32.totalorder %s138, %s152
      %p154 = scmp.eq.s32.totalorder %s29, 0
      %p155 = por %p153, %p154
      %s157 = sadd.s32 %s156, 1
      %p160 = scmp.eq.s32.totalorder %s23, 1
      %p161 = scmp.ne.s32.totalorder %s156, %s158
      %p162 = scmp.eq.s32.totalorder %s23, 0
      %p163 = por %p161, %p162
      %p164 = scmp.ne.s32.totalorder %s156, %s158
      %p165 = scmp.eq.s32.totalorder %s28, 1
      %p166 = por %p164, %p165
      %p167 = scmp.ne.s32.totalorder %s158, %s159
      %p168 = scmp.eq.s32.totalorder %s28, 0
      %p169 = por %p167, %p168
      %p170 = scmp.ne.s32.totalorder %s158, %s159
      %p171 = scmp.eq.s32.totalorder %s29, 1
      %p172 = por %p170, %p171
      %p174 = scmp.ne.s32.totalorder %s159, %s173
      %p175 = scmp.eq.s32.totalorder %s29, 0
      %p176 = por %p174, %p175
      %s178 = sadd.s32 %s177, 1
      %p181 = scmp.eq.s32.totalorder %s23, 1
      %p182 = scmp.ne.s32.totalorder %s177, %s179
      %p183 = scmp.eq.s32.totalorder %s23, 0
      %p184 = por %p182, %p183
      %p185 = scmp.ne.s32.totalorder %s177, %s179
      %p186 = scmp.eq.s32.totalorder %s28, 1
      %p187 = por %p185, %p186
      %p188 = scmp.ne.s32.totalorder %s179, %s180
      %p189 = scmp.eq.s32.totalorder %s28, 0
      %p190 = por %p188, %p189
      %p191 = scmp.ne.s32.totalorder %s179, %s180
      %p192 = scmp.eq.s32.totalorder %s29, 1
      %p193 = por %p191, %p192
      %p195 = scmp.ne.s32.totalorder %s180, %s194
      %p196 = scmp.eq.s32.totalorder %s29, 0
      %p197 = por %p195, %p196
      %s199 = sadd.s32 %s198, 1
      %p202 = scmp.eq.s32.totalorder %s23, 1
      %p203 = scmp.ne.s32.totalorder %s198, %s200
      %p204 = scmp.eq.s32.totalorder %s23, 0
      %p205 = por %p203, %p204
      %p206 = scmp.ne.s32.totalorder %s198, %s200
      %p207 = scmp.eq.s32.totalorder %s28, 1
      %p208 = por %p206, %p207
      %p209 = scmp.ne.s32.totalorder %s200, %s201
      %p210 = scmp.eq.s32.totalorder %s28, 0
      %p211 = por %p209, %p210
      %p212 = scmp.ne.s32.totalorder %s200, %s201
      %p213 = scmp.eq.s32.totalorder %s29, 1
      %p214 = por %p212, %p213
      %p216 = scmp.ne.s32.totalorder %s201, %s215
      %p217 = scmp.eq.s32.totalorder %s29, 0
      %p218 = por %p216, %p217
      %s220 = sadd.s32 %s219, 1
      %p223 = scmp.eq.s32.totalorder %s23, 1
      %p224 = scmp.ne.s32.totalorder %s219, %s221
      %p225 = scmp.eq.s32.totalorder %s23, 0
      %p226 = por %p224, %p225
      %p227 = scmp.ne.s32.totalorder %s219, %s221
      %p228 = scmp.eq.s32.totalorder %s28, 1
      %p229 = por %p227, %p228
      %p230 = scmp.ne.s32.totalorder %s221, %s222
      %p231 = scmp.eq.s32.totalorder %s28, 0
      %p232 = por %p230, %p231
      %p233 = scmp.ne.s32.totalorder %s221, %s222
      %p234 = scmp.eq.s32.totalorder %s29, 1
      %p235 = por %p233, %p234
      %p237 = scmp.ne.s32.totalorder %s222, %s236
      %p238 = scmp.eq.s32.totalorder %s29, 0
      %p239 = por %p237, %p238
      %s241 = sadd.s32 %s240, 1
      %p244 = scmp.eq.s32.totalorder %s23, 1
      %p245 = scmp.ne.s32.totalorder %s240, %s242
      %p246 = scmp.eq.s32.totalorder %s23, 0
      %p247 = por %p245, %p246
      %p248 = scmp.ne.s32.totalorder %s240, %s242
      %p249 = scmp.eq.s32.totalorder %s28, 1
      %p250 = por %p248, %p249
      %p251 = scmp.ne.s32.totalorder %s242, %s243
      %p252 = scmp.eq.s32.totalorder %s28, 0
      %p253 = por %p251, %p252
      %p254 = scmp.ne.s32.totalorder %s242, %s243
      %p255 = scmp.eq.s32.totalorder %s29, 1
      %p256 = por %p254, %p255
      %p258 = scmp.ne.s32.totalorder %s243, %s257
      %p259 = scmp.eq.s32.totalorder %s29, 0
      %p260 = por %p258, %p259
      %s262 = sadd.s32 %s261, 1
      %p265 = scmp.eq.s32.totalorder %s23, 1
      %p266 = scmp.ne.s32.totalorder %s261, %s263
      %p267 = scmp.eq.s32.totalorder %s23, 0
      %p268 = por %p266, %p267
      %p269 = scmp.ne.s32.totalorder %s261, %s263
      %p270 = scmp.eq.s32.totalorder %s28, 1
      %p271 = por %p269, %p270
      %p272 = scmp.ne.s32.totalorder %s263, %s264
      %p273 = scmp.eq.s32.totalorder %s28, 0
      %p274 = por %p272, %p273
      %p275 = scmp.ne.s32.totalorder %s263, %s264
      %p276 = scmp.eq.s32.totalorder %s29, 1
      %p277 = por %p275, %p276
      %p279 = scmp.ne.s32.totalorder %s264, %s278
      %p280 = scmp.eq.s32.totalorder %s29, 0
      %p281 = por %p279, %p280
      %s283 = sadd.s32 %s282, 1
      %p286 = scmp.eq.s32.totalorder %s23, 1
      %p287 = scmp.ne.s32.totalorder %s282, %s284
      %p288 = scmp.eq.s32.totalorder %s23, 0
      %p289 = por %p287, %p288
      %p290 = scmp.ne.s32.totalorder %s282, %s284
      %p291 = scmp.eq.s32.totalorder %s28, 1
      %p292 = por %p290, %p291
      %p293 = scmp.ne.s32.totalorder %s284, %s285
      %p294 = scmp.eq.s32.totalorder %s28, 0
      %p295 = por %p293, %p294
      %p296 = scmp.ne.s32.totalorder %s284, %s285
      %p297 = scmp.eq.s32.totalorder %s29, 1
      %p298 = por %p296, %p297
      %p300 = scmp.ne.s32.totalorder %s285, %s299
      %p301 = scmp.eq.s32.totalorder %s29, 0
      %p302 = por %p300, %p301
      %s304 = sadd.s32 %s303, 1
      %p307 = scmp.eq.s32.totalorder %s23, 1
      %p308 = scmp.ne.s32.totalorder %s303, %s305
      %p309 = scmp.eq.s32.totalorder %s23, 0
      %p310 = por %p308, %p309
      %p311 = scmp.ne.s32.totalorder %s303, %s305
      %p312 = scmp.eq.s32.totalorder %s28, 1
      %p313 = por %p311, %p312
      %p314 = scmp.ne.s32.totalorder %s305, %s306
      %p315 = scmp.eq.s32.totalorder %s28, 0
      %p316 = por %p314, %p315
      %p317 = scmp.ne.s32.totalorder %s305, %s306
      %p318 = scmp.eq.s32.totalorder %s29, 1
      %p319 = por %p317, %p318
      %p321 = scmp.ne.s32.totalorder %s306, %s320
      %p322 = scmp.eq.s32.totalorder %s29, 0
      %p323 = por %p321, %p322
      %s325 = sadd.s32 %s324, 1
      %p328 = scmp.eq.s32.totalorder %s23, 1
      %p329 = scmp.ne.s32.totalorder %s324, %s326
      %p330 = scmp.eq.s32.totalorder %s23, 0
      %p331 = por %p329, %p330
      %p332 = scmp.ne.s32.totalorder %s324, %s326
      %p333 = scmp.eq.s32.totalorder %s28, 1
      %p334 = por %p332, %p333
      %p335 = scmp.ne.s32.totalorder %s326, %s327
      %p336 = scmp.eq.s32.totalorder %s28, 0
      %p337 = por %p335, %p336
      %p338 = scmp.ne.s32.totalorder %s326, %s327
      %p339 = scmp.eq.s32.totalorder %s29, 1
      %p340 = por %p338, %p339
      %p342 = scmp.ne.s32.totalorder %s327, %s341
      %p343 = scmp.eq.s32.totalorder %s29, 0
      %p344 = por %p342, %p343
      %s345 = ssub.s32 %s23, %s30
      %p346 = scmp.eq.s32.totalorder %s345, 0
      %s348 = sadd.s32 %s347, 1
      %s349 = scalar_select %p346, %s347, %s348
      %p352 = pneg %p346
      %p353 = scmp.eq.s32.totalorder %s23, 1
      %p354 = por %p352, %p353
      %p355 = scmp.ne.s32.totalorder %s347, %s350
      %p356 = scmp.eq.s32.totalorder %s23, 0
      %p357 = por %p355, %p356
      %p358 = scmp.ne.s32.totalorder %s347, %s350
      %p359 = scmp.eq.s32.totalorder %s28, 1
      %p360 = por %p358, %p359
      %p361 = scmp.ne.s32.totalorder %s350, %s351
      %p362 = scmp.eq.s32.totalorder %s28, 0
      %p363 = por %p361, %p362
      %p364 = scmp.ne.s32.totalorder %s350, %s351
      %p365 = scmp.eq.s32.totalorder %s29, 1
      %p366 = por %p364, %p365
      %p368 = scmp.ne.s32.totalorder %s351, %s367
      %p369 = scmp.eq.s32.totalorder %s29, 0
      %p370 = por %p368, %p369
      %p371 = scmp.le.s32.totalorder 1, %s23
      %p372 = scmp.lt.s32.totalorder %s23, 3
      %p373 = pnand %p371, %p372
      %p374 = pneg %p373
      // Predicated region
      $region9: #{tpu_custom_call.1} parent=5 // pred_check
        _
      $region10: #{tpu_custom_call.1} parent=5 // pred_check_branch
        %376 = sbr.rel (%p373) target = $region12
      $region11: #{tpu_custom_call.1} parent=5 // pred_region
        %s377 = ssub.s32 %s23, 1
        // Predicated region
        $region13: #{tpu_custom_call.1} parent=11 // pred_check
          %p378 = pneg %p148
        $region14: #{tpu_custom_call.1} parent=11 // pred_check_branch
          %380 = sbr.rel (%p378) target = $region16
        $region15: #{tpu_custom_call.1} parent=11 // pred_region
          _
        $region16: #{tpu_custom_call.1} parent=11 // pred_fallthru
          _
        // Predicated region
        $region17: #{tpu_custom_call.1} parent=11 // pred_check
          %p381 = pneg %p169
        $region18: #{tpu_custom_call.1} parent=11 // pred_check_branch
          %383 = sbr.rel (%p381) target = $region20
        $region19: #{tpu_custom_call.1} parent=11 // pred_region
          _
        $region20: #{tpu_custom_call.1} parent=11 // pred_fallthru
          _
        // Predicated region
        $region21: #{tpu_custom_call.1} parent=11 // pred_check
          %p384 = pneg %p190
        $region22: #{tpu_custom_call.1} parent=11 // pred_check_branch
          %386 = sbr.rel (%p384) target = $region24
        $region23: #{tpu_custom_call.1} parent=11 // pred_region
          _
        $region24: #{tpu_custom_call.1} parent=11 // pred_fallthru
          _
        // Predicated region
        $region25: #{tpu_custom_call.1} parent=11 // pred_check
          %p387 = pneg %p211
        $region26: #{tpu_custom_call.1} parent=11 // pred_check_branch
          %389 = sbr.rel (%p387) target = $region28
        $region27: #{tpu_custom_call.1} parent=11 // pred_region
          _
        $region28: #{tpu_custom_call.1} parent=11 // pred_fallthru
          _
        // Predicated region
        $region29: #{tpu_custom_call.1} parent=11 // pred_check
          %p390 = pneg %p232
        $region30: #{tpu_custom_call.1} parent=11 // pred_check_branch
          %392 = sbr.rel (%p390) target = $region32
        $region31: #{tpu_custom_call.1} parent=11 // pred_region
          _
        $region32: #{tpu_custom_call.1} parent=11 // pred_fallthru
          _
        // Predicated region
        $region33: #{tpu_custom_call.1} parent=11 // pred_check
          %p393 = pneg %p253
        $region34: #{tpu_custom_call.1} parent=11 // pred_check_branch
          %395 = sbr.rel (%p393) target = $region36
        $region35: #{tpu_custom_call.1} parent=11 // pred_region
          _
        $region36: #{tpu_custom_call.1} parent=11 // pred_fallthru
          _
        // Predicated region
        $region37: #{tpu_custom_call.1} parent=11 // pred_check
          %p396 = pneg %p274
        $region38: #{tpu_custom_call.1} parent=11 // pred_check_branch
          %398 = sbr.rel (%p396) target = $region40
        $region39: #{tpu_custom_call.1} parent=11 // pred_region
          _
        $region40: #{tpu_custom_call.1} parent=11 // pred_fallthru
          _
        // Predicated region
        $region41: #{tpu_custom_call.1} parent=11 // pred_check
          %p399 = pneg %p295
        $region42: #{tpu_custom_call.1} parent=11 // pred_check_branch
          %401 = sbr.rel (%p399) target = $region44
        $region43: #{tpu_custom_call.1} parent=11 // pred_region
          _
        $region44: #{tpu_custom_call.1} parent=11 // pred_fallthru
          _
        // Predicated region
        $region45: #{tpu_custom_call.1} parent=11 // pred_check
          %p402 = pneg %p316
        $region46: #{tpu_custom_call.1} parent=11 // pred_check_branch
          %404 = sbr.rel (%p402) target = $region48
        $region47: #{tpu_custom_call.1} parent=11 // pred_region
          _
        $region48: #{tpu_custom_call.1} parent=11 // pred_fallthru
          _
        // Predicated region
        $region49: #{tpu_custom_call.1} parent=11 // pred_check
          %p405 = pneg %p337
        $region50: #{tpu_custom_call.1} parent=11 // pred_check_branch
          %407 = sbr.rel (%p405) target = $region52
        $region51: #{tpu_custom_call.1} parent=11 // pred_region
          _
        $region52: #{tpu_custom_call.1} parent=11 // pred_fallthru
          _
      $region12: #{tpu_custom_call.1} parent=5 // pred_fallthru
        _
      %p408 = scmp.lt.s32.totalorder %s23, 2
      // Predicated region
      $region53: #{tpu_custom_call.1} parent=5 // pred_check
        %p409 = pneg %p408
      $region54: #{tpu_custom_call.1} parent=5 // pred_check_branch
        %411 = sbr.rel (%p409) target = $region56
      $region55: #{tpu_custom_call.1} parent=5 // pred_region
        // Predicated region
        $region57: #{tpu_custom_call.1} parent=55 // pred_check
          %p412 = pneg %p43
        $region58: #{tpu_custom_call.1} parent=55 // pred_check_branch
          %414 = sbr.rel (%p412) target = $region60
        $region59: #{tpu_custom_call.1} parent=55 // pred_region
          %p415 = scmp.lt.s32.totalorder %s23, 1
          %s416 = scalar_select %p415, %s23, 1
          %s417 = smul.addr %s416, 2
          %s418 = smul.addr %s417, 4
          %s419 = scalar_lea.vmem %s0, %s418
        $region60: #{tpu_custom_call.1} parent=55 // pred_fallthru
          _
        // Predicated region
        $region61: #{tpu_custom_call.1} parent=55 // pred_check
          %p420 = pneg %p69
        $region62: #{tpu_custom_call.1} parent=55 // pred_check_branch
          %422 = sbr.rel (%p420) target = $region64
        $region63: #{tpu_custom_call.1} parent=55 // pred_region
          %p423 = scmp.lt.s32.totalorder %s23, 1
          %s424 = scalar_select %p423, %s23, 1
          %s425 = smul.addr %s424, 2
          %s426 = smul.addr %s425, 4
          %s427 = scalar_lea.vmem %s1, %s426
        $region64: #{tpu_custom_call.1} parent=55 // pred_fallthru
          _
        // Predicated region
        $region65: #{tpu_custom_call.1} parent=55 // pred_check
          %p428 = pneg %p95
        $region66: #{tpu_custom_call.1} parent=55 // pred_check_branch
          %430 = sbr.rel (%p428) target = $region68
        $region67: #{tpu_custom_call.1} parent=55 // pred_region
          %p431 = scmp.lt.s32.totalorder %s23, 1
          %s432 = scalar_select %p431, %s23, 1
          %s433 = smul.addr %s432, 8
          %s434 = scalar_lea.vmem %s2, %s433
        $region68: #{tpu_custom_call.1} parent=55 // pred_fallthru
          _
        // Predicated region
        $region69: #{tpu_custom_call.1} parent=55 // pred_check
          %p435 = pneg %p121
        $region70: #{tpu_custom_call.1} parent=55 // pred_check_branch
          %437 = sbr.rel (%p435) target = $region72
        $region71: #{tpu_custom_call.1} parent=55 // pred_region
          %p438 = scmp.lt.s32.totalorder %s23, 1
          %s439 = scalar_select %p438, %s23, 1
          %s440 = smul.addr %s439, 2
          %s441 = smul.addr %s440, 8
          %s442 = scalar_lea.vmem %s3, %s441
        $region72: #{tpu_custom_call.1} parent=55 // pred_fallthru
          _
      $region56: #{tpu_custom_call.1} parent=5 // pred_fallthru
        _
      %p443 = scmp.le.s32.totalorder 1, %s23
      %p444 = scmp.lt.s32.totalorder %s23, 3
      %p445 = pnand %p443, %p444
      %p446 = pneg %p445
      // Predicated region
      $region73: #{tpu_custom_call.1} parent=5 // pred_check
        _
      $region74: #{tpu_custom_call.1} parent=5 // pred_check_branch
        %448 = sbr.rel (%p445) target = $region76
      $region75: #{tpu_custom_call.1} parent=5 // pred_region
        %s449 = ssub.s32 %s23, 1
        %p450 = scmp.lt.s32.totalorder %s28, 1
        %s451 = scalar_select %p450, %s28, 1
        %s452 = smul.addr %s451, 2
        %s453 = smul.addr %s452, 4
        %s454 = scalar_lea.vmem %s0, %s453
        %p455 = pneg %p49
        %p456 = pneg %p46
        %p457 = scmp.lt.s32.totalorder %s28, 1
        %s458 = scalar_select %p457, %s28, 1
        %s459 = smul.addr %s458, 2
        %s460 = smul.addr %s459, 4
        %s461 = scalar_lea.vmem %s1, %s460
        %p462 = pneg %p75
        %p463 = pneg %p72
        %p464 = scmp.lt.s32.totalorder %s28, 1
        %s465 = scalar_select %p464, %s28, 1
        %s466 = smul.addr %s465, 8
        %s467 = scalar_lea.vmem %s2, %s466
        %p468 = pneg %p101
        %p469 = pneg %p98
        %p470 = scmp.lt.s32.totalorder %s28, 1
        %s471 = scalar_select %p470, %s28, 1
        %s472 = smul.addr %s471, 2
        %s473 = smul.addr %s472, 8
        %s474 = scalar_lea.vmem %s3, %s473
        %p475 = pneg %p127
        %p476 = pneg %p124
        %p477 = pneg %p148
        %p478 = pneg %p145
        %p479 = pneg %p169
        %p480 = pneg %p166
        %p481 = pneg %p190
        %p482 = pneg %p187
        %p483 = pneg %p211
        %p484 = pneg %p208
        %p485 = pneg %p232
        %p486 = pneg %p229
        %p487 = pneg %p253
        %p488 = pneg %p250
        %p489 = pneg %p274
        %p490 = pneg %p271
        %p491 = pneg %p295
        %p492 = pneg %p292
        %p493 = pneg %p316
        %p494 = pneg %p313
        %p495 = pneg %p337
        %p496 = pneg %p334
        %p497 = pneg %p363
        %p498 = pneg %p360
        %s499 = sand.u32 %s350, 1
        %s500 = scalar_lea.sflag [#allocation5], %s499
        %s501 = sand.u32 %s350, 1
        %s502 = smul.addr %s501, 16
        %s503 = scalar_lea.vmem [#allocation4], %s502
        %p504 = scmp.lt.s32.totalorder %s28, 1
        %s505 = scalar_select %p504, %s28, 1
        %s506 = smul.addr %s505, 2
        %s507 = smul.addr %s506, 4
        %s508 = scalar_lea.vmem %s0, %s507
        %p509 = scmp.lt.s32.totalorder %s28, 1
        %s510 = scalar_select %p509, %s28, 1
        %s511 = smul.addr %s510, 2
        %s512 = smul.addr %s511, 4
        %s513 = scalar_lea.vmem %s1, %s512
        %p514 = scmp.lt.s32.totalorder %s28, 1
        %s515 = scalar_select %p514, %s28, 1
        %s516 = smul.addr %s515, 8
        %s517 = scalar_lea.vmem %s2, %s516
        %p518 = scmp.lt.s32.totalorder %s28, 1
        %s519 = scalar_select %p518, %s28, 1
        %s520 = smul.addr %s519, 2
        %s521 = smul.addr %s520, 8
        %s522 = scalar_lea.vmem %s3, %s521
        %v524 = vld [vmem:[%s508] sm:$0xff]
        %v525 = vld [vmem:[%s4] sm:$0x3]
        %v526 = vsub.f32 1.0, %v525
        %vm527 = vcmask 134144
        %528 = vst.msk [vmem:[#allocation2] sm:$0xf] %vm527, 0
        %vm529 = vcmask 273544
        %530 = vst.msk [vmem:[#allocation2 + $0x8] sm:$0xf] %vm529, 0
        %v531 = vld [vmem:[%s513] sm:$0x77]
        %v533 = vcombine.high %v531, %v531
        %v535 = vpack.c.bf16 %v531, %v531
        %v536 = vpack.c.bf16 %v533, %v533
        %v539 = vunpack.c.l.b16 %v535
        %v540 = vunpack.c.l.b16 %v536
        %v541 = vpack.c.b16 %v540, %v539
        %542 = vrot.lane.b32.xlu0 %v541, 17
        %v543 = vpop.permute.xlu0 %542
        %v544 = vrot.slane %v543, 4
        %vm545 = vcmask 138240
        %v546 = vsel %vm545, %v544, %v543
        %vm549 = vcmask 1041544
        %vm550 = vsmask.f32 1280
        %vm551 = vmand %vm549, %vm550
        %vm552 = vcmask 1045508
        %vm553 = vsmask.f32 5376
        %vm554 = vmand %vm552, %vm553
        %vm555 = vmor %vm554, %vm551
        %v556 = vld [vmem:[#allocation2] sm:$0x33]
        %v557 = vsel %vm555, %v546, %v556
        %558 = vst [vmem:[#allocation2] sm:$0x33] %v557
        %vm559 = vcmask 132096
        %vm560 = vmand %vm559, %vm550
        %v561 = vld [vmem:[#allocation2 + $0x8] sm:$0x3]
        %v562 = vsel %vm560, %v544, %v561
        %563 = vst [vmem:[#allocation2 + $0x8] sm:$0x3] %v562
        %v564 = vld [vmem:[#allocation2] sm:$0x33]
        %v565 = vld [vmem:[%s5] sm:$0x11]
        %v567 = vunpack.c.l.b16 %v565
        %v568 = vunpack.c.h.b16 %v565
        %v569 = vpack.c.b16 %v567, %v567
        %v570 = vpack.c.b16 %v568, %v568
        %v572 = vpack.i.b16 %v569, %v569
        %v574 = vlaneseq
        %v575 = vshrl.u32 %v574, 7
        %v576 = vsub.s32 0, %v575
        %v577 = vrot.slane %v572, %v576
        %v579 = vpack.i.b16 %v570, %v570
        %v581 = vlaneseq
        %v582 = vshrl.u32 %v581, 7
        %v583 = vsub.s32 0, %v582
        %v584 = vrot.slane %v579, %v583
        %v587 = vunpack.c.l.b16 %v577
        %v588 = vunpack.c.l.b16 %v584
        %v589 = vpack.c.b16 %v588, %v587
        %v591 = vmul.bf16 %v564, %v589
        %vm592 = vcmask 1041408
        %vm593 = vmand %vm592, %vm550
        %vm594 = vmor %vm554, %vm593
        %v595 = vld [vmem:[#allocation3] sm:$0x33]
        %v596 = vsel %vm594, %v591, %v595
        %597 = vst [vmem:[#allocation3] sm:$0x33] %v596
        %v598 = vld [vmem:[#allocation2] sm:$0x33]
        %v599 = vld [vmem:[#allocation2 + $0x8] sm:$0x3]
        %v600 = vld [vmem:[%s5] sm:$0x11]
        %v602 = vunpack.c.l.b16 %v600
        %v603 = vunpack.c.h.b16 %v600
        %v604 = vpack.c.b16 %v602, %v602
        %v605 = vpack.c.b16 %v603, %v603
        %v607 = vshrl.u32 %v604, 16
        %v608 = vpack.i.b16 %v607, %v607
        %v610 = vlaneseq
        %v611 = vshrl.u32 %v610, 7
        %v612 = vsub.s32 0, %v611
        %v613 = vrot.slane %v608, %v612
        %v615 = vshrl.u32 %v605, 16
        %v616 = vpack.i.b16 %v615, %v615
        %v618 = vlaneseq
        %v619 = vshrl.u32 %v618, 7
        %v620 = vsub.s32 0, %v619
        %v621 = vrot.slane %v616, %v620
        %v624 = vunpack.c.l.b16 %v613
        %v625 = vunpack.c.l.b16 %v621
        %v626 = vpack.c.b16 %v625, %v624
        %627 = vrot.lane.b32.xlu0 %v626, 1
        %v628 = vpop.permute.xlu0 %627
        %v629 = vrot.slane %v628, 4
        %vm630 = vcmask 7168
        %v631 = vsel %vm630, %v629, %v628
        %v634 = vmul.bf16 %v598, %v631
        %v635 = vmul.bf16 %v599, %v629
        %v637 = vshrl.u32 %v634, 16
        %v639 = vrot.slane %v637, 6
        %v640 = vshll.u32 %v634, 16
        %v642 = vrot.slane %v640, 7
        %v643 = vor.u32 %v639, %v642
        %v645 = vshrl.u32 %v635, 16
        %v647 = vrot.slane %v645, 6
        %v648 = vshll.u32 %v635, 16
        %v650 = vrot.slane %v648, 7
        %v651 = vor.u32 %v647, %v650
        %652 = vrot.lane.b32.xlu0 %v643, 127
        %v653 = vpop.permute.xlu0 %652
        %654 = vrot.lane.b32.xlu0 %v651, 127
        %v655 = vpop.permute.xlu0 %654
        %v656 = vrot.slane %v653, 4
        %v657 = vrot.slane %v655, 4
        %vm658 = vcmask 1043456
        %v659 = vsel %vm658, %v656, %v657
        %vm660 = vcmask 1039360
        %v661 = vsel %vm660, %v653, %v659
        %vm663 = vcmask 1042433
        %vm664 = vsmask.f32 7942
        %vm665 = vmand %vm663, %vm664
        %vm666 = vcmask 1046533
        %vm667 = vsmask.f32 7958
        %vm668 = vmand %vm666, %vm667
        %vm669 = vmor %vm668, %vm665
        %v670 = vld [vmem:[#allocation3] sm:$0x66]
        %v671 = vsel %vm669, %v661, %v670
        %672 = vst [vmem:[#allocation3] sm:$0x66] %v671
        %v673 = vld [vmem:[#allocation2] sm:$0x33]
        %v674 = vld [vmem:[#allocation2 + $0x8] sm:$0x3]
        %v675 = vld [vmem:[%s5] sm:$0x22]
        %v677 = vunpack.c.l.b16 %v675
        %v678 = vunpack.c.h.b16 %v675
        %v679 = vpack.c.b16 %v677, %v677
        %v680 = vpack.c.b16 %v678, %v678
        %v682 = vpack.i.b16 %v679, %v679
        %v684 = vlaneseq
        %v685 = vshrl.u32 %v684, 7
        %v686 = vsub.s32 1, %v685
        %v687 = vrot.slane %v682, %v686
        %v689 = vpack.i.b16 %v680, %v680
        %v691 = vlaneseq
        %v692 = vshrl.u32 %v691, 7
        %v693 = vsub.s32 1, %v692
        %v694 = vrot.slane %v689, %v693
        %v697 = vunpack.c.l.b16 %v687
        %v698 = vunpack.c.l.b16 %v694
        %v699 = vpack.c.b16 %v698, %v697
        %700 = vrot.lane.b32.xlu0 %v699, 2
        %v701 = vpop.permute.xlu0 %700
        %v702 = vrot.slane %v701, 4
        %vm703 = vcmask 15360
        %v704 = vsel %vm703, %v702, %v701
        %v707 = vmul.bf16 %v673, %v704
        %v708 = vmul.bf16 %v674, %v702
        %v711 = vrot.slane %v707, 5
        %v712 = vrot.slane %v708, 5
        %v713 = vrot.slane %v711, 4
        %v714 = vrot.slane %v712, 4
        %715 = vrot.lane.b32.xlu0 %v711, 126
        %v716 = vpop.permute.xlu0 %715
        %717 = vrot.lane.b32.xlu0 %v712, 126
        %v718 = vpop.permute.xlu0 %717
        %719 = vrot.lane.b32.xlu0 %v713, 126
        %v720 = vpop.permute.xlu0 %719
        %721 = vrot.lane.b32.xlu0 %v714, 126
        %v722 = vpop.permute.xlu0 %721
        %v723 = vrot.slane %v716, 4
        %v724 = vrot.slane %v718, 4
        %v725 = vrot.slane %v720, 4
        %v726 = vrot.slane %v722, 4
        %v727 = vsel %vm658, %v723, %v724
        %vm728 = vcmask 1031168
        %v729 = vsel %vm728, %v716, %v727
        %v730 = vsel %vm658, %v725, %v726
        %v731 = vsel %vm728, %v720, %v730
        %734 = vst [vmem:[#allocation3] sm:$0x88] %v729
        %vm735 = vcmask 1040384
        %vm736 = vsmask.f32 256
        %vm737 = vmand %vm735, %vm736
        %vm738 = vcmask 1044484
        %vm739 = vsmask.f32 4352
        %vm740 = vmand %vm738, %vm739
        %vm741 = vmor %vm740, %vm737
        %v742 = vld [vmem:[#allocation3 + $0x8] sm:$0x11]
        %v743 = vsel %vm741, %v731, %v742
        %744 = vst [vmem:[#allocation3 + $0x8] sm:$0x11] %v743
        %v745 = vld [vmem:[#allocation2] sm:$0x33]
        %v746 = vld [vmem:[#allocation2 + $0x8] sm:$0x3]
        %v747 = vld [vmem:[%s5] sm:$0x22]
        %v749 = vunpack.c.l.b16 %v747
        %v750 = vunpack.c.h.b16 %v747
        %v751 = vpack.c.b16 %v749, %v749
        %v752 = vpack.c.b16 %v750, %v750
        %v754 = vshrl.u32 %v751, 16
        %v755 = vpack.i.b16 %v754, %v754
        %v757 = vlaneseq
        %v758 = vshrl.u32 %v757, 7
        %v759 = vsub.s32 1, %v758
        %v760 = vrot.slane %v755, %v759
        %v762 = vshrl.u32 %v752, 16
        %v763 = vpack.i.b16 %v762, %v762
        %v765 = vlaneseq
        %v766 = vshrl.u32 %v765, 7
        %v767 = vsub.s32 1, %v766
        %v768 = vrot.slane %v763, %v767
        %v771 = vunpack.c.l.b16 %v760
        %v772 = vunpack.c.l.b16 %v768
        %v773 = vpack.c.b16 %v772, %v771
        %774 = vrot.lane.b32.xlu0 %v773, 16
        %v775 = vpop.permute.xlu0 %774
        %v776 = vrot.slane %v775, 4
        %vm777 = vcmask 130048
        %v778 = vsel %vm777, %v776, %v775
        %v781 = vmul.bf16 %v745, %v778
        %v782 = vmul.bf16 %v746, %v776
        %v784 = vshrl.u32 %v781, 16
        %v786 = vrot.slane %v784, 7
        %v787 = vshll.u32 %v781, 16
        %v789 = vor.u32 %v786, %v787
        %v791 = vshrl.u32 %v782, 16
        %v793 = vrot.slane %v791, 7
        %v794 = vshll.u32 %v782, 16
        %v796 = vor.u32 %v793, %v794
        %797 = vrot.lane.b32.xlu0 %v789, 112
        %v798 = vpop.permute.xlu0 %797
        %799 = vrot.lane.b32.xlu0 %v796, 112
        %v800 = vpop.permute.xlu0 %799
        %v801 = vrot.slane %v798, 4
        %v802 = vrot.slane %v800, 4
        %v803 = vsel %vm658, %v801, %v802
        %vm804 = vcmask 916480
        %v805 = vsel %vm804, %v798, %v803
        %vm807 = vsmask.f32 7938
        %vm808 = vmand %vm592, %vm807
        %vm809 = vsmask.f32 7954
        %vm810 = vmand %vm552, %vm809
        %vm811 = vmor %vm810, %vm808
        %v812 = vld [vmem:[#allocation3 + $0x8] sm:$0x33]
        %v813 = vsel %vm811, %v805, %v812
        %814 = vst [vmem:[#allocation3 + $0x8] sm:$0x33] %v813
        %v815 = vld [vmem:[#allocation2] sm:$0x33]
        %v816 = vld [vmem:[#allocation2 + $0x8] sm:$0x3]
        %v819 = vrot.slane %v815, 6
        %v820 = vrot.slane %v816, 6
        %821 = vrot.lane.b32.xlu0 %v819, 111
        %v822 = vpop.permute.xlu0 %821
        %823 = vrot.lane.b32.xlu0 %v820, 111
        %v824 = vpop.permute.xlu0 %823
        %v825 = vrot.slane %v822, 4
        %v826 = vrot.slane %v824, 4
        %v827 = vsel %vm658, %v825, %v826
        %vm828 = vcmask 908288
        %v829 = vsel %vm828, %v822, %v827
        %vm831 = vcmask 1043458
        %vm832 = vsmask.f32 3328
        %vm833 = vmand %vm831, %vm832
        %vm834 = vcmask 1047558
        %vm835 = vsmask.f32 7424
        %vm836 = vmand %vm834, %vm835
        %vm837 = vmor %vm836, %vm833
        %v838 = vld [vmem:[#allocation3 + $0x8] sm:$0xcc]
        %v839 = vsel %vm837, %v829, %v838
        %840 = vst [vmem:[#allocation3 + $0x8] sm:$0xcc] %v839
        %v841 = vld [vmem:[#allocation2] sm:$0x33]
        %v842 = vld [vmem:[#allocation2 + $0x8] sm:$0x3]
        %v843 = vld [vmem:[%s5] sm:$0x44]
        %v845 = vunpack.c.l.b16 %v843
        %v846 = vunpack.c.h.b16 %v843
        %v847 = vpack.c.b16 %v845, %v845
        %v848 = vpack.c.b16 %v846, %v846
        %v850 = vshrl.u32 %v847, 16
        %v851 = vpack.i.b16 %v850, %v850
        %v853 = vlaneseq
        %v854 = vshrl.u32 %v853, 7
        %v855 = vsub.s32 2, %v854
        %v856 = vrot.slane %v851, %v855
        %v858 = vshrl.u32 %v848, 16
        %v859 = vpack.i.b16 %v858, %v858
        %v861 = vlaneseq
        %v862 = vshrl.u32 %v861, 7
        %v863 = vsub.s32 2, %v862
        %v864 = vrot.slane %v859, %v863
        %v867 = vunpack.c.l.b16 %v856
        %v868 = vunpack.c.l.b16 %v864
        %v869 = vpack.c.b16 %v868, %v867
        %870 = vrot.lane.b32.xlu0 %v869, 18
        %v871 = vpop.permute.xlu0 %870
        %v872 = vrot.slane %v871, 4
        %vm873 = vcmask 146432
        %v874 = vsel %vm873, %v872, %v871
        %v877 = vmul.bf16 %v841, %v874
        %v878 = vmul.bf16 %v842, %v872
        %v880 = vshll.u32 %v877, 16
        %v882 = vrot.slane %v880, 5
        %v884 = vshll.u32 %v878, 16
        %v886 = vrot.slane %v884, 5
        %v887 = vshrl.u32 %v877, 16
        %v889 = vrot.slane %v887, 4
        %v890 = vor.u32 %v889, %v882
        %v891 = vrot.slane %v890, 4
        %v892 = vshrl.u32 %v878, 16
        %v894 = vrot.slane %v892, 4
        %v895 = vor.u32 %v894, %v886
        %v896 = vrot.slane %v895, 4
        %897 = vrot.lane.b32.xlu0 %v882, 110
        %v898 = vpop.permute.xlu0 %897
        %899 = vrot.lane.b32.xlu0 %v886, 110
        %v900 = vpop.permute.xlu0 %899
        %901 = vrot.lane.b32.xlu0 %v891, 110
        %v902 = vpop.permute.xlu0 %901
        %903 = vrot.lane.b32.xlu0 %v896, 110
        %v904 = vpop.permute.xlu0 %903
        %v905 = vrot.slane %v898, 4
        %v906 = vrot.slane %v900, 4
        %v907 = vrot.slane %v902, 4
        %v908 = vrot.slane %v904, 4
        %v909 = vsel %vm658, %v905, %v906
        %vm910 = vcmask 900096
        %v911 = vsel %vm910, %v898, %v909
        %v912 = vsel %vm658, %v907, %v908
        %v913 = vsel %vm910, %v902, %v912
        %vm916 = vcmask 1043459
        %vm917 = vsmask.f32 7950
        %vm918 = vmand %vm916, %vm917
        %vm919 = vcmask 1047559
        %vm920 = vsmask.f32 7966
        %vm921 = vmand %vm919, %vm920
        %vm922 = vmor %vm921, %vm918
        %v923 = vld [vmem:[#allocation3 + $0x8] sm:$0x88]
        %v924 = vsel %vm922, %v911, %v923
        %925 = vst [vmem:[#allocation3 + $0x8] sm:$0x88] %v924
        %926 = vst [vmem:[#allocation3 + $0x10] sm:$0x11] %v913
        %v927 = vld [vmem:[#allocation2] sm:$0x33]
        %v928 = vld [vmem:[#allocation2 + $0x8] sm:$0x3]
        %v929 = vld [vmem:[%s5] sm:$0x88]
        %v931 = vunpack.c.l.b16 %v929
        %v932 = vunpack.c.h.b16 %v929
        %v933 = vpack.c.b16 %v931, %v931
        %v934 = vpack.c.b16 %v932, %v932
        %v936 = vpack.i.b16 %v933, %v933
        %v938 = vlaneseq
        %v939 = vshrl.u32 %v938, 7
        %v940 = vsub.s32 3, %v939
        %v941 = vrot.slane %v936, %v940
        %v943 = vpack.i.b16 %v934, %v934
        %v945 = vlaneseq
        %v946 = vshrl.u32 %v945, 7
        %v947 = vsub.s32 3, %v946
        %v948 = vrot.slane %v943, %v947
        %v951 = vunpack.c.l.b16 %v941
        %v952 = vunpack.c.l.b16 %v948
        %v953 = vpack.c.b16 %v952, %v951
        %954 = vrot.lane.b32.xlu0 %v953, 32
        %v955 = vpop.permute.xlu0 %954
        %v956 = vrot.slane %v955, 4
        %vm957 = vcmask 261120
        %v958 = vsel %vm957, %v956, %v955
        %v961 = vmul.bf16 %v927, %v958
        %v962 = vmul.bf16 %v928, %v956
        %v965 = vrot.slane %v961, 7
        %v966 = vrot.slane %v962, 7
        %967 = vrot.lane.b32.xlu0 %v965, 96
        %v968 = vpop.permute.xlu0 %967
        %969 = vrot.lane.b32.xlu0 %v966, 96
        %v970 = vpop.permute.xlu0 %969
        %v971 = vrot.slane %v968, 4
        %v972 = vrot.slane %v970, 4
        %v973 = vsel %vm658, %v971, %v972
        %vm974 = vcmask 785408
        %v975 = vsel %vm974, %v968, %v973
        %vm977 = vsmask.f32 2304
        %vm978 = vmand %vm663, %vm977
        %vm979 = vsmask.f32 6400
        %vm980 = vmand %vm666, %vm979
        %vm981 = vmor %vm980, %vm978
        %v982 = vld [vmem:[#allocation3 + $0x10] sm:$0x66]
        %v983 = vsel %vm981, %v975, %v982
        %984 = vst [vmem:[#allocation3 + $0x10] sm:$0x66] %v983
        %v985 = vld [vmem:[#allocation2] sm:$0x33]
        %v986 = vld [vmem:[#allocation2 + $0x8] sm:$0x3]
        %v987 = vld [vmem:[%s5] sm:$0x88]
        %v989 = vunpack.c.l.b16 %v987
        %v990 = vunpack.c.h.b16 %v987
        %v991 = vpack.c.b16 %v989, %v989
        %v992 = vpack.c.b16 %v990, %v990
        %v994 = vshrl.u32 %v991, 16
        %v995 = vpack.i.b16 %v994, %v994
        %v997 = vlaneseq
        %v998 = vshrl.u32 %v997, 7
        %v999 = vsub.s32 3, %v998
        %v1000 = vrot.slane %v995, %v999
        %v1002 = vshrl.u32 %v992, 16
        %v1003 = vpack.i.b16 %v1002, %v1002
        %v1005 = vlaneseq
        %v1006 = vshrl.u32 %v1005, 7
        %v1007 = vsub.s32 3, %v1006
        %v1008 = vrot.slane %v1003, %v1007
        %v1011 = vunpack.c.l.b16 %v1000
        %v1012 = vunpack.c.l.b16 %v1008
        %v1013 = vpack.c.b16 %v1012, %v1011
        %1014 = vrot.lane.b32.xlu0 %v1013, 33
        %v1015 = vpop.permute.xlu0 %1014
        %v1016 = vrot.slane %v1015, 4
        %vm1017 = vcmask 269312
        %v1018 = vsel %vm1017, %v1016, %v1015
        %v1021 = vmul.bf16 %v985, %v1018
        %v1022 = vmul.bf16 %v986, %v1016
        %v1024 = vshrl.u32 %v1021, 16
        %v1026 = vrot.slane %v1024, 5
        %v1027 = vshll.u32 %v1021, 16
        %v1029 = vrot.slane %v1027, 6
        %v1030 = vor.u32 %v1026, %v1029
        %v1032 = vshrl.u32 %v1022, 16
        %v1034 = vrot.slane %v1032, 5
        %v1035 = vshll.u32 %v1022, 16
        %v1037 = vrot.slane %v1035, 6
        %v1038 = vor.u32 %v1034, %v1037
        %1039 = vrot.lane.b32.xlu0 %v1030, 95
        %v1040 = vpop.permute.xlu0 %1039
        %1041 = vrot.lane.b32.xlu0 %v1038, 95
        %v1042 = vpop.permute.xlu0 %1041
        %v1043 = vrot.slane %v1040, 4
        %v1044 = vrot.slane %v1042, 4
        %v1045 = vsel %vm658, %v1043, %v1044
        %vm1046 = vcmask 777216
        %v1047 = vsel %vm1046, %v1040, %v1045
        %vm1049 = vsmask.f32 7946
        %vm1050 = vmand %vm831, %vm1049
        %vm1051 = vsmask.f32 7962
        %vm1052 = vmand %vm834, %vm1051
        %vm1053 = vmor %vm1052, %vm1050
        %v1054 = vld [vmem:[#allocation3 + $0x10] sm:$0xcc]
        %v1055 = vsel %vm1053, %v1047, %v1054
        %1056 = vst [vmem:[#allocation3 + $0x10] sm:$0xcc] %v1055
        %v1057 = vld [vmem:[#allocation2] sm:$0x33]
        %v1058 = vld [vmem:[#allocation2 + $0x8] sm:$0x3]
        %v1059 = vld [vmem:[%s5 + $0x8] sm:$0x11]
        %v1061 = vunpack.c.l.b16 %v1059
        %v1062 = vunpack.c.h.b16 %v1059
        %v1063 = vpack.c.b16 %v1061, %v1061
        %v1064 = vpack.c.b16 %v1062, %v1062
        %v1066 = vpack.i.b16 %v1063, %v1063
        %v1068 = vlaneseq
        %v1069 = vshrl.u32 %v1068, 7
        %v1070 = vsub.s32 0, %v1069
        %v1071 = vrot.slane %v1066, %v1070
        %v1073 = vpack.i.b16 %v1064, %v1064
        %v1075 = vlaneseq
        %v1076 = vshrl.u32 %v1075, 7
        %v1077 = vsub.s32 0, %v1076
        %v1078 = vrot.slane %v1073, %v1077
        %v1081 = vunpack.c.l.b16 %v1071
        %v1082 = vunpack.c.l.b16 %v1078
        %v1083 = vpack.c.b16 %v1082, %v1081
        %1084 = vrot.lane.b32.xlu0 %v1083, 34
        %v1085 = vpop.permute.xlu0 %1084
        %v1086 = vrot.slane %v1085, 4
        %vm1087 = vcmask 277504
        %v1088 = vsel %vm1087, %v1086, %v1085
        %v1091 = vmul.bf16 %v1057, %v1088
        %v1092 = vmul.bf16 %v1058, %v1086
        %1095 = vrot.lane.b32.xlu0 %v1091, 94
        %v1096 = vpop.permute.xlu0 %1095
        %1097 = vrot.lane.b32.xlu0 %v1092, 94
        %v1098 = vpop.permute.xlu0 %1097
        %v1099 = vrot.slane %v1096, 4
        %v1100 = vrot.slane %v1098, 4
        %v1101 = vsel %vm658, %v1099, %v1100
        %vm1102 = vcmask 769024
        %v1103 = vsel %vm1102, %v1096, %v1101
        %v1105 = vld [vmem:[#allocation3 + $0x18] sm:$0x33]
        %v1106 = vsel %vm594, %v1103, %v1105
        %1107 = vst [vmem:[#allocation3 + $0x18] sm:$0x33] %v1106
        %v1108 = vld [vmem:[%s6] sm:$0xf]
        %v1109 = vld [vmem:[#allocation3] sm:$0xff]
        %v1110 = vld [vmem:[#allocation3 + $0x8] sm:$0xff]
        %v1111 = vld [vmem:[#allocation3 + $0x10] sm:$0xff]
        %v1112 = vld [vmem:[#allocation3 + $0x18] sm:$0x33]
        %v1113 = vld [vmem:[%s7] sm:$0xff]
        %1115 = vset.pattern.permute.xlu0 0
        %1116 = vperm.xlu0 %1115, %v1113
        %v1117 = vpop.permute.xlu0 %1116
        %v1123 = vunpack.c.l.b16 %v1109
        %v1124 = vunpack.c.h.b16 %v1109
        %v1125 = vunpack.c.l.b16 %v1110
        %v1126 = vunpack.c.h.b16 %v1110
        %v1127 = vunpack.c.l.b16 %v1111
        %v1128 = vunpack.c.h.b16 %v1111
        %v1129 = vunpack.c.l.b16 %v1112
        %v1130 = vunpack.c.h.b16 %v1112
        %v1131 = vpack.c.b16 %v1125, %v1123
        %v1132 = vpack.c.b16 %v1126, %v1124
        %v1133 = vpack.c.b16 %v1129, %v1127
        %v1134 = vpack.c.b16 %v1130, %v1128
        %vm1137 = vcmask 220160
        %v1139 = vsel %vm1137, %v1108, 0
        %vm1141 = vcmask 1044480
        %vm1142 = vcmask 1045504
        %v1143 = vsel %vm1141, 4294967295, 65535
        %v1144 = vsel %vm1142, %v1143, 0
        %v1146 = vand.u32 %v1133, %v1144
        %v1149 = vand.u32 %v1134, %v1144
        %1151 = vmatprep.subr.bf16.mxu0 0
        %1152 = vmatpush1.bf16.msra.mxu0 0
        %1153 = vmatprep.subr.bf16.mxu0 0
        %1154 = vmatpush1.bf16.msra.mxu0 0
        %1155 = vmatprep.subr.bf16.mxu0 0
        %1156 = vmatpush1.bf16.msra.mxu0 0
        %1157 = vmatprep.subr.bf16.mxu0 0
        %1158 = vmatpush1.bf16.msra.mxu0 0
        %1159 = vmatprep.subr.bf16.mxu0 0
        %1160 = vmatpush1.bf16.msra.mxu0 0
        %1161 = vmatprep.subr.bf16.mxu0 0
        %1162 = vmatpush1.bf16.msra.mxu0 0
        %1163 = vmatprep.subr.bf16.mxu0 %v1149
        %1164 = vmatpush1.bf16.msra.mxu0 %v1146
        %1165 = vmatprep.subr.bf16.mxu0 %v1132
        %1166 = vmatpush1.bf16.msra.mxu0 %v1131
        %1167 = vmatprep.subr.bf16.mxu0 0
        %1168 = vmatpush2.bf16.msra.mxu0 0
        %1169 = vmatprep.subr.bf16.mxu0 0
        %1170 = vmatpush2.bf16.msra.mxu0 0
        %1171 = vmatprep.subr.bf16.mxu0 0
        %1172 = vmatpush2.bf16.msra.mxu0 0
        %1173 = vmatprep.subr.bf16.mxu0 0
        %1174 = vmatpush2.bf16.msra.mxu0 0
        %1175 = vmatprep.subr.bf16.mxu0 0
        %1176 = vmatpush2.bf16.msra.mxu0 0
        %1177 = vmatprep.subr.bf16.mxu0 0
        %1178 = vmatpush2.bf16.msra.mxu0 0
        %1179 = vmatprep.subr.bf16.mxu0 0
        %1180 = vmatpush2.bf16.msra.mxu0 0
        %1181 = vmatprep.subr.bf16.mxu0 0
        %1182 = vmatpush2.bf16.msra.mxu0 0
        %1183 = vmatprep.mubr.bf16.mxu0 0
        %1184 = vmatmul.mubr.bf16.gmra.mxu0 %v1139
        %v1185 = vpop.f32.mrf.mxu0
        %v1186 = vadd.f32 %v1117, %v1185
        %v1187 = vpop.f32.mrf.mxu0
        %v1188 = vadd.f32 %v1117, %v1187
        %v1189 = vpop.f32.mrf.mxu0
        %v1190 = vpop.f32.mrf.mxu0
        %1191 = vdwg.mxu0
        %v1192 = vld [vmem:[%s517] sm:$0xf]
        %v1193 = vld [vmem:[%s517 + $0x4] sm:$0xf]
        %v1195 = vlaneseq
        %v1196 = vshrl.u32 %v1195, 7
        %v1197 = vsub.s32 0, %v1196
        %v1198 = vrot.slane %v526, %v1197
        %v1199 = vlaneseq
        %v1200 = vshrl.u32 %v1199, 7
        %v1201 = vsub.s32 1, %v1200
        %v1202 = vrot.slane %v526, %v1201
        %v1206 = vcombine.high %v524, %v524
        %v1208 = vmul.f32 %v1198, %v524
        %v1209 = vmul.f32 %v1202, %v1206
        %vm1210 = vcmask 1043456
        %v1211 = vsel %vm1210, %v1208, 0.0
        %v1212 = vsel %vm1210, %v1209, 0.0
        %v1213 = vadd.f32 %v1211, %v1212
        %1214 = vadd.xlane.f32.xlu0 %v1213
        %v1215 = vpop.xlane.xlu0 %1214
        %v1216 = vmul.f32 %v1215, 0.00390625
        %v1217 = vsub.f32 %v1208, %v1216
        %v1218 = vsub.f32 %v1209, %v1216
        %v1219 = vmul.f32 %v1217, %v1217
        %v1220 = vmul.f32 %v1218, %v1218
        %v1221 = vsel %vm1210, %v1219, 0.0
        %v1222 = vsel %vm1210, %v1220, 0.0
        %v1223 = vadd.f32 %v1221, %v1222
        %1224 = vadd.xlane.f32.xlu0 %v1223
        %v1225 = vpop.xlane.xlu0 %1224
        %v1226 = vmul.f32 %v1225, 0.00390625
        %v1227 = vadd.f32 %v1226, 1e-05
        %v1228 = vrsqrt.pop %v1227
        %v1229 = vmul.f32 %v1217, %v1228
        %v1230 = vmul.f32 %v1218, %v1228
        %1232 = vset.pattern.permute.xlu0 0
        %1233 = vperm.xlu0 %1232, %v1192
        %v1234 = vpop.permute.xlu0 %1233
        %v1236 = vmul.f32 %v1234, %v1229
        %v1237 = vmul.f32 %v1234, %v1230
        %1239 = vset.pattern.permute.xlu0 0
        %1240 = vperm.xlu0 %1239, %v1193
        %v1241 = vpop.permute.xlu0 %1240
        %v1243 = vadd.f32 %v1236, %v1241
        %v1244 = vadd.f32 %v1237, %v1241
        %v1245 = vmul.f32 %v1243, %v1186
        %v1246 = vmul.f32 %v1244, %v1188
        %v1249 = vrot.slane %v1186, 4
        %v1250 = vrot.slane %v1188, 4
        %v1253 = vadd.f32 %v1245, %v1249
        %v1254 = vadd.f32 %v1246, %v1250
        %v1256 = vlaneseq
        %v1257 = vshrl.u32 %v1256, 7
        %v1258 = vsub.s32 0, %v1257
        %v1259 = vrot.slane %v525, %v1258
        %v1260 = vlaneseq
        %v1261 = vshrl.u32 %v1260, 7
        %v1262 = vsub.s32 1, %v1261
        %v1263 = vrot.slane %v525, %v1262
        %v1266 = vmul.f32 %v1259, %v524
        %v1267 = vmul.f32 %v1263, %v1206
        %v1268 = vmul.f32 %v1198, %v1253
        %v1269 = vmul.f32 %v1202, %v1254
        %v1270 = vadd.f32 %v1266, %v1268
        %v1271 = vadd.f32 %v1267, %v1269
        %v1272 = vmul.f32 %v1270, 0.2
        %v1273 = vmul.f32 %v1271, 0.2
        %v1274 = vmax.f32 %v1270, %v1272
        %v1275 = vmax.f32 %v1271, %v1273
        %v1276 = vpack.c.bf16 %v1274, %v1274
        %v1277 = vpack.c.bf16 %v1275, %v1275
        %v1280 = vunpack.c.l.b16 %v1276
        %v1281 = vunpack.c.l.b16 %v1277
        %v1282 = vpack.c.b16 %v1281, %v1280
        %1283 = vrot.lane.b32.xlu0 %v1282, 17
        %v1284 = vpop.permute.xlu0 %1283
        %v1285 = vrot.slane %v1284, 4
        %v1286 = vsel %vm545, %v1285, %v1284
        %vm1289 = vcmask 1041544
        %vm1290 = vcmask 1045508
        %vm1291 = vmor %vm1290, %vm1289
        %1292 = vst.msk [vmem:[#allocation2] sm:$0x33] %vm1291, %v1286
        %vm1293 = vcmask 132096
        %1294 = vst.msk [vmem:[#allocation2 + $0x8] sm:$0x3] %vm1293, %v1285
        %v1295 = vld [vmem:[#allocation2] sm:$0x33]
        %v1296 = vld [vmem:[%s5] sm:$0x11]
        %v1298 = vunpack.c.l.b16 %v1296
        %v1299 = vunpack.c.h.b16 %v1296
        %v1300 = vpack.c.b16 %v1298, %v1298
        %v1301 = vpack.c.b16 %v1299, %v1299
        %v1303 = vpack.i.b16 %v1300, %v1300
        %v1305 = vlaneseq
        %v1306 = vshrl.u32 %v1305, 7
        %v1307 = vsub.s32 0, %v1306
        %v1308 = vrot.slane %v1303, %v1307
        %v1310 = vpack.i.b16 %v1301, %v1301
        %v1312 = vlaneseq
        %v1313 = vshrl.u32 %v1312, 7
        %v1314 = vsub.s32 0, %v1313
        %v1315 = vrot.slane %v1310, %v1314
        %v1318 = vunpack.c.l.b16 %v1308
        %v1319 = vunpack.c.l.b16 %v1315
        %v1320 = vpack.c.b16 %v1319, %v1318
        %v1322 = vmul.bf16 %v1295, %v1320
        %v1323 = vld [vmem:[%s10] sm:$0xf]
        %v1324 = vld [vmem:[#allocation2 + $0x8] sm:$0x3]
        %v1325 = vshrl.u32 %v1300, 16
        %v1326 = vpack.i.b16 %v1325, %v1325
        %v1328 = vlaneseq
        %v1329 = vshrl.u32 %v1328, 7
        %v1330 = vsub.s32 0, %v1329
        %v1331 = vrot.slane %v1326, %v1330
        %v1332 = vshrl.u32 %v1301, 16
        %v1333 = vpack.i.b16 %v1332, %v1332
        %v1335 = vlaneseq
        %v1336 = vshrl.u32 %v1335, 7
        %v1337 = vsub.s32 0, %v1336
        %v1338 = vrot.slane %v1333, %v1337
        %v1341 = vunpack.c.l.b16 %v1331
        %v1342 = vunpack.c.l.b16 %v1338
        %v1343 = vpack.c.b16 %v1342, %v1341
        %1344 = vrot.lane.b32.xlu0 %v1343, 1
        %v1345 = vpop.permute.xlu0 %1344
        %v1346 = vrot.slane %v1345, 4
        %v1347 = vsel %vm630, %v1346, %v1345
        %v1350 = vmul.bf16 %v1295, %v1347
        %v1351 = vmul.bf16 %v1324, %v1346
        %s1352 = scalar_lea.vmem %s10, 4
        %v1353 = vld [vmem:[%s1352] sm:$0xf]
        %v1356 = vunpack.c.l.b16 %v1350
        %v1357 = vunpack.c.h.b16 %v1350
        %v1358 = vunpack.c.l.b16 %v1351
        %v1359 = vpack.c.b16 %v1356, %v1356
        %v1360 = vpack.c.b16 %v1357, %v1357
        %v1361 = vpack.c.b16 %v1358, %v1358
        %1362 = vrot.lane.b32.xlu0 %v1359, 127
        %v1363 = vpop.permute.xlu0 %1362
        %1364 = vrot.lane.b32.xlu0 %v1360, 127
        %v1365 = vpop.permute.xlu0 %1364
        %1366 = vrot.lane.b32.xlu0 %v1361, 127
        %v1367 = vpop.permute.xlu0 %1366
        %v1368 = vsel %vm660, %v1363, %v1365
        %v1369 = vsel %vm660, %v1365, %v1367
        %vm1370 = vcmask 31744
        %v1372 = vsel %vm1370, %v1353, 0
        %vm1374 = vcmask 1041408
        %v1376 = vsel %vm1374, %v1368, 0
        %v1379 = vsel %vm1374, %v1369, 0
        %1381 = vmatprep.subr.bf16.mxu0 0
        %1382 = vmatpush1.bf16.msra.mxu0 0
        %1383 = vmatprep.subr.bf16.mxu0 0
        %1384 = vmatpush1.bf16.msra.mxu0 0
        %1385 = vmatprep.subr.bf16.mxu0 0
        %1386 = vmatpush1.bf16.msra.mxu0 0
        %1387 = vmatprep.subr.bf16.mxu0 0
        %1388 = vmatpush1.bf16.msra.mxu0 0
        %1389 = vmatprep.subr.bf16.mxu0 0
        %1390 = vmatpush1.bf16.msra.mxu0 0
        %1391 = vmatprep.subr.bf16.mxu0 0
        %1392 = vmatpush1.bf16.msra.mxu0 0
        %1393 = vmatprep.subr.bf16.mxu0 0
        %1394 = vmatpush1.bf16.msra.mxu0 0
        %1395 = vmatprep.subr.bf16.mxu0 %v1379
        %1396 = vmatpush1.bf16.msra.mxu0 %v1376
        %1397 = vmatprep.subr.bf16.mxu0 0
        %1398 = vmatpush2.bf16.msra.mxu0 0
        %1399 = vmatprep.subr.bf16.mxu0 0
        %1400 = vmatpush2.bf16.msra.mxu0 0
        %1401 = vmatprep.subr.bf16.mxu0 0
        %1402 = vmatpush2.bf16.msra.mxu0 0
        %1403 = vmatprep.subr.bf16.mxu0 0
        %1404 = vmatpush2.bf16.msra.mxu0 0
        %1405 = vmatprep.subr.bf16.mxu0 0
        %1406 = vmatpush2.bf16.msra.mxu0 0
        %1407 = vmatprep.subr.bf16.mxu0 0
        %1408 = vmatpush2.bf16.msra.mxu0 0
        %1409 = vmatprep.subr.bf16.mxu0 0
        %1410 = vmatpush2.bf16.msra.mxu0 0
        %1411 = vmatprep.subr.bf16.mxu0 0
        %1412 = vmatpush2.bf16.msra.mxu0 0
        %1413 = vmatprep.mubr.bf16.mxu0 0
        %1414 = vmatmul.mubr.bf16.gmra.mxu0 %v1372
        %v1415 = vpop.f32.mrf.mxu0
        %v1416 = vadd.f32 0.0, %v1415
        %v1417 = vpop.f32.mrf.mxu0
        %v1418 = vadd.f32 0.0, %v1417
        %v1419 = vpop.f32.mrf.mxu0
        %v1420 = vpop.f32.mrf.mxu0
        %1421 = vdwg.mxu0
        %v1423 = vunpack.c.l.b16 %v1322
        %v1424 = vunpack.c.h.b16 %v1322
        %v1425 = vpack.c.b16 %v1423, %v1423
        %v1426 = vpack.c.b16 %v1424, %v1424
        %v1428 = vsel %vm1370, %v1323, 0
        %v1431 = vsel %vm1374, %v1425, 0
        %v1434 = vsel %vm1374, %v1426, 0
        %1436 = vmatprep.subr.bf16.mxu0 0
        %1437 = vmatpush1.bf16.msra.mxu0 0
        %1438 = vmatprep.subr.bf16.mxu0 0
        %1439 = vmatpush1.bf16.msra.mxu0 0
        %1440 = vmatprep.subr.bf16.mxu0 0
        %1441 = vmatpush1.bf16.msra.mxu0 0
        %1442 = vmatprep.subr.bf16.mxu0 0
        %1443 = vmatpush1.bf16.msra.mxu0 0
        %1444 = vmatprep.subr.bf16.mxu0 0
        %1445 = vmatpush1.bf16.msra.mxu0 0
        %1446 = vmatprep.subr.bf16.mxu0 0
        %1447 = vmatpush1.bf16.msra.mxu0 0
        %1448 = vmatprep.subr.bf16.mxu0 0
        %1449 = vmatpush1.bf16.msra.mxu0 0
        %1450 = vmatprep.subr.bf16.mxu0 %v1434
        %1451 = vmatpush1.bf16.msra.mxu0 %v1431
        %1452 = vmatprep.subr.bf16.mxu0 0
        %1453 = vmatpush2.bf16.msra.mxu0 0
        %1454 = vmatprep.subr.bf16.mxu0 0
        %1455 = vmatpush2.bf16.msra.mxu0 0
        %1456 = vmatprep.subr.bf16.mxu0 0
        %1457 = vmatpush2.bf16.msra.mxu0 0
        %1458 = vmatprep.subr.bf16.mxu0 0
        %1459 = vmatpush2.bf16.msra.mxu0 0
        %1460 = vmatprep.subr.bf16.mxu0 0
        %1461 = vmatpush2.bf16.msra.mxu0 0
        %1462 = vmatprep.subr.bf16.mxu0 0
        %1463 = vmatpush2.bf16.msra.mxu0 0
        %1464 = vmatprep.subr.bf16.mxu0 0
        %1465 = vmatpush2.bf16.msra.mxu0 0
        %1466 = vmatprep.subr.bf16.mxu0 0
        %1467 = vmatpush2.bf16.msra.mxu0 0
        %1468 = vmatprep.mubr.bf16.mxu0 0
        %1469 = vmatmul.mubr.bf16.gmra.mxu0 %v1428
        %v1470 = vpop.f32.mrf.mxu0
        %v1471 = vadd.f32 %v1416, %v1470
        %v1472 = vpop.f32.mrf.mxu0
        %v1473 = vadd.f32 %v1418, %v1472
        %v1474 = vpop.f32.mrf.mxu0
        %v1475 = vpop.f32.mrf.mxu0
        %1476 = vdwg.mxu0
        %v1477 = vld [vmem:[%s5] sm:$0x22]
        %v1479 = vunpack.c.l.b16 %v1477
        %v1480 = vunpack.c.h.b16 %v1477
        %v1481 = vpack.c.b16 %v1479, %v1479
        %v1482 = vpack.c.b16 %v1480, %v1480
        %v1484 = vpack.i.b16 %v1481, %v1481
        %v1486 = vlaneseq
        %v1487 = vshrl.u32 %v1486, 7
        %v1488 = vsub.s32 1, %v1487
        %v1489 = vrot.slane %v1484, %v1488
        %v1491 = vpack.i.b16 %v1482, %v1482
        %v1493 = vlaneseq
        %v1494 = vshrl.u32 %v1493, 7
        %v1495 = vsub.s32 1, %v1494
        %v1496 = vrot.slane %v1491, %v1495
        %v1499 = vunpack.c.l.b16 %v1489
        %v1500 = vunpack.c.l.b16 %v1496
        %v1501 = vpack.c.b16 %v1500, %v1499
        %1502 = vrot.lane.b32.xlu0 %v1501, 2
        %v1503 = vpop.permute.xlu0 %1502
        %v1504 = vrot.slane %v1503, 4
        %v1505 = vsel %vm703, %v1504, %v1503
        %v1508 = vmul.bf16 %v1295, %v1505
        %v1509 = vmul.bf16 %v1324, %v1504
        %s1510 = scalar_lea.vmem %s10, 8
        %v1511 = vld [vmem:[%s1510] sm:$0xf]
        %v1514 = vunpack.c.l.b16 %v1508
        %v1515 = vunpack.c.h.b16 %v1508
        %v1516 = vunpack.c.l.b16 %v1509
        %v1517 = vpack.c.b16 %v1514, %v1514
        %v1518 = vpack.c.b16 %v1515, %v1515
        %v1519 = vpack.c.b16 %v1516, %v1516
        %1520 = vrot.lane.b32.xlu0 %v1517, 126
        %v1521 = vpop.permute.xlu0 %1520
        %1522 = vrot.lane.b32.xlu0 %v1518, 126
        %v1523 = vpop.permute.xlu0 %1522
        %1524 = vrot.lane.b32.xlu0 %v1519, 126
        %v1525 = vpop.permute.xlu0 %1524
        %v1526 = vsel %vm728, %v1521, %v1523
        %v1527 = vsel %vm728, %v1523, %v1525
        %v1529 = vsel %vm1370, %v1511, 0
        %v1532 = vsel %vm1374, %v1526, 0
        %v1535 = vsel %vm1374, %v1527, 0
        %1537 = vmatprep.subr.bf16.mxu0 0
        %1538 = vmatpush1.bf16.msra.mxu0 0
        %1539 = vmatprep.subr.bf16.mxu0 0
        %1540 = vmatpush1.bf16.msra.mxu0 0
        %1541 = vmatprep.subr.bf16.mxu0 0
        %1542 = vmatpush1.bf16.msra.mxu0 0
        %1543 = vmatprep.subr.bf16.mxu0 0
        %1544 = vmatpush1.bf16.msra.mxu0 0
        %1545 = vmatprep.subr.bf16.mxu0 0
        %1546 = vmatpush1.bf16.msra.mxu0 0
        %1547 = vmatprep.subr.bf16.mxu0 0
        %1548 = vmatpush1.bf16.msra.mxu0 0
        %1549 = vmatprep.subr.bf16.mxu0 0
        %1550 = vmatpush1.bf16.msra.mxu0 0
        %1551 = vmatprep.subr.bf16.mxu0 %v1535
        %1552 = vmatpush1.bf16.msra.mxu0 %v1532
        %1553 = vmatprep.subr.bf16.mxu0 0
        %1554 = vmatpush2.bf16.msra.mxu0 0
        %1555 = vmatprep.subr.bf16.mxu0 0
        %1556 = vmatpush2.bf16.msra.mxu0 0
        %1557 = vmatprep.subr.bf16.mxu0 0
        %1558 = vmatpush2.bf16.msra.mxu0 0
        %1559 = vmatprep.subr.bf16.mxu0 0
        %1560 = vmatpush2.bf16.msra.mxu0 0
        %1561 = vmatprep.subr.bf16.mxu0 0
        %1562 = vmatpush2.bf16.msra.mxu0 0
        %1563 = vmatprep.subr.bf16.mxu0 0
        %1564 = vmatpush2.bf16.msra.mxu0 0
        %1565 = vmatprep.subr.bf16.mxu0 0
        %1566 = vmatpush2.bf16.msra.mxu0 0
        %1567 = vmatprep.subr.bf16.mxu0 0
        %1568 = vmatpush2.bf16.msra.mxu0 0
        %1569 = vmatprep.mubr.bf16.mxu0 0
        %1570 = vmatmul.mubr.bf16.gmra.mxu0 %v1529
        %v1571 = vpop.f32.mrf.mxu0
        %v1572 = vadd.f32 0.0, %v1571
        %v1573 = vpop.f32.mrf.mxu0
        %v1574 = vadd.f32 0.0, %v1573
        %v1575 = vpop.f32.mrf.mxu0
        %v1576 = vpop.f32.mrf.mxu0
        %1577 = vdwg.mxu0
        %v1578 = vadd.f32 %v1471, %v1572
        %v1579 = vadd.f32 %v1473, %v1574
        %v1580 = vshrl.u32 %v1481, 16
        %v1581 = vpack.i.b16 %v1580, %v1580
        %v1583 = vlaneseq
        %v1584 = vshrl.u32 %v1583, 7
        %v1585 = vsub.s32 1, %v1584
        %v1586 = vrot.slane %v1581, %v1585
        %v1587 = vshrl.u32 %v1482, 16
        %v1588 = vpack.i.b16 %v1587, %v1587
        %v1590 = vlaneseq
        %v1591 = vshrl.u32 %v1590, 7
        %v1592 = vsub.s32 1, %v1591
        %v1593 = vrot.slane %v1588, %v1592
        %v1596 = vunpack.c.l.b16 %v1586
        %v1597 = vunpack.c.l.b16 %v1593
        %v1598 = vpack.c.b16 %v1597, %v1596
        %1599 = vrot.lane.b32.xlu0 %v1598, 16
        %v1600 = vpop.permute.xlu0 %1599
        %v1601 = vrot.slane %v1600, 4
        %v1602 = vsel %vm777, %v1601, %v1600
        %v1605 = vmul.bf16 %v1295, %v1602
        %v1606 = vmul.bf16 %v1324, %v1601
        %s1607 = scalar_lea.vmem %s10, 12
        %v1608 = vld [vmem:[%s1607] sm:$0xf]
        %v1611 = vunpack.c.l.b16 %v1605
        %v1612 = vunpack.c.h.b16 %v1605
        %v1613 = vunpack.c.l.b16 %v1606
        %v1614 = vpack.c.b16 %v1611, %v1611
        %v1615 = vpack.c.b16 %v1612, %v1612
        %v1616 = vpack.c.b16 %v1613, %v1613
        %1617 = vrot.lane.b32.xlu0 %v1614, 112
        %v1618 = vpop.permute.xlu0 %1617
        %1619 = vrot.lane.b32.xlu0 %v1615, 112
        %v1620 = vpop.permute.xlu0 %1619
        %1621 = vrot.lane.b32.xlu0 %v1616, 112
        %v1622 = vpop.permute.xlu0 %1621
        %v1623 = vsel %vm804, %v1618, %v1620
        %v1624 = vsel %vm804, %v1620, %v1622
        %v1626 = vsel %vm1370, %v1608, 0
        %v1629 = vsel %vm1374, %v1623, 0
        %v1632 = vsel %vm1374, %v1624, 0
        %1634 = vmatprep.subr.bf16.mxu0 0
        %1635 = vmatpush1.bf16.msra.mxu0 0
        %1636 = vmatprep.subr.bf16.mxu0 0
        %1637 = vmatpush1.bf16.msra.mxu0 0
        %1638 = vmatprep.subr.bf16.mxu0 0
        %1639 = vmatpush1.bf16.msra.mxu0 0
        %1640 = vmatprep.subr.bf16.mxu0 0
        %1641 = vmatpush1.bf16.msra.mxu0 0
        %1642 = vmatprep.subr.bf16.mxu0 0
        %1643 = vmatpush1.bf16.msra.mxu0 0
        %1644 = vmatprep.subr.bf16.mxu0 0
        %1645 = vmatpush1.bf16.msra.mxu0 0
        %1646 = vmatprep.subr.bf16.mxu0 0
        %1647 = vmatpush1.bf16.msra.mxu0 0
        %1648 = vmatprep.subr.bf16.mxu0 %v1632
        %1649 = vmatpush1.bf16.msra.mxu0 %v1629
        %1650 = vmatprep.subr.bf16.mxu0 0
        %1651 = vmatpush2.bf16.msra.mxu0 0
        %1652 = vmatprep.subr.bf16.mxu0 0
        %1653 = vmatpush2.bf16.msra.mxu0 0
        %1654 = vmatprep.subr.bf16.mxu0 0
        %1655 = vmatpush2.bf16.msra.mxu0 0
        %1656 = vmatprep.subr.bf16.mxu0 0
        %1657 = vmatpush2.bf16.msra.mxu0 0
        %1658 = vmatprep.subr.bf16.mxu0 0
        %1659 = vmatpush2.bf16.msra.mxu0 0
        %1660 = vmatprep.subr.bf16.mxu0 0
        %1661 = vmatpush2.bf16.msra.mxu0 0
        %1662 = vmatprep.subr.bf16.mxu0 0
        %1663 = vmatpush2.bf16.msra.mxu0 0
        %1664 = vmatprep.subr.bf16.mxu0 0
        %1665 = vmatpush2.bf16.msra.mxu0 0
        %1666 = vmatprep.mubr.bf16.mxu0 0
        %1667 = vmatmul.mubr.bf16.gmra.mxu0 %v1626
        %v1668 = vpop.f32.mrf.mxu0
        %v1669 = vadd.f32 0.0, %v1668
        %v1670 = vpop.f32.mrf.mxu0
        %v1671 = vadd.f32 0.0, %v1670
        %v1672 = vpop.f32.mrf.mxu0
        %v1673 = vpop.f32.mrf.mxu0
        %1674 = vdwg.mxu0
        %v1675 = vadd.f32 %v1578, %v1669
        %v1676 = vadd.f32 %v1579, %v1671
        %s1677 = scalar_lea.vmem %s10, 16
        %v1678 = vld [vmem:[%s1677] sm:$0xf]
        %v1681 = vunpack.c.l.b16 %v1295
        %v1682 = vunpack.c.h.b16 %v1295
        %v1683 = vunpack.c.l.b16 %v1324
        %v1684 = vpack.c.b16 %v1681, %v1681
        %v1685 = vpack.c.b16 %v1682, %v1682
        %v1686 = vpack.c.b16 %v1683, %v1683
        %1687 = vrot.lane.b32.xlu0 %v1684, 111
        %v1688 = vpop.permute.xlu0 %1687
        %1689 = vrot.lane.b32.xlu0 %v1685, 111
        %v1690 = vpop.permute.xlu0 %1689
        %1691 = vrot.lane.b32.xlu0 %v1686, 111
        %v1692 = vpop.permute.xlu0 %1691
        %v1693 = vsel %vm828, %v1688, %v1690
        %v1694 = vsel %vm828, %v1690, %v1692
        %v1696 = vsel %vm1370, %v1678, 0
        %v1699 = vsel %vm1374, %v1693, 0
        %v1702 = vsel %vm1374, %v1694, 0
        %1704 = vmatprep.subr.bf16.mxu0 0
        %1705 = vmatpush1.bf16.msra.mxu0 0
        %1706 = vmatprep.subr.bf16.mxu0 0
        %1707 = vmatpush1.bf16.msra.mxu0 0
        %1708 = vmatprep.subr.bf16.mxu0 0
        %1709 = vmatpush1.bf16.msra.mxu0 0
        %1710 = vmatprep.subr.bf16.mxu0 0
        %1711 = vmatpush1.bf16.msra.mxu0 0
        %1712 = vmatprep.subr.bf16.mxu0 0
        %1713 = vmatpush1.bf16.msra.mxu0 0
        %1714 = vmatprep.subr.bf16.mxu0 0
        %1715 = vmatpush1.bf16.msra.mxu0 0
        %1716 = vmatprep.subr.bf16.mxu0 0
        %1717 = vmatpush1.bf16.msra.mxu0 0
        %1718 = vmatprep.subr.bf16.mxu0 %v1702
        %1719 = vmatpush1.bf16.msra.mxu0 %v1699
        %1720 = vmatprep.subr.bf16.mxu0 0
        %1721 = vmatpush2.bf16.msra.mxu0 0
        %1722 = vmatprep.subr.bf16.mxu0 0
        %1723 = vmatpush2.bf16.msra.mxu0 0
        %1724 = vmatprep.subr.bf16.mxu0 0
        %1725 = vmatpush2.bf16.msra.mxu0 0
        %1726 = vmatprep.subr.bf16.mxu0 0
        %1727 = vmatpush2.bf16.msra.mxu0 0
        %1728 = vmatprep.subr.bf16.mxu0 0
        %1729 = vmatpush2.bf16.msra.mxu0 0
        %1730 = vmatprep.subr.bf16.mxu0 0
        %1731 = vmatpush2.bf16.msra.mxu0 0
        %1732 = vmatprep.subr.bf16.mxu0 0
        %1733 = vmatpush2.bf16.msra.mxu0 0
        %1734 = vmatprep.subr.bf16.mxu0 0
        %1735 = vmatpush2.bf16.msra.mxu0 0
        %1736 = vmatprep.mubr.bf16.mxu0 0
        %1737 = vmatmul.mubr.bf16.gmra.mxu0 %v1696
        %v1738 = vpop.f32.mrf.mxu0
        %v1739 = vadd.f32 0.0, %v1738
        %v1740 = vpop.f32.mrf.mxu0
        %v1741 = vadd.f32 0.0, %v1740
        %v1742 = vpop.f32.mrf.mxu0
        %v1743 = vpop.f32.mrf.mxu0
        %1744 = vdwg.mxu0
        %v1745 = vadd.f32 %v1675, %v1739
        %v1746 = vadd.f32 %v1676, %v1741
        %v1747 = vld [vmem:[%s5] sm:$0x44]
        %v1749 = vunpack.c.l.b16 %v1747
        %v1750 = vunpack.c.h.b16 %v1747
        %v1751 = vpack.c.b16 %v1749, %v1749
        %v1752 = vpack.c.b16 %v1750, %v1750
        %v1754 = vshrl.u32 %v1751, 16
        %v1755 = vpack.i.b16 %v1754, %v1754
        %v1757 = vlaneseq
        %v1758 = vshrl.u32 %v1757, 7
        %v1759 = vsub.s32 2, %v1758
        %v1760 = vrot.slane %v1755, %v1759
        %v1762 = vshrl.u32 %v1752, 16
        %v1763 = vpack.i.b16 %v1762, %v1762
        %v1765 = vlaneseq
        %v1766 = vshrl.u32 %v1765, 7
        %v1767 = vsub.s32 2, %v1766
        %v1768 = vrot.slane %v1763, %v1767
        %v1771 = vunpack.c.l.b16 %v1760
        %v1772 = vunpack.c.l.b16 %v1768
        %v1773 = vpack.c.b16 %v1772, %v1771
        %1774 = vrot.lane.b32.xlu0 %v1773, 18
        %v1775 = vpop.permute.xlu0 %1774
        %v1776 = vrot.slane %v1775, 4
        %v1777 = vsel %vm873, %v1776, %v1775
        %v1780 = vmul.bf16 %v1295, %v1777
        %v1781 = vmul.bf16 %v1324, %v1776
        %s1782 = scalar_lea.vmem %s10, 20
        %v1783 = vld [vmem:[%s1782] sm:$0xf]
        %v1786 = vunpack.c.l.b16 %v1780
        %v1787 = vunpack.c.h.b16 %v1780
        %v1788 = vunpack.c.l.b16 %v1781
        %v1789 = vpack.c.b16 %v1786, %v1786
        %v1790 = vpack.c.b16 %v1787, %v1787
        %v1791 = vpack.c.b16 %v1788, %v1788
        %1792 = vrot.lane.b32.xlu0 %v1789, 110
        %v1793 = vpop.permute.xlu0 %1792
        %1794 = vrot.lane.b32.xlu0 %v1790, 110
        %v1795 = vpop.permute.xlu0 %1794
        %1796 = vrot.lane.b32.xlu0 %v1791, 110
        %v1797 = vpop.permute.xlu0 %1796
        %v1798 = vsel %vm910, %v1793, %v1795
        %v1799 = vsel %vm910, %v1795, %v1797
        %v1801 = vsel %vm1370, %v1783, 0
        %v1804 = vsel %vm1374, %v1798, 0
        %v1807 = vsel %vm1374, %v1799, 0
        %1809 = vmatprep.subr.bf16.mxu0 0
        %1810 = vmatpush1.bf16.msra.mxu0 0
        %1811 = vmatprep.subr.bf16.mxu0 0
        %1812 = vmatpush1.bf16.msra.mxu0 0
        %1813 = vmatprep.subr.bf16.mxu0 0
        %1814 = vmatpush1.bf16.msra.mxu0 0
        %1815 = vmatprep.subr.bf16.mxu0 0
        %1816 = vmatpush1.bf16.msra.mxu0 0
        %1817 = vmatprep.subr.bf16.mxu0 0
        %1818 = vmatpush1.bf16.msra.mxu0 0
        %1819 = vmatprep.subr.bf16.mxu0 0
        %1820 = vmatpush1.bf16.msra.mxu0 0
        %1821 = vmatprep.subr.bf16.mxu0 0
        %1822 = vmatpush1.bf16.msra.mxu0 0
        %1823 = vmatprep.subr.bf16.mxu0 %v1807
        %1824 = vmatpush1.bf16.msra.mxu0 %v1804
        %1825 = vmatprep.subr.bf16.mxu0 0
        %1826 = vmatpush2.bf16.msra.mxu0 0
        %1827 = vmatprep.subr.bf16.mxu0 0
        %1828 = vmatpush2.bf16.msra.mxu0 0
        %1829 = vmatprep.subr.bf16.mxu0 0
        %1830 = vmatpush2.bf16.msra.mxu0 0
        %1831 = vmatprep.subr.bf16.mxu0 0
        %1832 = vmatpush2.bf16.msra.mxu0 0
        %1833 = vmatprep.subr.bf16.mxu0 0
        %1834 = vmatpush2.bf16.msra.mxu0 0
        %1835 = vmatprep.subr.bf16.mxu0 0
        %1836 = vmatpush2.bf16.msra.mxu0 0
        %1837 = vmatprep.subr.bf16.mxu0 0
        %1838 = vmatpush2.bf16.msra.mxu0 0
        %1839 = vmatprep.subr.bf16.mxu0 0
        %1840 = vmatpush2.bf16.msra.mxu0 0
        %1841 = vmatprep.mubr.bf16.mxu0 0
        %1842 = vmatmul.mubr.bf16.gmra.mxu0 %v1801
        %v1843 = vpop.f32.mrf.mxu0
        %v1844 = vadd.f32 0.0, %v1843
        %v1845 = vpop.f32.mrf.mxu0
        %v1846 = vadd.f32 0.0, %v1845
        %v1847 = vpop.f32.mrf.mxu0
        %v1848 = vpop.f32.mrf.mxu0
        %1849 = vdwg.mxu0
        %v1850 = vadd.f32 %v1745, %v1844
        %v1851 = vadd.f32 %v1746, %v1846
        %v1852 = vld [vmem:[%s5] sm:$0x88]
        %v1854 = vunpack.c.l.b16 %v1852
        %v1855 = vunpack.c.h.b16 %v1852
        %v1856 = vpack.c.b16 %v1854, %v1854
        %v1857 = vpack.c.b16 %v1855, %v1855
        %v1859 = vpack.i.b16 %v1856, %v1856
        %v1861 = vlaneseq
        %v1862 = vshrl.u32 %v1861, 7
        %v1863 = vsub.s32 3, %v1862
        %v1864 = vrot.slane %v1859, %v1863
        %v1866 = vpack.i.b16 %v1857, %v1857
        %v1868 = vlaneseq
        %v1869 = vshrl.u32 %v1868, 7
        %v1870 = vsub.s32 3, %v1869
        %v1871 = vrot.slane %v1866, %v1870
        %v1874 = vunpack.c.l.b16 %v1864
        %v1875 = vunpack.c.l.b16 %v1871
        %v1876 = vpack.c.b16 %v1875, %v1874
        %1877 = vrot.lane.b32.xlu0 %v1876, 32
        %v1878 = vpop.permute.xlu0 %1877
        %v1879 = vrot.slane %v1878, 4
        %v1880 = vsel %vm957, %v1879, %v1878
        %v1883 = vmul.bf16 %v1295, %v1880
        %v1884 = vmul.bf16 %v1324, %v1879
        %s1885 = scalar_lea.vmem %s10, 24
        %v1886 = vld [vmem:[%s1885] sm:$0xf]
        %v1889 = vunpack.c.l.b16 %v1883
        %v1890 = vunpack.c.h.b16 %v1883
        %v1891 = vunpack.c.l.b16 %v1884
        %v1892 = vpack.c.b16 %v1889, %v1889
        %v1893 = vpack.c.b16 %v1890, %v1890
        %v1894 = vpack.c.b16 %v1891, %v1891
        %1895 = vrot.lane.b32.xlu0 %v1892, 96
        %v1896 = vpop.permute.xlu0 %1895
        %1897 = vrot.lane.b32.xlu0 %v1893, 96
        %v1898 = vpop.permute.xlu0 %1897
        %1899 = vrot.lane.b32.xlu0 %v1894, 96
        %v1900 = vpop.permute.xlu0 %1899
        %v1901 = vsel %vm974, %v1896, %v1898
        %v1902 = vsel %vm974, %v1898, %v1900
        %v1904 = vsel %vm1370, %v1886, 0
        %v1907 = vsel %vm1374, %v1901, 0
        %v1910 = vsel %vm1374, %v1902, 0
        %1912 = vmatprep.subr.bf16.mxu0 0
        %1913 = vmatpush1.bf16.msra.mxu0 0
        %1914 = vmatprep.subr.bf16.mxu0 0
        %1915 = vmatpush1.bf16.msra.mxu0 0
        %1916 = vmatprep.subr.bf16.mxu0 0
        %1917 = vmatpush1.bf16.msra.mxu0 0
        %1918 = vmatprep.subr.bf16.mxu0 0
        %1919 = vmatpush1.bf16.msra.mxu0 0
        %1920 = vmatprep.subr.bf16.mxu0 0
        %1921 = vmatpush1.bf16.msra.mxu0 0
        %1922 = vmatprep.subr.bf16.mxu0 0
        %1923 = vmatpush1.bf16.msra.mxu0 0
        %1924 = vmatprep.subr.bf16.mxu0 0
        %1925 = vmatpush1.bf16.msra.mxu0 0
        %1926 = vmatprep.subr.bf16.mxu0 %v1910
        %1927 = vmatpush1.bf16.msra.mxu0 %v1907
        %1928 = vmatprep.subr.bf16.mxu0 0
        %1929 = vmatpush2.bf16.msra.mxu0 0
        %1930 = vmatprep.subr.bf16.mxu0 0
        %1931 = vmatpush2.bf16.msra.mxu0 0
        %1932 = vmatprep.subr.bf16.mxu0 0
        %1933 = vmatpush2.bf16.msra.mxu0 0
        %1934 = vmatprep.subr.bf16.mxu0 0
        %1935 = vmatpush2.bf16.msra.mxu0 0
        %1936 = vmatprep.subr.bf16.mxu0 0
        %1937 = vmatpush2.bf16.msra.mxu0 0
        %1938 = vmatprep.subr.bf16.mxu0 0
        %1939 = vmatpush2.bf16.msra.mxu0 0
        %1940 = vmatprep.subr.bf16.mxu0 0
        %1941 = vmatpush2.bf16.msra.mxu0 0
        %1942 = vmatprep.subr.bf16.mxu0 0
        %1943 = vmatpush2.bf16.msra.mxu0 0
        %1944 = vmatprep.mubr.bf16.mxu0 0
        %1945 = vmatmul.mubr.bf16.gmra.mxu0 %v1904
        %v1946 = vpop.f32.mrf.mxu0
        %v1947 = vadd.f32 0.0, %v1946
        %v1948 = vpop.f32.mrf.mxu0
        %v1949 = vadd.f32 0.0, %v1948
        %v1950 = vpop.f32.mrf.mxu0
        %v1951 = vpop.f32.mrf.mxu0
        %1952 = vdwg.mxu0
        %v1953 = vadd.f32 %v1850, %v1947
        %v1954 = vadd.f32 %v1851, %v1949
        %v1955 = vshrl.u32 %v1856, 16
        %v1956 = vpack.i.b16 %v1955, %v1955
        %v1958 = vlaneseq
        %v1959 = vshrl.u32 %v1958, 7
        %v1960 = vsub.s32 3, %v1959
        %v1961 = vrot.slane %v1956, %v1960
        %v1962 = vshrl.u32 %v1857, 16
        %v1963 = vpack.i.b16 %v1962, %v1962
        %v1965 = vlaneseq
        %v1966 = vshrl.u32 %v1965, 7
        %v1967 = vsub.s32 3, %v1966
        %v1968 = vrot.slane %v1963, %v1967
        %v1971 = vunpack.c.l.b16 %v1961
        %v1972 = vunpack.c.l.b16 %v1968
        %v1973 = vpack.c.b16 %v1972, %v1971
        %1974 = vrot.lane.b32.xlu0 %v1973, 33
        %v1975 = vpop.permute.xlu0 %1974
        %v1976 = vrot.slane %v1975, 4
        %v1977 = vsel %vm1017, %v1976, %v1975
        %v1980 = vmul.bf16 %v1295, %v1977
        %v1981 = vmul.bf16 %v1324, %v1976
        %s1982 = scalar_lea.vmem %s10, 28
        %v1983 = vld [vmem:[%s1982] sm:$0xf]
        %v1986 = vunpack.c.l.b16 %v1980
        %v1987 = vunpack.c.h.b16 %v1980
        %v1988 = vunpack.c.l.b16 %v1981
        %v1989 = vpack.c.b16 %v1986, %v1986
        %v1990 = vpack.c.b16 %v1987, %v1987
        %v1991 = vpack.c.b16 %v1988, %v1988
        %1992 = vrot.lane.b32.xlu0 %v1989, 95
        %v1993 = vpop.permute.xlu0 %1992
        %1994 = vrot.lane.b32.xlu0 %v1990, 95
        %v1995 = vpop.permute.xlu0 %1994
        %1996 = vrot.lane.b32.xlu0 %v1991, 95
        %v1997 = vpop.permute.xlu0 %1996
        %v1998 = vsel %vm1046, %v1993, %v1995
        %v1999 = vsel %vm1046, %v1995, %v1997
        %v2001 = vsel %vm1370, %v1983, 0
        %v2004 = vsel %vm1374, %v1998, 0
        %v2007 = vsel %vm1374, %v1999, 0
        %2009 = vmatprep.subr.bf16.mxu0 0
        %2010 = vmatpush1.bf16.msra.mxu0 0
        %2011 = vmatprep.subr.bf16.mxu0 0
        %2012 = vmatpush1.bf16.msra.mxu0 0
        %2013 = vmatprep.subr.bf16.mxu0 0
        %2014 = vmatpush1.bf16.msra.mxu0 0
        %2015 = vmatprep.subr.bf16.mxu0 0
        %2016 = vmatpush1.bf16.msra.mxu0 0
        %2017 = vmatprep.subr.bf16.mxu0 0
        %2018 = vmatpush1.bf16.msra.mxu0 0
        %2019 = vmatprep.subr.bf16.mxu0 0
        %2020 = vmatpush1.bf16.msra.mxu0 0
        %2021 = vmatprep.subr.bf16.mxu0 0
        %2022 = vmatpush1.bf16.msra.mxu0 0
        %2023 = vmatprep.subr.bf16.mxu0 %v2007
        %2024 = vmatpush1.bf16.msra.mxu0 %v2004
        %2025 = vmatprep.subr.bf16.mxu0 0
        %2026 = vmatpush2.bf16.msra.mxu0 0
        %2027 = vmatprep.subr.bf16.mxu0 0
        %2028 = vmatpush2.bf16.msra.mxu0 0
        %2029 = vmatprep.subr.bf16.mxu0 0
        %2030 = vmatpush2.bf16.msra.mxu0 0
        %2031 = vmatprep.subr.bf16.mxu0 0
        %2032 = vmatpush2.bf16.msra.mxu0 0
        %2033 = vmatprep.subr.bf16.mxu0 0
        %2034 = vmatpush2.bf16.msra.mxu0 0
        %2035 = vmatprep.subr.bf16.mxu0 0
        %2036 = vmatpush2.bf16.msra.mxu0 0
        %2037 = vmatprep.subr.bf16.mxu0 0
        %2038 = vmatpush2.bf16.msra.mxu0 0
        %2039 = vmatprep.subr.bf16.mxu0 0
        %2040 = vmatpush2.bf16.msra.mxu0 0
        %2041 = vmatprep.mubr.bf16.mxu0 0
        %2042 = vmatmul.mubr.bf16.gmra.mxu0 %v2001
        %v2043 = vpop.f32.mrf.mxu0
        %v2044 = vadd.f32 0.0, %v2043
        %v2045 = vpop.f32.mrf.mxu0
        %v2046 = vadd.f32 0.0, %v2045
        %v2047 = vpop.f32.mrf.mxu0
        %v2048 = vpop.f32.mrf.mxu0
        %2049 = vdwg.mxu0
        %v2050 = vadd.f32 %v1953, %v2044
        %v2051 = vadd.f32 %v1954, %v2046
        %v2052 = vld [vmem:[%s5 + $0x8] sm:$0x11]
        %v2054 = vunpack.c.l.b16 %v2052
        %v2055 = vunpack.c.h.b16 %v2052
        %v2056 = vpack.c.b16 %v2054, %v2054
        %v2057 = vpack.c.b16 %v2055, %v2055
        %v2059 = vpack.i.b16 %v2056, %v2056
        %v2061 = vlaneseq
        %v2062 = vshrl.u32 %v2061, 7
        %v2063 = vsub.s32 0, %v2062
        %v2064 = vrot.slane %v2059, %v2063
        %v2066 = vpack.i.b16 %v2057, %v2057
        %v2068 = vlaneseq
        %v2069 = vshrl.u32 %v2068, 7
        %v2070 = vsub.s32 0, %v2069
        %v2071 = vrot.slane %v2066, %v2070
        %v2074 = vunpack.c.l.b16 %v2064
        %v2075 = vunpack.c.l.b16 %v2071
        %v2076 = vpack.c.b16 %v2075, %v2074
        %2077 = vrot.lane.b32.xlu0 %v2076, 34
        %v2078 = vpop.permute.xlu0 %2077
        %v2079 = vrot.slane %v2078, 4
        %v2080 = vsel %vm1087, %v2079, %v2078
        %v2083 = vmul.bf16 %v1295, %v2080
        %v2084 = vmul.bf16 %v1324, %v2079
        %s2085 = scalar_lea.vmem %s10, 32
        %v2086 = vld [vmem:[%s2085] sm:$0xf]
        %v2089 = vunpack.c.l.b16 %v2083
        %v2090 = vunpack.c.h.b16 %v2083
        %v2091 = vunpack.c.l.b16 %v2084
        %v2092 = vpack.c.b16 %v2089, %v2089
        %v2093 = vpack.c.b16 %v2090, %v2090
        %v2094 = vpack.c.b16 %v2091, %v2091
        %2095 = vrot.lane.b32.xlu0 %v2092, 94
        %v2096 = vpop.permute.xlu0 %2095
        %2097 = vrot.lane.b32.xlu0 %v2093, 94
        %v2098 = vpop.permute.xlu0 %2097
        %2099 = vrot.lane.b32.xlu0 %v2094, 94
        %v2100 = vpop.permute.xlu0 %2099
        %v2101 = vsel %vm1102, %v2096, %v2098
        %v2102 = vsel %vm1102, %v2098, %v2100
        %v2104 = vsel %vm1370, %v2086, 0
        %v2107 = vsel %vm1374, %v2101, 0
        %v2110 = vsel %vm1374, %v2102, 0
        %2112 = vmatprep.subr.bf16.mxu0 0
        %2113 = vmatpush1.bf16.msra.mxu0 0
        %2114 = vmatprep.subr.bf16.mxu0 0
        %2115 = vmatpush1.bf16.msra.mxu0 0
        %2116 = vmatprep.subr.bf16.mxu0 0
        %2117 = vmatpush1.bf16.msra.mxu0 0
        %2118 = vmatprep.subr.bf16.mxu0 0
        %2119 = vmatpush1.bf16.msra.mxu0 0
        %2120 = vmatprep.subr.bf16.mxu0 0
        %2121 = vmatpush1.bf16.msra.mxu0 0
        %2122 = vmatprep.subr.bf16.mxu0 0
        %2123 = vmatpush1.bf16.msra.mxu0 0
        %2124 = vmatprep.subr.bf16.mxu0 0
        %2125 = vmatpush1.bf16.msra.mxu0 0
        %2126 = vmatprep.subr.bf16.mxu0 %v2110
        %2127 = vmatpush1.bf16.msra.mxu0 %v2107
        %2128 = vmatprep.subr.bf16.mxu0 0
        %2129 = vmatpush2.bf16.msra.mxu0 0
        %2130 = vmatprep.subr.bf16.mxu0 0
        %2131 = vmatpush2.bf16.msra.mxu0 0
        %2132 = vmatprep.subr.bf16.mxu0 0
        %2133 = vmatpush2.bf16.msra.mxu0 0
        %2134 = vmatprep.subr.bf16.mxu0 0
        %2135 = vmatpush2.bf16.msra.mxu0 0
        %2136 = vmatprep.subr.bf16.mxu0 0
        %2137 = vmatpush2.bf16.msra.mxu0 0
        %2138 = vmatprep.subr.bf16.mxu0 0
        %2139 = vmatpush2.bf16.msra.mxu0 0
        %2140 = vmatprep.subr.bf16.mxu0 0
        %2141 = vmatpush2.bf16.msra.mxu0 0
        %2142 = vmatprep.subr.bf16.mxu0 0
        %2143 = vmatpush2.bf16.msra.mxu0 0
        %2144 = vmatprep.mubr.bf16.mxu0 0
        %2145 = vmatmul.mubr.bf16.gmra.mxu0 %v2104
        %v2146 = vpop.f32.mrf.mxu0
        %v2147 = vadd.f32 0.0, %v2146
        %v2148 = vpop.f32.mrf.mxu0
        %v2149 = vadd.f32 0.0, %v2148
        %v2150 = vpop.f32.mrf.mxu0
        %v2151 = vpop.f32.mrf.mxu0
        %2152 = vdwg.mxu0
        %v2153 = vadd.f32 %v2050, %v2147
        %v2154 = vadd.f32 %v2051, %v2149
        %v2155 = vld [vmem:[%s11] sm:$0xff]
        %2157 = vset.pattern.permute.xlu0 0
        %2158 = vperm.xlu0 %2157, %v2155
        %v2159 = vpop.permute.xlu0 %2158
        %v2161 = vadd.f32 %v2153, %v2159
        %v2162 = vadd.f32 %v2154, %v2159
        %v2163 = vld [vmem:[%s8] sm:$0xf]
        %v2164 = vld [vmem:[%s8 + $0x4] sm:$0xf]
        %v2165 = vld [vmem:[#allocation3] sm:$0xff]
        %v2166 = vld [vmem:[#allocation3 + $0x8] sm:$0xff]
        %v2167 = vld [vmem:[#allocation3 + $0x10] sm:$0xff]
        %v2168 = vld [vmem:[#allocation3 + $0x18] sm:$0x33]
        %v2169 = vld [vmem:[%s9] sm:$0xff]
        %v2170 = vld [vmem:[%s9 + $0x8] sm:$0xff]
        %2172 = vset.pattern.permute.xlu0 0
        %2173 = vperm.xlu0 %2172, %v2169
        %v2174 = vpop.permute.xlu0 %2173
        %2177 = vset.pattern.permute.xlu0 0
        %2178 = vperm.xlu0 %2177, %v2170
        %v2179 = vpop.permute.xlu0 %2178
        %v2183 = vunpack.c.l.b16 %v2163
        %v2184 = vunpack.c.l.b16 %v2164
        %v2185 = vpack.c.b16 %v2184, %v2183
        %v2190 = vunpack.c.l.b16 %v2165
        %v2191 = vunpack.c.h.b16 %v2165
        %v2192 = vunpack.c.l.b16 %v2166
        %v2193 = vunpack.c.h.b16 %v2166
        %v2194 = vunpack.c.l.b16 %v2167
        %v2195 = vunpack.c.h.b16 %v2167
        %v2196 = vunpack.c.l.b16 %v2168
        %v2197 = vunpack.c.h.b16 %v2168
        %v2198 = vpack.c.b16 %v2192, %v2190
        %v2199 = vpack.c.b16 %v2193, %v2191
        %v2200 = vpack.c.b16 %v2196, %v2194
        %v2201 = vpack.c.b16 %v2197, %v2195
        %v2205 = vsel %vm1137, %v2185, 0
        %v2208 = vand.u32 %v2200, %v1144
        %v2211 = vand.u32 %v2201, %v1144
        %2213 = vmatprep.subr.bf16.mxu0 0
        %2214 = vmatpush1.bf16.msra.mxu0 0
        %2215 = vmatprep.subr.bf16.mxu0 0
        %2216 = vmatpush1.bf16.msra.mxu0 0
        %2217 = vmatprep.subr.bf16.mxu0 0
        %2218 = vmatpush1.bf16.msra.mxu0 0
        %2219 = vmatprep.subr.bf16.mxu0 0
        %2220 = vmatpush1.bf16.msra.mxu0 0
        %2221 = vmatprep.subr.bf16.mxu0 0
        %2222 = vmatpush1.bf16.msra.mxu0 0
        %2223 = vmatprep.subr.bf16.mxu0 0
        %2224 = vmatpush1.bf16.msra.mxu0 0
        %2225 = vmatprep.subr.bf16.mxu0 %v2211
        %2226 = vmatpush1.bf16.msra.mxu0 %v2208
        %2227 = vmatprep.subr.bf16.mxu0 %v2199
        %2228 = vmatpush1.bf16.msra.mxu0 %v2198
        %2229 = vmatprep.subr.bf16.mxu0 0
        %2230 = vmatpush2.bf16.msra.mxu0 0
        %2231 = vmatprep.subr.bf16.mxu0 0
        %2232 = vmatpush2.bf16.msra.mxu0 0
        %2233 = vmatprep.subr.bf16.mxu0 0
        %2234 = vmatpush2.bf16.msra.mxu0 0
        %2235 = vmatprep.subr.bf16.mxu0 0
        %2236 = vmatpush2.bf16.msra.mxu0 0
        %2237 = vmatprep.subr.bf16.mxu0 0
        %2238 = vmatpush2.bf16.msra.mxu0 0
        %2239 = vmatprep.subr.bf16.mxu0 0
        %2240 = vmatpush2.bf16.msra.mxu0 0
        %2241 = vmatprep.subr.bf16.mxu0 0
        %2242 = vmatpush2.bf16.msra.mxu0 0
        %2243 = vmatprep.subr.bf16.mxu0 0
        %2244 = vmatpush2.bf16.msra.mxu0 0
        %2245 = vmatprep.mubr.bf16.mxu0 0
        %2246 = vmatmul.mubr.bf16.gmra.mxu0 %v2205
        %v2247 = vpop.f32.mrf.mxu0
        %v2248 = vadd.f32 %v2174, %v2247
        %v2249 = vpop.f32.mrf.mxu0
        %v2250 = vadd.f32 %v2174, %v2249
        %v2251 = vpop.f32.mrf.mxu0
        %v2252 = vadd.f32 %v2179, %v2251
        %v2253 = vpop.f32.mrf.mxu0
        %v2254 = vadd.f32 %v2179, %v2253
        %2255 = vdwg.mxu0
        %v2256 = vld [vmem:[%s522] sm:$0xff]
        %v2257 = vld [vmem:[%s522 + $0x8] sm:$0xff]
        %v2258 = vmul.f32 %v1198, %v2161
        %v2259 = vmul.f32 %v1202, %v2162
        %v2260 = vadd.f32 %v2258, %v2259
        %2261 = vadd.xlane.f32.xlu0 %v2260
        %v2262 = vpop.xlane.xlu0 %2261
        %v2263 = vmul.f32 %v2262, 0.00390625
        %v2264 = vsub.f32 %v2258, %v2263
        %v2265 = vsub.f32 %v2259, %v2263
        %v2266 = vmul.f32 %v2264, %v2264
        %v2267 = vmul.f32 %v2265, %v2265
        %v2268 = vadd.f32 %v2266, %v2267
        %2269 = vadd.xlane.f32.xlu0 %v2268
        %v2270 = vpop.xlane.xlu0 %2269
        %v2271 = vmul.f32 %v2270, 0.00390625
        %v2272 = vadd.f32 %v2271, 1e-05
        %v2273 = vrsqrt.pop %v2272
        %v2274 = vmul.f32 %v2264, %v2273
        %v2275 = vmul.f32 %v2265, %v2273
        %2277 = vset.pattern.permute.xlu0 0
        %2278 = vperm.xlu0 %2277, %v2256
        %v2279 = vpop.permute.xlu0 %2278
        %v2281 = vmul.f32 %v2279, %v2274
        %v2282 = vmul.f32 %v2279, %v2275
        %2284 = vset.pattern.permute.xlu0 0
        %2285 = vperm.xlu0 %2284, %v2257
        %v2286 = vpop.permute.xlu0 %2285
        %v2288 = vadd.f32 %v2281, %v2286
        %v2289 = vadd.f32 %v2282, %v2286
        %v2290 = vmul.f32 %v2288, %v2248
        %v2291 = vmul.f32 %v2289, %v2250
        %v2292 = vadd.f32 %v2290, %v2252
        %v2293 = vadd.f32 %v2291, %v2254
        %v2294 = vmul.f32 %v1259, %v2161
        %v2295 = vmul.f32 %v1263, %v2162
        %v2296 = vmul.f32 %v1198, %v2292
        %v2297 = vmul.f32 %v1202, %v2293
        %v2298 = vadd.f32 %v2294, %v2296
        %v2299 = vadd.f32 %v2295, %v2297
        %v2300 = vmul.f32 %v2298, 0.2
        %v2301 = vmul.f32 %v2299, 0.2
        %v2302 = vmax.f32 %v2298, %v2300
        %v2303 = vmax.f32 %v2299, %v2301
        %v2304 = vpack.c.bf16 %v2302, %v2302
        %v2305 = vpack.c.bf16 %v2303, %v2303
        %v2308 = vunpack.c.l.b16 %v2304
        %v2309 = vunpack.c.l.b16 %v2305
        %v2310 = vpack.c.b16 %v2309, %v2308
        %2311 = vrot.lane.b32.xlu0 %v2310, 17
        %v2312 = vpop.permute.xlu0 %2311
        %v2313 = vrot.slane %v2312, 4
        %v2314 = vsel %vm545, %v2313, %v2312
        %vm2317 = vcmask 1043592
        %vm2318 = vcmask 1047556
        %vm2319 = vmor %vm2318, %vm2317
        %2320 = vst.msk [vmem:[#allocation2] sm:$0xff] %vm2319, %v2314
        %2321 = vst.msk [vmem:[#allocation2 + $0x8] sm:$0xf] %vm527, %v2313
        %v2322 = vld [vmem:[#allocation2] sm:$0xff]
        %v2323 = vld [vmem:[%s5] sm:$0x11]
        %v2325 = vunpack.c.l.b16 %v2323
        %v2326 = vunpack.c.h.b16 %v2323
        %v2327 = vpack.c.b16 %v2325, %v2325
        %v2328 = vpack.c.b16 %v2326, %v2326
        %v2330 = vpack.i.b16 %v2327, %v2327
        %v2332 = vlaneseq
        %v2333 = vshrl.u32 %v2332, 7
        %v2334 = vsub.s32 0, %v2333
        %v2335 = vrot.slane %v2330, %v2334
        %v2337 = vpack.i.b16 %v2328, %v2328
        %v2339 = vlaneseq
        %v2340 = vshrl.u32 %v2339, 7
        %v2341 = vsub.s32 0, %v2340
        %v2342 = vrot.slane %v2337, %v2341
        %v2345 = vunpack.c.l.b16 %v2335
        %v2346 = vunpack.c.l.b16 %v2342
        %v2347 = vpack.c.b16 %v2346, %v2345
        %v2349 = vmul.bf16 %v2322, %v2347
        %v2350 = vld [vmem:[%s12] sm:$0xf]
        %v2351 = vld [vmem:[#allocation2 + $0x8] sm:$0xf]
        %v2352 = vshrl.u32 %v2327, 16
        %v2353 = vpack.i.b16 %v2352, %v2352
        %v2355 = vlaneseq
        %v2356 = vshrl.u32 %v2355, 7
        %v2357 = vsub.s32 0, %v2356
        %v2358 = vrot.slane %v2353, %v2357
        %v2359 = vshrl.u32 %v2328, 16
        %v2360 = vpack.i.b16 %v2359, %v2359
        %v2362 = vlaneseq
        %v2363 = vshrl.u32 %v2362, 7
        %v2364 = vsub.s32 0, %v2363
        %v2365 = vrot.slane %v2360, %v2364
        %v2368 = vunpack.c.l.b16 %v2358
        %v2369 = vunpack.c.l.b16 %v2365
        %v2370 = vpack.c.b16 %v2369, %v2368
        %2371 = vrot.lane.b32.xlu0 %v2370, 1
        %v2372 = vpop.permute.xlu0 %2371
        %v2373 = vrot.slane %v2372, 4
        %v2374 = vsel %vm630, %v2373, %v2372
        %v2377 = vmul.bf16 %v2322, %v2374
        %v2378 = vmul.bf16 %v2351, %v2373
        %s2379 = scalar_lea.vmem %s12, 4
        %v2380 = vld [vmem:[%s2379] sm:$0xf]
        %v2383 = vunpack.c.l.b16 %v2377
        %v2384 = vunpack.c.h.b16 %v2377
        %v2385 = vunpack.c.l.b16 %v2378
        %v2386 = vpack.c.b16 %v2383, %v2383
        %v2387 = vpack.c.b16 %v2384, %v2384
        %v2388 = vpack.c.b16 %v2385, %v2385
        %2389 = vrot.lane.b32.xlu0 %v2386, 127
        %v2390 = vpop.permute.xlu0 %2389
        %2391 = vrot.lane.b32.xlu0 %v2387, 127
        %v2392 = vpop.permute.xlu0 %2391
        %2393 = vrot.lane.b32.xlu0 %v2388, 127
        %v2394 = vpop.permute.xlu0 %2393
        %v2395 = vsel %vm660, %v2390, %v2392
        %v2396 = vsel %vm660, %v2392, %v2394
        %vm2397 = vcmask 64512
        %v2399 = vsel %vm2397, %v2380, 0
        %v2402 = vsel %vm1210, %v2395, 0
        %v2405 = vsel %vm1210, %v2396, 0
        %2407 = vmatprep.subr.bf16.mxu0 0
        %2408 = vmatpush1.bf16.msra.mxu0 0
        %2409 = vmatprep.subr.bf16.mxu0 0
        %2410 = vmatpush1.bf16.msra.mxu0 0
        %2411 = vmatprep.subr.bf16.mxu0 0
        %2412 = vmatpush1.bf16.msra.mxu0 0
        %2413 = vmatprep.subr.bf16.mxu0 0
        %2414 = vmatpush1.bf16.msra.mxu0 0
        %2415 = vmatprep.subr.bf16.mxu0 0
        %2416 = vmatpush1.bf16.msra.mxu0 0
        %2417 = vmatprep.subr.bf16.mxu0 0
        %2418 = vmatpush1.bf16.msra.mxu0 0
        %2419 = vmatprep.subr.bf16.mxu0 0
        %2420 = vmatpush1.bf16.msra.mxu0 0
        %2421 = vmatprep.subr.bf16.mxu0 %v2405
        %2422 = vmatpush1.bf16.msra.mxu0 %v2402
        %2423 = vmatprep.subr.bf16.mxu0 0
        %2424 = vmatpush2.bf16.msra.mxu0 0
        %2425 = vmatprep.subr.bf16.mxu0 0
        %2426 = vmatpush2.bf16.msra.mxu0 0
        %2427 = vmatprep.subr.bf16.mxu0 0
        %2428 = vmatpush2.bf16.msra.mxu0 0
        %2429 = vmatprep.subr.bf16.mxu0 0
        %2430 = vmatpush2.bf16.msra.mxu0 0
        %2431 = vmatprep.subr.bf16.mxu0 0
        %2432 = vmatpush2.bf16.msra.mxu0 0
        %2433 = vmatprep.subr.bf16.mxu0 0
        %2434 = vmatpush2.bf16.msra.mxu0 0
        %2435 = vmatprep.subr.bf16.mxu0 0
        %2436 = vmatpush2.bf16.msra.mxu0 0
        %2437 = vmatprep.subr.bf16.mxu0 0
        %2438 = vmatpush2.bf16.msra.mxu0 0
        %2439 = vmatprep.mubr.bf16.mxu0 0
        %2440 = vmatmul.mubr.bf16.gmra.mxu0 %v2399
        %v2441 = vpop.f32.mrf.mxu0
        %v2442 = vadd.f32 0.0, %v2441
        %v2443 = vpop.f32.mrf.mxu0
        %v2444 = vadd.f32 0.0, %v2443
        %v2445 = vpop.f32.mrf.mxu0
        %v2446 = vpop.f32.mrf.mxu0
        %2447 = vdwg.mxu0
        %v2449 = vunpack.c.l.b16 %v2349
        %v2450 = vunpack.c.h.b16 %v2349
        %v2451 = vpack.c.b16 %v2449, %v2449
        %v2452 = vpack.c.b16 %v2450, %v2450
        %v2454 = vsel %vm2397, %v2350, 0
        %v2457 = vsel %vm1210, %v2451, 0
        %v2460 = vsel %vm1210, %v2452, 0
        %2462 = vmatprep.subr.bf16.mxu0 0
        %2463 = vmatpush1.bf16.msra.mxu0 0
        %2464 = vmatprep.subr.bf16.mxu0 0
        %2465 = vmatpush1.bf16.msra.mxu0 0
        %2466 = vmatprep.subr.bf16.mxu0 0
        %2467 = vmatpush1.bf16.msra.mxu0 0
        %2468 = vmatprep.subr.bf16.mxu0 0
        %2469 = vmatpush1.bf16.msra.mxu0 0
        %2470 = vmatprep.subr.bf16.mxu0 0
        %2471 = vmatpush1.bf16.msra.mxu0 0
        %2472 = vmatprep.subr.bf16.mxu0 0
        %2473 = vmatpush1.bf16.msra.mxu0 0
        %2474 = vmatprep.subr.bf16.mxu0 0
        %2475 = vmatpush1.bf16.msra.mxu0 0
        %2476 = vmatprep.subr.bf16.mxu0 %v2460
        %2477 = vmatpush1.bf16.msra.mxu0 %v2457
        %2478 = vmatprep.subr.bf16.mxu0 0
        %2479 = vmatpush2.bf16.msra.mxu0 0
        %2480 = vmatprep.subr.bf16.mxu0 0
        %2481 = vmatpush2.bf16.msra.mxu0 0
        %2482 = vmatprep.subr.bf16.mxu0 0
        %2483 = vmatpush2.bf16.msra.mxu0 0
        %2484 = vmatprep.subr.bf16.mxu0 0
        %2485 = vmatpush2.bf16.msra.mxu0 0
        %2486 = vmatprep.subr.bf16.mxu0 0
        %2487 = vmatpush2.bf16.msra.mxu0 0
        %2488 = vmatprep.subr.bf16.mxu0 0
        %2489 = vmatpush2.bf16.msra.mxu0 0
        %2490 = vmatprep.subr.bf16.mxu0 0
        %2491 = vmatpush2.bf16.msra.mxu0 0
        %2492 = vmatprep.subr.bf16.mxu0 0
        %2493 = vmatpush2.bf16.msra.mxu0 0
        %2494 = vmatprep.mubr.bf16.mxu0 0
        %2495 = vmatmul.mubr.bf16.gmra.mxu0 %v2454
        %v2496 = vpop.f32.mrf.mxu0
        %v2497 = vadd.f32 %v2442, %v2496
        %v2498 = vpop.f32.mrf.mxu0
        %v2499 = vadd.f32 %v2444, %v2498
        %v2500 = vpop.f32.mrf.mxu0
        %v2501 = vpop.f32.mrf.mxu0
        %2502 = vdwg.mxu0
        %v2503 = vld [vmem:[%s5] sm:$0x22]
        %v2505 = vunpack.c.l.b16 %v2503
        %v2506 = vunpack.c.h.b16 %v2503
        %v2507 = vpack.c.b16 %v2505, %v2505
        %v2508 = vpack.c.b16 %v2506, %v2506
        %v2510 = vpack.i.b16 %v2507, %v2507
        %v2512 = vlaneseq
        %v2513 = vshrl.u32 %v2512, 7
        %v2514 = vsub.s32 1, %v2513
        %v2515 = vrot.slane %v2510, %v2514
        %v2517 = vpack.i.b16 %v2508, %v2508
        %v2519 = vlaneseq
        %v2520 = vshrl.u32 %v2519, 7
        %v2521 = vsub.s32 1, %v2520
        %v2522 = vrot.slane %v2517, %v2521
        %v2525 = vunpack.c.l.b16 %v2515
        %v2526 = vunpack.c.l.b16 %v2522
        %v2527 = vpack.c.b16 %v2526, %v2525
        %2528 = vrot.lane.b32.xlu0 %v2527, 2
        %v2529 = vpop.permute.xlu0 %2528
        %v2530 = vrot.slane %v2529, 4
        %v2531 = vsel %vm703, %v2530, %v2529
        %v2534 = vmul.bf16 %v2322, %v2531
        %v2535 = vmul.bf16 %v2351, %v2530
        %s2536 = scalar_lea.vmem %s12, 8
        %v2537 = vld [vmem:[%s2536] sm:$0xf]
        %v2540 = vunpack.c.l.b16 %v2534
        %v2541 = vunpack.c.h.b16 %v2534
        %v2542 = vunpack.c.l.b16 %v2535
        %v2543 = vpack.c.b16 %v2540, %v2540
        %v2544 = vpack.c.b16 %v2541, %v2541
        %v2545 = vpack.c.b16 %v2542, %v2542
        %2546 = vrot.lane.b32.xlu0 %v2543, 126
        %v2547 = vpop.permute.xlu0 %2546
        %2548 = vrot.lane.b32.xlu0 %v2544, 126
        %v2549 = vpop.permute.xlu0 %2548
        %2550 = vrot.lane.b32.xlu0 %v2545, 126
        %v2551 = vpop.permute.xlu0 %2550
        %v2552 = vsel %vm728, %v2547, %v2549
        %v2553 = vsel %vm728, %v2549, %v2551
        %v2555 = vsel %vm2397, %v2537, 0
        %v2558 = vsel %vm1210, %v2552, 0
        %v2561 = vsel %vm1210, %v2553, 0
        %2563 = vmatprep.subr.bf16.mxu0 0
        %2564 = vmatpush1.bf16.msra.mxu0 0
        %2565 = vmatprep.subr.bf16.mxu0 0
        %2566 = vmatpush1.bf16.msra.mxu0 0
        %2567 = vmatprep.subr.bf16.mxu0 0
        %2568 = vmatpush1.bf16.msra.mxu0 0
        %2569 = vmatprep.subr.bf16.mxu0 0
        %2570 = vmatpush1.bf16.msra.mxu0 0
        %2571 = vmatprep.subr.bf16.mxu0 0
        %2572 = vmatpush1.bf16.msra.mxu0 0
        %2573 = vmatprep.subr.bf16.mxu0 0
        %2574 = vmatpush1.bf16.msra.mxu0 0
        %2575 = vmatprep.subr.bf16.mxu0 0
        %2576 = vmatpush1.bf16.msra.mxu0 0
        %2577 = vmatprep.subr.bf16.mxu0 %v2561
        %2578 = vmatpush1.bf16.msra.mxu0 %v2558
        %2579 = vmatprep.subr.bf16.mxu0 0
        %2580 = vmatpush2.bf16.msra.mxu0 0
        %2581 = vmatprep.subr.bf16.mxu0 0
        %2582 = vmatpush2.bf16.msra.mxu0 0
        %2583 = vmatprep.subr.bf16.mxu0 0
        %2584 = vmatpush2.bf16.msra.mxu0 0
        %2585 = vmatprep.subr.bf16.mxu0 0
        %2586 = vmatpush2.bf16.msra.mxu0 0
        %2587 = vmatprep.subr.bf16.mxu0 0
        %2588 = vmatpush2.bf16.msra.mxu0 0
        %2589 = vmatprep.subr.bf16.mxu0 0
        %2590 = vmatpush2.bf16.msra.mxu0 0
        %2591 = vmatprep.subr.bf16.mxu0 0
        %2592 = vmatpush2.bf16.msra.mxu0 0
        %2593 = vmatprep.subr.bf16.mxu0 0
        %2594 = vmatpush2.bf16.msra.mxu0 0
        %2595 = vmatprep.mubr.bf16.mxu0 0
        %2596 = vmatmul.mubr.bf16.gmra.mxu0 %v2555
        %v2597 = vpop.f32.mrf.mxu0
        %v2598 = vadd.f32 0.0, %v2597
        %v2599 = vpop.f32.mrf.mxu0
        %v2600 = vadd.f32 0.0, %v2599
        %v2601 = vpop.f32.mrf.mxu0
        %v2602 = vpop.f32.mrf.mxu0
        %2603 = vdwg.mxu0
        %v2604 = vadd.f32 %v2497, %v2598
        %v2605 = vadd.f32 %v2499, %v2600
        %v2606 = vshrl.u32 %v2507, 16
        %v2607 = vpack.i.b16 %v2606, %v2606
        %v2609 = vlaneseq
        %v2610 = vshrl.u32 %v2609, 7
        %v2611 = vsub.s32 1, %v2610
        %v2612 = vrot.slane %v2607, %v2611
        %v2613 = vshrl.u32 %v2508, 16
        %v2614 = vpack.i.b16 %v2613, %v2613
        %v2616 = vlaneseq
        %v2617 = vshrl.u32 %v2616, 7
        %v2618 = vsub.s32 1, %v2617
        %v2619 = vrot.slane %v2614, %v2618
        %v2622 = vunpack.c.l.b16 %v2612
        %v2623 = vunpack.c.l.b16 %v2619
        %v2624 = vpack.c.b16 %v2623, %v2622
        %2625 = vrot.lane.b32.xlu0 %v2624, 16
        %v2626 = vpop.permute.xlu0 %2625
        %v2627 = vrot.slane %v2626, 4
        %v2628 = vsel %vm777, %v2627, %v2626
        %v2631 = vmul.bf16 %v2322, %v2628
        %v2632 = vmul.bf16 %v2351, %v2627
        %s2633 = scalar_lea.vmem %s12, 12
        %v2634 = vld [vmem:[%s2633] sm:$0xf]
        %v2637 = vunpack.c.l.b16 %v2631
        %v2638 = vunpack.c.h.b16 %v2631
        %v2639 = vunpack.c.l.b16 %v2632
        %v2640 = vpack.c.b16 %v2637, %v2637
        %v2641 = vpack.c.b16 %v2638, %v2638
        %v2642 = vpack.c.b16 %v2639, %v2639
        %2643 = vrot.lane.b32.xlu0 %v2640, 112
        %v2644 = vpop.permute.xlu0 %2643
        %2645 = vrot.lane.b32.xlu0 %v2641, 112
        %v2646 = vpop.permute.xlu0 %2645
        %2647 = vrot.lane.b32.xlu0 %v2642, 112
        %v2648 = vpop.permute.xlu0 %2647
        %v2649 = vsel %vm804, %v2644, %v2646
        %v2650 = vsel %vm804, %v2646, %v2648
        %v2652 = vsel %vm2397, %v2634, 0
        %v2655 = vsel %vm1210, %v2649, 0
        %v2658 = vsel %vm1210, %v2650, 0
        %2660 = vmatprep.subr.bf16.mxu0 0
        %2661 = vmatpush1.bf16.msra.mxu0 0
        %2662 = vmatprep.subr.bf16.mxu0 0
        %2663 = vmatpush1.bf16.msra.mxu0 0
        %2664 = vmatprep.subr.bf16.mxu0 0
        %2665 = vmatpush1.bf16.msra.mxu0 0
        %2666 = vmatprep.subr.bf16.mxu0 0
        %2667 = vmatpush1.bf16.msra.mxu0 0
        %2668 = vmatprep.subr.bf16.mxu0 0
        %2669 = vmatpush1.bf16.msra.mxu0 0
        %2670 = vmatprep.subr.bf16.mxu0 0
        %2671 = vmatpush1.bf16.msra.mxu0 0
        %2672 = vmatprep.subr.bf16.mxu0 0
        %2673 = vmatpush1.bf16.msra.mxu0 0
        %2674 = vmatprep.subr.bf16.mxu0 %v2658
        %2675 = vmatpush1.bf16.msra.mxu0 %v2655
        %2676 = vmatprep.subr.bf16.mxu0 0
        %2677 = vmatpush2.bf16.msra.mxu0 0
        %2678 = vmatprep.subr.bf16.mxu0 0
        %2679 = vmatpush2.bf16.msra.mxu0 0
        %2680 = vmatprep.subr.bf16.mxu0 0
        %2681 = vmatpush2.bf16.msra.mxu0 0
        %2682 = vmatprep.subr.bf16.mxu0 0
        %2683 = vmatpush2.bf16.msra.mxu0 0
        %2684 = vmatprep.subr.bf16.mxu0 0
        %2685 = vmatpush2.bf16.msra.mxu0 0
        %2686 = vmatprep.subr.bf16.mxu0 0
        %2687 = vmatpush2.bf16.msra.mxu0 0
        %2688 = vmatprep.subr.bf16.mxu0 0
        %2689 = vmatpush2.bf16.msra.mxu0 0
        %2690 = vmatprep.subr.bf16.mxu0 0
        %2691 = vmatpush2.bf16.msra.mxu0 0
        %2692 = vmatprep.mubr.bf16.mxu0 0
        %2693 = vmatmul.mubr.bf16.gmra.mxu0 %v2652
        %v2694 = vpop.f32.mrf.mxu0
        %v2695 = vadd.f32 0.0, %v2694
        %v2696 = vpop.f32.mrf.mxu0
        %v2697 = vadd.f32 0.0, %v2696
        %v2698 = vpop.f32.mrf.mxu0
        %v2699 = vpop.f32.mrf.mxu0
        %2700 = vdwg.mxu0
        %v2701 = vadd.f32 %v2604, %v2695
        %v2702 = vadd.f32 %v2605, %v2697
        %s2703 = scalar_lea.vmem %s12, 16
        %v2704 = vld [vmem:[%s2703] sm:$0xf]
        %v2707 = vunpack.c.l.b16 %v2322
        %v2708 = vunpack.c.h.b16 %v2322
        %v2709 = vunpack.c.l.b16 %v2351
        %v2710 = vpack.c.b16 %v2707, %v2707
        %v2711 = vpack.c.b16 %v2708, %v2708
        %v2712 = vpack.c.b16 %v2709, %v2709
        %2713 = vrot.lane.b32.xlu0 %v2710, 111
        %v2714 = vpop.permute.xlu0 %2713
        %2715 = vrot.lane.b32.xlu0 %v2711, 111
        %v2716 = vpop.permute.xlu0 %2715
        %2717 = vrot.lane.b32.xlu0 %v2712, 111
        %v2718 = vpop.permute.xlu0 %2717
        %v2719 = vsel %vm828, %v2714, %v2716
        %v2720 = vsel %vm828, %v2716, %v2718
        %v2722 = vsel %vm2397, %v2704, 0
        %v2725 = vsel %vm1210, %v2719, 0
        %v2728 = vsel %vm1210, %v2720, 0
        %2730 = vmatprep.subr.bf16.mxu0 0
        %2731 = vmatpush1.bf16.msra.mxu0 0
        %2732 = vmatprep.subr.bf16.mxu0 0
        %2733 = vmatpush1.bf16.msra.mxu0 0
        %2734 = vmatprep.subr.bf16.mxu0 0
        %2735 = vmatpush1.bf16.msra.mxu0 0
        %2736 = vmatprep.subr.bf16.mxu0 0
        %2737 = vmatpush1.bf16.msra.mxu0 0
        %2738 = vmatprep.subr.bf16.mxu0 0
        %2739 = vmatpush1.bf16.msra.mxu0 0
        %2740 = vmatprep.subr.bf16.mxu0 0
        %2741 = vmatpush1.bf16.msra.mxu0 0
        %2742 = vmatprep.subr.bf16.mxu0 0
        %2743 = vmatpush1.bf16.msra.mxu0 0
        %2744 = vmatprep.subr.bf16.mxu0 %v2728
        %2745 = vmatpush1.bf16.msra.mxu0 %v2725
        %2746 = vmatprep.subr.bf16.mxu0 0
        %2747 = vmatpush2.bf16.msra.mxu0 0
        %2748 = vmatprep.subr.bf16.mxu0 0
        %2749 = vmatpush2.bf16.msra.mxu0 0
        %2750 = vmatprep.subr.bf16.mxu0 0
        %2751 = vmatpush2.bf16.msra.mxu0 0
        %2752 = vmatprep.subr.bf16.mxu0 0
        %2753 = vmatpush2.bf16.msra.mxu0 0
        %2754 = vmatprep.subr.bf16.mxu0 0
        %2755 = vmatpush2.bf16.msra.mxu0 0
        %2756 = vmatprep.subr.bf16.mxu0 0
        %2757 = vmatpush2.bf16.msra.mxu0 0
        %2758 = vmatprep.subr.bf16.mxu0 0
        %2759 = vmatpush2.bf16.msra.mxu0 0
        %2760 = vmatprep.subr.bf16.mxu0 0
        %2761 = vmatpush2.bf16.msra.mxu0 0
        %2762 = vmatprep.mubr.bf16.mxu0 0
        %2763 = vmatmul.mubr.bf16.gmra.mxu0 %v2722
        %v2764 = vpop.f32.mrf.mxu0
        %v2765 = vadd.f32 0.0, %v2764
        %v2766 = vpop.f32.mrf.mxu0
        %v2767 = vadd.f32 0.0, %v2766
        %v2768 = vpop.f32.mrf.mxu0
        %v2769 = vpop.f32.mrf.mxu0
        %2770 = vdwg.mxu0
        %v2771 = vadd.f32 %v2701, %v2765
        %v2772 = vadd.f32 %v2702, %v2767
        %v2773 = vld [vmem:[%s5] sm:$0x44]
        %v2775 = vunpack.c.l.b16 %v2773
        %v2776 = vunpack.c.h.b16 %v2773
        %v2777 = vpack.c.b16 %v2775, %v2775
        %v2778 = vpack.c.b16 %v2776, %v2776
        %v2780 = vshrl.u32 %v2777, 16
        %v2781 = vpack.i.b16 %v2780, %v2780
        %v2783 = vlaneseq
        %v2784 = vshrl.u32 %v2783, 7
        %v2785 = vsub.s32 2, %v2784
        %v2786 = vrot.slane %v2781, %v2785
        %v2788 = vshrl.u32 %v2778, 16
        %v2789 = vpack.i.b16 %v2788, %v2788
        %v2791 = vlaneseq
        %v2792 = vshrl.u32 %v2791, 7
        %v2793 = vsub.s32 2, %v2792
        %v2794 = vrot.slane %v2789, %v2793
        %v2797 = vunpack.c.l.b16 %v2786
        %v2798 = vunpack.c.l.b16 %v2794
        %v2799 = vpack.c.b16 %v2798, %v2797
        %2800 = vrot.lane.b32.xlu0 %v2799, 18
        %v2801 = vpop.permute.xlu0 %2800
        %v2802 = vrot.slane %v2801, 4
        %v2803 = vsel %vm873, %v2802, %v2801
        %v2806 = vmul.bf16 %v2322, %v2803
        %v2807 = vmul.bf16 %v2351, %v2802
        %s2808 = scalar_lea.vmem %s12, 20
        %v2809 = vld [vmem:[%s2808] sm:$0xf]
        %v2812 = vunpack.c.l.b16 %v2806
        %v2813 = vunpack.c.h.b16 %v2806
        %v2814 = vunpack.c.l.b16 %v2807
        %v2815 = vpack.c.b16 %v2812, %v2812
        %v2816 = vpack.c.b16 %v2813, %v2813
        %v2817 = vpack.c.b16 %v2814, %v2814
        %2818 = vrot.lane.b32.xlu0 %v2815, 110
        %v2819 = vpop.permute.xlu0 %2818
        %2820 = vrot.lane.b32.xlu0 %v2816, 110
        %v2821 = vpop.permute.xlu0 %2820
        %2822 = vrot.lane.b32.xlu0 %v2817, 110
        %v2823 = vpop.permute.xlu0 %2822
        %v2824 = vsel %vm910, %v2819, %v2821
        %v2825 = vsel %vm910, %v2821, %v2823
        %v2827 = vsel %vm2397, %v2809, 0
        %v2830 = vsel %vm1210, %v2824, 0
        %v2833 = vsel %vm1210, %v2825, 0
        %2835 = vmatprep.subr.bf16.mxu0 0
        %2836 = vmatpush1.bf16.msra.mxu0 0
        %2837 = vmatprep.subr.bf16.mxu0 0
        %2838 = vmatpush1.bf16.msra.mxu0 0
        %2839 = vmatprep.subr.bf16.mxu0 0
        %2840 = vmatpush1.bf16.msra.mxu0 0
        %2841 = vmatprep.subr.bf16.mxu0 0
        %2842 = vmatpush1.bf16.msra.mxu0 0
        %2843 = vmatprep.subr.bf16.mxu0 0
        %2844 = vmatpush1.bf16.msra.mxu0 0
        %2845 = vmatprep.subr.bf16.mxu0 0
        %2846 = vmatpush1.bf16.msra.mxu0 0
        %2847 = vmatprep.subr.bf16.mxu0 0
        %2848 = vmatpush1.bf16.msra.mxu0 0
        %2849 = vmatprep.subr.bf16.mxu0 %v2833
        %2850 = vmatpush1.bf16.msra.mxu0 %v2830
        %2851 = vmatprep.subr.bf16.mxu0 0
        %2852 = vmatpush2.bf16.msra.mxu0 0
        %2853 = vmatprep.subr.bf16.mxu0 0
        %2854 = vmatpush2.bf16.msra.mxu0 0
        %2855 = vmatprep.subr.bf16.mxu0 0
        %2856 = vmatpush2.bf16.msra.mxu0 0
        %2857 = vmatprep.subr.bf16.mxu0 0
        %2858 = vmatpush2.bf16.msra.mxu0 0
        %2859 = vmatprep.subr.bf16.mxu0 0
        %2860 = vmatpush2.bf16.msra.mxu0 0
        %2861 = vmatprep.subr.bf16.mxu0 0
        %2862 = vmatpush2.bf16.msra.mxu0 0
        %2863 = vmatprep.subr.bf16.mxu0 0
        %2864 = vmatpush2.bf16.msra.mxu0 0
        %2865 = vmatprep.subr.bf16.mxu0 0
        %2866 = vmatpush2.bf16.msra.mxu0 0
        %2867 = vmatprep.mubr.bf16.mxu0 0
        %2868 = vmatmul.mubr.bf16.gmra.mxu0 %v2827
        %v2869 = vpop.f32.mrf.mxu0
        %v2870 = vadd.f32 0.0, %v2869
        %v2871 = vpop.f32.mrf.mxu0
        %v2872 = vadd.f32 0.0, %v2871
        %v2873 = vpop.f32.mrf.mxu0
        %v2874 = vpop.f32.mrf.mxu0
        %2875 = vdwg.mxu0
        %v2876 = vadd.f32 %v2771, %v2870
        %v2877 = vadd.f32 %v2772, %v2872
        %v2878 = vld [vmem:[%s5] sm:$0x88]
        %v2880 = vunpack.c.l.b16 %v2878
        %v2881 = vunpack.c.h.b16 %v2878
        %v2882 = vpack.c.b16 %v2880, %v2880
        %v2883 = vpack.c.b16 %v2881, %v2881
        %v2885 = vpack.i.b16 %v2882, %v2882
        %v2887 = vlaneseq
        %v2888 = vshrl.u32 %v2887, 7
        %v2889 = vsub.s32 3, %v2888
        %v2890 = vrot.slane %v2885, %v2889
        %v2892 = vpack.i.b16 %v2883, %v2883
        %v2894 = vlaneseq
        %v2895 = vshrl.u32 %v2894, 7
        %v2896 = vsub.s32 3, %v2895
        %v2897 = vrot.slane %v2892, %v2896
        %v2900 = vunpack.c.l.b16 %v2890
        %v2901 = vunpack.c.l.b16 %v2897
        %v2902 = vpack.c.b16 %v2901, %v2900
        %2903 = vrot.lane.b32.xlu0 %v2902, 32
        %v2904 = vpop.permute.xlu0 %2903
        %v2905 = vrot.slane %v2904, 4
        %v2906 = vsel %vm957, %v2905, %v2904
        %v2909 = vmul.bf16 %v2322, %v2906
        %v2910 = vmul.bf16 %v2351, %v2905
        %s2911 = scalar_lea.vmem %s12, 24
        %v2912 = vld [vmem:[%s2911] sm:$0xf]
        %v2915 = vunpack.c.l.b16 %v2909
        %v2916 = vunpack.c.h.b16 %v2909
        %v2917 = vunpack.c.l.b16 %v2910
        %v2918 = vpack.c.b16 %v2915, %v2915
        %v2919 = vpack.c.b16 %v2916, %v2916
        %v2920 = vpack.c.b16 %v2917, %v2917
        %2921 = vrot.lane.b32.xlu0 %v2918, 96
        %v2922 = vpop.permute.xlu0 %2921
        %2923 = vrot.lane.b32.xlu0 %v2919, 96
        %v2924 = vpop.permute.xlu0 %2923
        %2925 = vrot.lane.b32.xlu0 %v2920, 96
        %v2926 = vpop.permute.xlu0 %2925
        %v2927 = vsel %vm974, %v2922, %v2924
        %v2928 = vsel %vm974, %v2924, %v2926
        %v2930 = vsel %vm2397, %v2912, 0
        %v2933 = vsel %vm1210, %v2927, 0
        %v2936 = vsel %vm1210, %v2928, 0
        %2938 = vmatprep.subr.bf16.mxu0 0
        %2939 = vmatpush1.bf16.msra.mxu0 0
        %2940 = vmatprep.subr.bf16.mxu0 0
        %2941 = vmatpush1.bf16.msra.mxu0 0
        %2942 = vmatprep.subr.bf16.mxu0 0
        %2943 = vmatpush1.bf16.msra.mxu0 0
        %2944 = vmatprep.subr.bf16.mxu0 0
        %2945 = vmatpush1.bf16.msra.mxu0 0
        %2946 = vmatprep.subr.bf16.mxu0 0
        %2947 = vmatpush1.bf16.msra.mxu0 0
        %2948 = vmatprep.subr.bf16.mxu0 0
        %2949 = vmatpush1.bf16.msra.mxu0 0
        %2950 = vmatprep.subr.bf16.mxu0 0
        %2951 = vmatpush1.bf16.msra.mxu0 0
        %2952 = vmatprep.subr.bf16.mxu0 %v2936
        %2953 = vmatpush1.bf16.msra.mxu0 %v2933
        %2954 = vmatprep.subr.bf16.mxu0 0
        %2955 = vmatpush2.bf16.msra.mxu0 0
        %2956 = vmatprep.subr.bf16.mxu0 0
        %2957 = vmatpush2.bf16.msra.mxu0 0
        %2958 = vmatprep.subr.bf16.mxu0 0
        %2959 = vmatpush2.bf16.msra.mxu0 0
        %2960 = vmatprep.subr.bf16.mxu0 0
        %2961 = vmatpush2.bf16.msra.mxu0 0
        %2962 = vmatprep.subr.bf16.mxu0 0
        %2963 = vmatpush2.bf16.msra.mxu0 0
        %2964 = vmatprep.subr.bf16.mxu0 0
        %2965 = vmatpush2.bf16.msra.mxu0 0
        %2966 = vmatprep.subr.bf16.mxu0 0
        %2967 = vmatpush2.bf16.msra.mxu0 0
        %2968 = vmatprep.subr.bf16.mxu0 0
        %2969 = vmatpush2.bf16.msra.mxu0 0
        %2970 = vmatprep.mubr.bf16.mxu0 0
        %2971 = vmatmul.mubr.bf16.gmra.mxu0 %v2930
        %v2972 = vpop.f32.mrf.mxu0
        %v2973 = vadd.f32 0.0, %v2972
        %v2974 = vpop.f32.mrf.mxu0
        %v2975 = vadd.f32 0.0, %v2974
        %v2976 = vpop.f32.mrf.mxu0
        %v2977 = vpop.f32.mrf.mxu0
        %2978 = vdwg.mxu0
        %v2979 = vadd.f32 %v2876, %v2973
        %v2980 = vadd.f32 %v2877, %v2975
        %v2981 = vshrl.u32 %v2882, 16
        %v2982 = vpack.i.b16 %v2981, %v2981
        %v2984 = vlaneseq
        %v2985 = vshrl.u32 %v2984, 7
        %v2986 = vsub.s32 3, %v2985
        %v2987 = vrot.slane %v2982, %v2986
        %v2988 = vshrl.u32 %v2883, 16
        %v2989 = vpack.i.b16 %v2988, %v2988
        %v2991 = vlaneseq
        %v2992 = vshrl.u32 %v2991, 7
        %v2993 = vsub.s32 3, %v2992
        %v2994 = vrot.slane %v2989, %v2993
        %v2997 = vunpack.c.l.b16 %v2987
        %v2998 = vunpack.c.l.b16 %v2994
        %v2999 = vpack.c.b16 %v2998, %v2997
        %3000 = vrot.lane.b32.xlu0 %v2999, 33
        %v3001 = vpop.permute.xlu0 %3000
        %v3002 = vrot.slane %v3001, 4
        %v3003 = vsel %vm1017, %v3002, %v3001
        %v3006 = vmul.bf16 %v2322, %v3003
        %v3007 = vmul.bf16 %v2351, %v3002
        %s3008 = scalar_lea.vmem %s12, 28
        %v3009 = vld [vmem:[%s3008] sm:$0xf]
        %v3012 = vunpack.c.l.b16 %v3006
        %v3013 = vunpack.c.h.b16 %v3006
        %v3014 = vunpack.c.l.b16 %v3007
        %v3015 = vpack.c.b16 %v3012, %v3012
        %v3016 = vpack.c.b16 %v3013, %v3013
        %v3017 = vpack.c.b16 %v3014, %v3014
        %3018 = vrot.lane.b32.xlu0 %v3015, 95
        %v3019 = vpop.permute.xlu0 %3018
        %3020 = vrot.lane.b32.xlu0 %v3016, 95
        %v3021 = vpop.permute.xlu0 %3020
        %3022 = vrot.lane.b32.xlu0 %v3017, 95
        %v3023 = vpop.permute.xlu0 %3022
        %v3024 = vsel %vm1046, %v3019, %v3021
        %v3025 = vsel %vm1046, %v3021, %v3023
        %v3027 = vsel %vm2397, %v3009, 0
        %v3030 = vsel %vm1210, %v3024, 0
        %v3033 = vsel %vm1210, %v3025, 0
        %3035 = vmatprep.subr.bf16.mxu0 0
        %3036 = vmatpush1.bf16.msra.mxu0 0
        %3037 = vmatprep.subr.bf16.mxu0 0
        %3038 = vmatpush1.bf16.msra.mxu0 0
        %3039 = vmatprep.subr.bf16.mxu0 0
        %3040 = vmatpush1.bf16.msra.mxu0 0
        %3041 = vmatprep.subr.bf16.mxu0 0
        %3042 = vmatpush1.bf16.msra.mxu0 0
        %3043 = vmatprep.subr.bf16.mxu0 0
        %3044 = vmatpush1.bf16.msra.mxu0 0
        %3045 = vmatprep.subr.bf16.mxu0 0
        %3046 = vmatpush1.bf16.msra.mxu0 0
        %3047 = vmatprep.subr.bf16.mxu0 0
        %3048 = vmatpush1.bf16.msra.mxu0 0
        %3049 = vmatprep.subr.bf16.mxu0 %v3033
        %3050 = vmatpush1.bf16.msra.mxu0 %v3030
        %3051 = vmatprep.subr.bf16.mxu0 0
        %3052 = vmatpush2.bf16.msra.mxu0 0
        %3053 = vmatprep.subr.bf16.mxu0 0
        %3054 = vmatpush2.bf16.msra.mxu0 0
        %3055 = vmatprep.subr.bf16.mxu0 0
        %3056 = vmatpush2.bf16.msra.mxu0 0
        %3057 = vmatprep.subr.bf16.mxu0 0
        %3058 = vmatpush2.bf16.msra.mxu0 0
        %3059 = vmatprep.subr.bf16.mxu0 0
        %3060 = vmatpush2.bf16.msra.mxu0 0
        %3061 = vmatprep.subr.bf16.mxu0 0
        %3062 = vmatpush2.bf16.msra.mxu0 0
        %3063 = vmatprep.subr.bf16.mxu0 0
        %3064 = vmatpush2.bf16.msra.mxu0 0
        %3065 = vmatprep.subr.bf16.mxu0 0
        %3066 = vmatpush2.bf16.msra.mxu0 0
        %3067 = vmatprep.mubr.bf16.mxu0 0
        %3068 = vmatmul.mubr.bf16.gmra.mxu0 %v3027
        %v3069 = vpop.f32.mrf.mxu0
        %v3070 = vadd.f32 0.0, %v3069
        %v3071 = vpop.f32.mrf.mxu0
        %v3072 = vadd.f32 0.0, %v3071
        %v3073 = vpop.f32.mrf.mxu0
        %v3074 = vpop.f32.mrf.mxu0
        %3075 = vdwg.mxu0
        %v3076 = vadd.f32 %v2979, %v3070
        %v3077 = vadd.f32 %v2980, %v3072
        %v3078 = vld [vmem:[%s5 + $0x8] sm:$0x11]
        %v3080 = vunpack.c.l.b16 %v3078
        %v3081 = vunpack.c.h.b16 %v3078
        %v3082 = vpack.c.b16 %v3080, %v3080
        %v3083 = vpack.c.b16 %v3081, %v3081
        %v3085 = vpack.i.b16 %v3082, %v3082
        %v3087 = vlaneseq
        %v3088 = vshrl.u32 %v3087, 7
        %v3089 = vsub.s32 0, %v3088
        %v3090 = vrot.slane %v3085, %v3089
        %v3092 = vpack.i.b16 %v3083, %v3083
        %v3094 = vlaneseq
        %v3095 = vshrl.u32 %v3094, 7
        %v3096 = vsub.s32 0, %v3095
        %v3097 = vrot.slane %v3092, %v3096
        %v3100 = vunpack.c.l.b16 %v3090
        %v3101 = vunpack.c.l.b16 %v3097
        %v3102 = vpack.c.b16 %v3101, %v3100
        %3103 = vrot.lane.b32.xlu0 %v3102, 34
        %v3104 = vpop.permute.xlu0 %3103
        %v3105 = vrot.slane %v3104, 4
        %v3106 = vsel %vm1087, %v3105, %v3104
        %v3109 = vmul.bf16 %v2322, %v3106
        %v3110 = vmul.bf16 %v2351, %v3105
        %s3111 = scalar_lea.vmem %s12, 32
        %v3112 = vld [vmem:[%s3111] sm:$0xf]
        %v3115 = vunpack.c.l.b16 %v3109
        %v3116 = vunpack.c.h.b16 %v3109
        %v3117 = vunpack.c.l.b16 %v3110
        %v3118 = vpack.c.b16 %v3115, %v3115
        %v3119 = vpack.c.b16 %v3116, %v3116
        %v3120 = vpack.c.b16 %v3117, %v3117
        %3121 = vrot.lane.b32.xlu0 %v3118, 94
        %v3122 = vpop.permute.xlu0 %3121
        %3123 = vrot.lane.b32.xlu0 %v3119, 94
        %v3124 = vpop.permute.xlu0 %3123
        %3125 = vrot.lane.b32.xlu0 %v3120, 94
        %v3126 = vpop.permute.xlu0 %3125
        %v3127 = vsel %vm1102, %v3122, %v3124
        %v3128 = vsel %vm1102, %v3124, %v3126
        %v3130 = vsel %vm2397, %v3112, 0
        %v3133 = vsel %vm1210, %v3127, 0
        %v3136 = vsel %vm1210, %v3128, 0
        %3138 = vmatprep.subr.bf16.mxu0 0
        %3139 = vmatpush1.bf16.msra.mxu0 0
        %3140 = vmatprep.subr.bf16.mxu0 0
        %3141 = vmatpush1.bf16.msra.mxu0 0
        %3142 = vmatprep.subr.bf16.mxu0 0
        %3143 = vmatpush1.bf16.msra.mxu0 0
        %3144 = vmatprep.subr.bf16.mxu0 0
        %3145 = vmatpush1.bf16.msra.mxu0 0
        %3146 = vmatprep.subr.bf16.mxu0 0
        %3147 = vmatpush1.bf16.msra.mxu0 0
        %3148 = vmatprep.subr.bf16.mxu0 0
        %3149 = vmatpush1.bf16.msra.mxu0 0
        %3150 = vmatprep.subr.bf16.mxu0 0
        %3151 = vmatpush1.bf16.msra.mxu0 0
        %3152 = vmatprep.subr.bf16.mxu0 %v3136
        %3153 = vmatpush1.bf16.msra.mxu0 %v3133
        %3154 = vmatprep.subr.bf16.mxu0 0
        %3155 = vmatpush2.bf16.msra.mxu0 0
        %3156 = vmatprep.subr.bf16.mxu0 0
        %3157 = vmatpush2.bf16.msra.mxu0 0
        %3158 = vmatprep.subr.bf16.mxu0 0
        %3159 = vmatpush2.bf16.msra.mxu0 0
        %3160 = vmatprep.subr.bf16.mxu0 0
        %3161 = vmatpush2.bf16.msra.mxu0 0
        %3162 = vmatprep.subr.bf16.mxu0 0
        %3163 = vmatpush2.bf16.msra.mxu0 0
        %3164 = vmatprep.subr.bf16.mxu0 0
        %3165 = vmatpush2.bf16.msra.mxu0 0
        %3166 = vmatprep.subr.bf16.mxu0 0
        %3167 = vmatpush2.bf16.msra.mxu0 0
        %3168 = vmatprep.subr.bf16.mxu0 0
        %3169 = vmatpush2.bf16.msra.mxu0 0
        %3170 = vmatprep.mubr.bf16.mxu0 0
        %3171 = vmatmul.mubr.bf16.gmra.mxu0 %v3130
        %v3172 = vpop.f32.mrf.mxu0
        %v3173 = vadd.f32 0.0, %v3172
        %v3174 = vpop.f32.mrf.mxu0
        %v3175 = vadd.f32 0.0, %v3174
        %v3176 = vpop.f32.mrf.mxu0
        %v3177 = vpop.f32.mrf.mxu0
        %3178 = vdwg.mxu0
        %v3179 = vadd.f32 %v3076, %v3173
        %v3180 = vadd.f32 %v3077, %v3175
        %v3181 = vld [vmem:[%s13] sm:$0xff]
        %3183 = vset.pattern.permute.xlu0 0
        %3184 = vperm.xlu0 %3183, %v3181
        %v3185 = vpop.permute.xlu0 %3184
        %v3187 = vadd.f32 %v3179, %v3185
        %v3188 = vadd.f32 %v3180, %v3185
        %3189 = vst [vmem:[%s503] sm:$0xff] %v3187
        %3190 = vst [vmem:[%s503 + $0x8] sm:$0xff] %v3188
        %s3191 = sand.u32 %s350, 1
        %s3192 = scalar_lea.sflag [#allocation5], %s3191
        %s3193 = sand.u32 %s350, 1
        %s3194 = smul.addr %s3193, 16
        %s3195 = scalar_lea.vmem [#allocation4], %s3194
        // Predicated region
        $region77: #{tpu_custom_call.1} parent=75 // pred_check
          %p3196 = pneg %p360
        $region78: #{tpu_custom_call.1} parent=75 // pred_check_branch
          %3198 = sbr.rel (%p3196) target = $region80
        $region79: #{tpu_custom_call.1} parent=75 // pred_region
          %s3200 = ssub.s32 256, 256
          %3201 = vsyncadd %s3192, %s3200
          %s3202 = smul.addr %s28, 2
          %s3203 = smul.addr %s3202, 128
          %s3204 = scalar_lea.hbm %s14, %s3203
          %s3206 = sshll.u32 %s3195, 4
          %s3207 = int_to_ptr.vmem [resolvable:$true] %s3206
          %3209 = dma.vmem_to_hbm [thread:$0]  %s3207, 256, %s3204, %s3192
        $region80: #{tpu_custom_call.1} parent=75 // pred_fallthru
          _
      $region76: #{tpu_custom_call.1} parent=5 // pred_fallthru
        _
      %p3210 = scmp.le.s32.totalorder 2, %s23
      // Predicated region
      $region81: #{tpu_custom_call.1} parent=5 // pred_check
        %p3211 = pneg %p3210
      $region82: #{tpu_custom_call.1} parent=5 // pred_check_branch
        %3213 = sbr.rel (%p3211) target = $region84
      $region83: #{tpu_custom_call.1} parent=5 // pred_region
        %s3214 = ssub.s32 %s23, 2
        // Predicated region
        $region85: #{tpu_custom_call.1} parent=83 // pred_check
          %p3215 = pneg %p366
        $region86: #{tpu_custom_call.1} parent=83 // pred_check_branch
          %3217 = sbr.rel (%p3215) target = $region88
        $region87: #{tpu_custom_call.1} parent=83 // pred_region
          %s3218 = sand.u32 %s351, 1
          %s3219 = scalar_lea.sflag [#allocation5], %s3218
          %s3220 = sand.u32 %s351, 1
          %s3221 = smul.addr %s3220, 16
          %s3222 = scalar_lea.vmem [#allocation4], %s3221
          %3223 = dma.done %s3219, 256
        $region88: #{tpu_custom_call.1} parent=83 // pred_fallthru
          _
      $region84: #{tpu_custom_call.1} parent=5 // pred_fallthru
        _
    $region6: #{tpu_custom_call.1} parent=1 // loop_footer
      %s27 = sadd.s32 1, %s23
    $region7: #{tpu_custom_call.1} parent=1 // loop_footer_branch
      %22 = sbr.rel target = $region3
    $region8: #{tpu_custom_call.1} parent=1 // loop_exit
      _
    %3224 = vsyncpa [#allocation5], 1
    %s3225 = scalar_lea.sflag [#allocation5], 1
    %3226 = vsyncpa %s3225, 1

</llo_original>
